<compile_context>
chip_gen: v7x
topology: tpu7x:2x2x1
jax: 0.10.0
libtpu: 0.0.40
codegen_flags: <defaults>
</compile_context>

<pallas_src>
import functools

import jax
import jax.numpy as jnp
from jax import lax
from jax.experimental import pallas as pl
from jax.experimental.pallas import tpu as pltpu


def _i3d_head_kernel(x_ref, w_ref, b_ref, out_ref, acc_ref, *,
                     num_classes, spatial_size, tile_s, needs_mask):
    """Grid = (N 'parallel', spatial-tiles 'arbitrary').

    x_ref:   (1, C, tile_s)  activation tile (C on sublanes, spatial on lanes)
    w_ref:   (C, K)          conv weight with BN scale and 1/S folded in
    b_ref:   (1, K)  f32     conv bias with BN shift folded in
    out_ref: (1, 1, KP) f32  softmax probabilities (lane-dense padded classes)
    acc_ref: (C, 128) f32    lane-chunk accumulator (VPU-only hot loop)
    """
    s = pl.program_id(1)
    C = acc_ref.shape[0]
    K = num_classes
    n_chunks = tile_s // 128           # static; tile_s is a multiple of 128

    @pl.when(s == 0)
    def _():
        acc_ref[...] = jnp.zeros_like(acc_ref)

    # AdaptiveAvgPool3d((1,1,1)) partial sum.  Sum the tile's 128-lane chunks
    # into a temp with elementwise VPU adds (no cross-lane XLU work in the hot
    # loop), then do ONE read-modify-write of the VMEM accumulator per step.
    temp = None
    for j in range(n_chunks):          # static trip count, trace-time unrolled
        chunk = x_ref[0, :, j * 128:(j + 1) * 128].astype(jnp.float32)
        if needs_mask:
            # The last spatial tile may extend past S: zero out-of-range lanes.
            gpos = (s * tile_s + j * 128
                    + lax.broadcasted_iota(jnp.int32, (C, 128), 1))
            chunk = jnp.where(gpos < spatial_size, chunk, 0.0)
        temp = chunk if temp is None else temp + chunk
    acc_ref[...] += temp

    @pl.when(s == pl.num_programs(1) - 1)
    def _():
        # Single cross-lane reduce + (C,) -> (1, C) relayout, once per batch.
        pooled = jnp.sum(acc_ref[...], axis=-1).reshape(1, -1)       # (1, C)

        # 1x1x1 Conv3d on a 1x1x1 map == dense matmul; eval-mode BatchNorm and
        # the 1/S pooling normalization are folded into w/b on the host.
        logits = jnp.dot(pooled, w_ref[...].astype(jnp.float32),
                         preferred_element_type=jnp.float32)          # (1, K)
        logits = logits + b_ref[...].astype(jnp.float32)

        # Unit3D ReLU activation.
        y = jnp.maximum(logits, 0.0)

        # squeeze(3).squeeze(3) then mean over dim 2: T==1, identity.

        # Numerically stable softmax over the real classes.  The divide is an
        # EUP approx reciprocal + one Newton step (full f32 accuracy, no VPU
        # divide on the critical path).
        m = jnp.max(y, axis=-1, keepdims=True)
        e = jnp.exp(y - m)
        denom = jnp.sum(e, axis=-1, keepdims=True)
        inv = pl.reciprocal(denom, approx=True)
        inv = inv * (2.0 - denom * inv)                # Newton refinement
        probs = e * inv                                               # (1, K)

        # Lane-dense padded output store; padded classes get probability 0.
        out_ref[...] = jnp.zeros_like(out_ref)
        out_ref[0, :, :K] = probs


def _pick_tile_s(S, C, itemsize, budget_bytes):
    """Spatial tile width: a multiple of 128 lanes, capped by the VMEM budget,
    sized for a few pipelined steps per batch element."""
    s_pad = pl.cdiv(S, 128) * 128
    lanes_cap = max(128, (budget_bytes // max(1, C * itemsize)) // 128 * 128)
    target = max(128, pl.cdiv(pl.cdiv(s_pad, 4), 128) * 128)  # ~2-4 steps
    return int(min(s_pad, lanes_cap, target))


def rgb_i3d_head_forward(x1, x2, params, *, eps=1e-3,
                         block_budget_bytes=None,
                         weight_stream_dtype=None):
    """Pallas implementation of RGB_I3D_head.forward (eval-mode BN).

    x1: (N, C, T, H, W)  NCTHW activations (any float dtype; streamed as-is)
    x2: unused (signature parity with the PyTorch module)
    params: dict with 'w' (C, K), and 'b','gamma','beta','rm','rv' each (K,)
    weight_stream_dtype: optional dtype (e.g. jnp.bfloat16) to halve the folded
        weight's HBM/VMEM traffic for large K; accumulation stays f32.
    returns: (N, K) softmax probabilities, float32
    """
    del x2  # unused by the PyTorch forward as well
    N, C, T, H, W = x1.shape
    S = T * H * W
    assert C % 8 == 0, "channel dim should be sublane aligned"

    # Generation-aware VMEM budget (v7x: 64 MiB/TC, v5e/v6e: 128 MiB).
    try:
        vmem_cap = int(pltpu.get_tpu_info().vmem_capacity_bytes)
    except Exception:
        vmem_cap = 64 << 20              # conservative (v7x per-TensorCore)
    vmem_limit = min(int(vmem_cap) * 3 // 4, 100 << 20)
    if block_budget_bytes is None:
        block_budget_bytes = max(2 << 20, vmem_limit // 8)

    # Pure reshape (no HBM transpose): (N, C, T, H, W) -> (N, C, S).
    x = jnp.reshape(x1, (N, C, S))

    # Fold eval-mode BatchNorm and the 1/S pooling scale into the conv
    # weight/bias:  y = ((sum/S) @ w + b - rm)*g*rsqrt(rv+eps) + beta
    #                 = sum @ (w*scale/S) + ((b - rm)*scale + beta)
    w = params["w"].astype(jnp.float32)                       # (C, K)
    K = w.shape[1]
    scale = params["gamma"].astype(jnp.float32) * lax.rsqrt(
        params["rv"].astype(jnp.float32) + eps)               # (K,)
    w_f = w * scale[None, :] * (1.0 / S)
    b_f = ((params["b"].astype(jnp.float32)
            - params["rm"].astype(jnp.float32)) * scale
           + params["beta"].astype(jnp.float32))

    # Weight/bias streamed UNPADDED (full-extent blocks).  Only the output is
    # padded to a lane-dense multiple of 128; padding is written in-kernel.
    w_s = w_f if weight_stream_dtype is None else w_f.astype(weight_stream_dtype)
    b_s = b_f.reshape(1, K)
    KP = max(128, pl.cdiv(K, 128) * 128)

    tile_s = _pick_tile_s(S, C, x.dtype.itemsize, block_budget_bytes)
    n_s = pl.cdiv(S, tile_s)
    needs_mask = (S % tile_s) != 0       # last tile extends past S -> mask it

    kernel = functools.partial(_i3d_head_kernel, num_classes=K,
                               spatial_size=S, tile_s=tile_s,
                               needs_mask=needs_mask)

    grid_spec = pltpu.PrefetchScalarGridSpec(
        num_scalar_prefetch=0,
        grid=(N, n_s),                                         # (parallel, reduce)
        in_specs=[
            pl.BlockSpec((1, C, tile_s), lambda n, s: (n, 0, s)),  # x tiles
            pl.BlockSpec((C, K), lambda n, s: (0, 0)),             # folded w
            pl.BlockSpec((1, K), lambda n, s: (0, 0)),             # folded b
        ],
        out_specs=pl.BlockSpec((1, 1, KP), lambda n, s: (n, 0, 0)),
        scratch_shapes=[pltpu.VMEM((C, 128), jnp.float32)],
    )

    cost = pl.CostEstimate(
        flops=N * S * C + 2 * N * C * K,
        transcendentals=N * K,
        bytes_accessed=(x.size * x.dtype.itemsize
                        + w_s.size * w_s.dtype.itemsize
                        + K * 4 + N * KP * 4),
    )

    out = pl.pallas_call(
        kernel,
        out_shape=jax.ShapeDtypeStruct((N, 1, KP), jnp.float32),
        grid_spec=grid_spec,
        compiler_params=pltpu.CompilerParams(
            # N axis shards across TensorCores (v7x megacore); the spatial axis
            # carries the scratch accumulator.
            # TODO(synk): for N == 1 on v7x, split the spatial reduction across
            # the two TensorCores (per-core partial sums + tiny combine pass)
            # so the second core is not idle.
            dimension_semantics=("parallel", "arbitrary"),
            vmem_limit_bytes=vmem_limit),
        cost_estimate=cost,
    )(x, w_s, b_s)

    return out[:, 0, :K]


def _reference(x1, params, eps=1e-3):
    """Pure-JAX reference of the PyTorch forward (eval-mode BN)."""
    pooled = jnp.mean(x1.astype(jnp.float32), axis=(2, 3, 4))        # (N, C)
    logits = pooled @ params["w"] + params["b"]
    y = (logits - params["rm"]) / jnp.sqrt(params["rv"] + eps)
    y = y * params["gamma"] + params["beta"]
    y = jnp.maximum(y, 0.0)
    return jax.nn.softmax(y, axis=1)


if __name__ == "__main__":
    # Unit3D expects 1024 input channels (384+384+128+128).  Use an I3D-like
    # 7x7 spatial map so S=196 exercises the cdiv + masked-last-tile path.
    N, C, T, H, W = 2, 1024, 4, 7, 7
    num_classes = 2

    key = jax.random.PRNGKey(0)
    k_x1, k_x2, k_w, k_b = jax.random.split(key, 4)

    X_1 = jax.random.normal(k_x1, (N, C, T, H, W), dtype=jnp.float32)
    X_2 = jax.random.normal(k_x2, (N, C, T, H, W), dtype=jnp.float32)  # unused

    # Deterministic synthetic parameters (Unit3D: conv weight+bias, BN params).
    params = {
        "w": jax.random.normal(k_w, (C, num_classes), dtype=jnp.float32) * 0.02,
        "b": jax.random.normal(k_b, (num_classes,), dtype=jnp.float32) * 0.1,
        "gamma": jnp.ones((num_classes,), jnp.float32),
        "beta": jnp.zeros((num_classes,), jnp.float32),
        "rm": jnp.zeros((num_classes,), jnp.float32),   # BN running mean
        "rv": jnp.ones((num_classes,), jnp.float32),    # BN running var
    }

    out = rgb_i3d_head_forward(X_1, X_2, params)
    out = jax.block_until_ready(out)

    ref = _reference(X_1, params)
    assert out.shape == (N, num_classes)
    assert jnp.allclose(out, ref, atol=1e-5, rtol=1e-5), (out, ref)
    assert jnp.allclose(jnp.sum(out, axis=1), 1.0, atol=1e-5)

    print("KERNEL_OK")
</pallas_src>

<mosaic_0001>
module attributes {stable_mosaic.version = 11 : i64} {
  func.func @_i3d_head_kernel(%arg0: i32, %arg1: i32, %arg2: memref<1x1024x128xf32, #tpu.memory_space<vmem>>, %arg3: memref<1024x2xf32, #tpu.memory_space<vmem>>, %arg4: memref<1x2xf32, #tpu.memory_space<vmem>>, %arg5: memref<1x1x128xf32, #tpu.memory_space<vmem>>, %arg6: memref<1024x128xf32, #tpu.memory_space<vmem>>) attributes {dimension_semantics = [#tpu.dimension_semantics<parallel>, #tpu.dimension_semantics<arbitrary>], iteration_bounds = array<i64: 2, 2>, scalar_prefetch = 0 : i64, scratch_operands = 1 : i64, tpu.core_type = #tpu.core_type<tc>, window_params = [{transform_indices = @transform_0, window_bounds = array<i64: 1, 1024, 128>}, {pipeline_mode = #tpu.pipeline_mode<synchronous>, transform_indices = @transform_1, window_bounds = array<i64: 1024, 2>}, {pipeline_mode = #tpu.pipeline_mode<synchronous>, transform_indices = @transform_2, window_bounds = array<i64: 1, 2>}, {transform_indices = @transform_3, window_bounds = array<i64: 1, 1, 128>}]} {
    %c0_i32 = arith.constant 0 : i32
    %0 = arith.cmpi eq, %arg1, %c0_i32 : i32
    %1 = arith.extui %0 : i1 to i32
    %c0_i32_0 = arith.constant 0 : i32
    %2 = arith.cmpi ne, %1, %c0_i32_0 : i32
    scf.if %2 {
      %cst_9 = arith.constant 0.000000e+00 : f32
      %20 = vector.broadcast %cst_9 : f32 to vector<1024x128xf32>
      %c0_10 = arith.constant 0 : index
      %c0_11 = arith.constant 0 : index
      %21 = vector.load %arg6[%c0_10, %c0_11] : memref<1024x128xf32, #tpu.memory_space<vmem>>, vector<1024x128xf32>
      tpu.vector_store %arg6[%c0_10, %c0_11], %20 {strides = array<i32>} : memref<1024x128xf32, #tpu.memory_space<vmem>>, vector<1024x128xf32>,
    } else {
    }
    %c0 = arith.constant 0 : index
    %c0_1 = arith.constant 0 : index
    %c0_2 = arith.constant 0 : index
    %3 = vector.load %arg2[%c0, %c0_1, %c0_2] : memref<1x1024x128xf32, #tpu.memory_space<vmem>>, vector<1x1024x128xf32>
    %4 = vector.shape_cast %3 : vector<1x1024x128xf32> to vector<1024x128xf32>
    %c128_i32 = arith.constant 128 : i32
    %5 = arith.muli %arg1, %c128_i32 : i32
    %c0_i32_3 = arith.constant 0 : i32
    %6 = arith.addi %5, %c0_i32_3 : i32
    %7 = tpu.iota {dimensions = array<i32: 1>} : vector<1024x128xi32>
    %8 = vector.broadcast %6 : i32 to vector<1024x128xi32>
    %9 = arith.addi %8, %7 : vector<1024x128xi32>
    %c196_i32 = arith.constant 196 : i32
    %10 = vector.broadcast %c196_i32 : i32 to vector<1024x128xi32>
    %11 = arith.cmpi slt, %9, %10 : vector<1024x128xi32>
    %cst = arith.constant 0.000000e+00 : f32
    %12 = vector.broadcast %cst : f32 to vector<1024x128xf32>
    %13 = arith.select %11, %4, %12 : vector<1024x128xi1>, vector<1024x128xf32>
    %c0_4 = arith.constant 0 : index
    %c0_5 = arith.constant 0 : index
    %14 = vector.load %arg6[%c0_4, %c0_5] : memref<1024x128xf32, #tpu.memory_space<vmem>>, vector<1024x128xf32>
    %15 = arith.addf %14, %13 : vector<1024x128xf32>
    %c0_6 = arith.constant 0 : index
    %c0_7 = arith.constant 0 : index
    %16 = vector.load %arg6[%c0_6, %c0_7] : memref<1024x128xf32, #tpu.memory_space<vmem>>, vector<1024x128xf32>
    tpu.vector_store %arg6[%c0_6, %c0_7], %15 {strides = array<i32>} : memref<1024x128xf32, #tpu.memory_space<vmem>>, vector<1024x128xf32>,
    %c1_i32 = arith.constant 1 : i32
    %17 = arith.cmpi eq, %arg1, %c1_i32 : i32
    %18 = arith.extui %17 : i1 to i32
    %c0_i32_8 = arith.constant 0 : i32
    %19 = arith.cmpi ne, %18, %c0_i32_8 : i32
    scf.if %19 {
      %c0_9 = arith.constant 0 : index
      %c0_10 = arith.constant 0 : index
      %20 = vector.load %arg6[%c0_9, %c0_10] : memref<1024x128xf32, #tpu.memory_space<vmem>>, vector<1024x128xf32>
      %cst_11 = arith.constant dense<0.000000e+00> : vector<1024xf32>
      %21 = vector.multi_reduction <add>, %20, %cst_11 [1] : vector<1024x128xf32> to vector<1024xf32>
      %22 = vector.shape_cast %21 : vector<1024xf32> to vector<1x1024xf32>
      %c0_12 = arith.constant 0 : index
      %c0_13 = arith.constant 0 : index
      %23 = vector.load %arg3[%c0_12, %c0_13] : memref<1024x2xf32, #tpu.memory_space<vmem>>, vector<1024x2xf32>
      %cst_14 = arith.constant dense<0.000000e+00> : vector<1x2xf32>
      %24 = tpu.matmul %22, %23, %cst_14 {dimension_numbers = #tpu.dot_dimension_numbers<[1], [0], [0], [1], [0, 0, 1, 1], [], []>} : vector<1x1024xf32>, vector<1024x2xf32>, vector<1x2xf32> -> vector<1x2xf32>
      %c0_15 = arith.constant 0 : index
      %c0_16 = arith.constant 0 : index
      %25 = vector.load %arg4[%c0_15, %c0_16] : memref<1x2xf32, #tpu.memory_space<vmem>>, vector<1x2xf32>
      %26 = arith.addf %24, %25 : vector<1x2xf32>
      %cst_17 = arith.constant 0.000000e+00 : f32
      %27 = vector.broadcast %cst_17 : f32 to vector<1x2xf32>
      %28 = arith.maximumf %26, %27 : vector<1x2xf32>
      %cst_18 = arith.constant dense<0xFF800000> : vector<1xf32>
      %29 = vector.multi_reduction <maximumf>, %28, %cst_18 [1] : vector<1x2xf32> to vector<1xf32>
      %30 = vector.shape_cast %29 : vector<1xf32> to vector<1x1xf32>
      %31 = vector.broadcast %30 : vector<1x1xf32> to vector<1x2xf32>
      %32 = arith.subf %28, %31 : vector<1x2xf32>
      %33 = math.exp %32 : vector<1x2xf32>
      %cst_19 = arith.constant dense<0.000000e+00> : vector<1xf32>
      %34 = vector.multi_reduction <add>, %33, %cst_19 [1] : vector<1x2xf32> to vector<1xf32>
      %35 = vector.shape_cast %34 : vector<1xf32> to vector<1x1xf32>
      %36 = tpu.reciprocal %35 {approx = true} : vector<1x1xf32> -> vector<1x1xf32>
      %37 = arith.mulf %35, %36 : vector<1x1xf32>
      %cst_20 = arith.constant 2.000000e+00 : f32
      %38 = vector.broadcast %cst_20 : f32 to vector<1x1xf32>
      %39 = arith.subf %38, %37 : vector<1x1xf32>
      %40 = arith.mulf %36, %39 : vector<1x1xf32>
      %41 = vector.broadcast %40 : vector<1x1xf32> to vector<1x2xf32>
      %42 = arith.mulf %33, %41 : vector<1x2xf32>
      %cst_21 = arith.constant 0.000000e+00 : f32
      %43 = vector.broadcast %cst_21 : f32 to vector<1x1x128xf32>
      %c0_22 = arith.constant 0 : index
      %c0_23 = arith.constant 0 : index
      %c0_24 = arith.constant 0 : index
      %44 = vector.load %arg5[%c0_22, %c0_23, %c0_24] : memref<1x1x128xf32, #tpu.memory_space<vmem>>, vector<1x1x128xf32>
      tpu.vector_store %arg5[%c0_22, %c0_23, %c0_24], %43 {strides = array<i32>} : memref<1x1x128xf32, #tpu.memory_space<vmem>>, vector<1x1x128xf32>,
      %c0_25 = arith.constant 0 : index
      %c0_26 = arith.constant 0 : index
      %c0_27 = arith.constant 0 : index
      %45 = vector.load %arg5[%c0_25, %c0_26, %c0_27] : memref<1x1x128xf32, #tpu.memory_space<vmem>>, vector<1x1x2xf32>
      %46 = vector.shape_cast %45 : vector<1x1x2xf32> to vector<1x2xf32>
      %47 = vector.shape_cast %42 : vector<1x2xf32> to vector<1x1x2xf32>
      tpu.vector_store %arg5[%c0_25, %c0_26, %c0_27], %47 {strides = array<i32>} : memref<1x1x128xf32, #tpu.memory_space<vmem>>, vector<1x1x2xf32>,
    } else {
    }
    return
  }
  func.func @transform_0(%arg0: i32, %arg1: i32) -> (i32, i32, i32) {
    %c0_i32 = arith.constant 0 : i32
    %c0_i32_0 = arith.constant 0 : i32
    return %arg0, %c0_i32, %arg1 : i32, i32, i32
  }
  func.func @transform_1(%arg0: i32, %arg1: i32) -> (i32, i32) {
    %c0_i32 = arith.constant 0 : i32
    %c0_i32_0 = arith.constant 0 : i32
    %c0_i32_1 = arith.constant 0 : i32
    return %c0_i32, %c0_i32_0 : i32, i32
  }
  func.func @transform_2(%arg0: i32, %arg1: i32) -> (i32, i32) {
    %c0_i32 = arith.constant 0 : i32
    %c0_i32_0 = arith.constant 0 : i32
    %c0_i32_1 = arith.constant 0 : i32
    return %c0_i32, %c0_i32_0 : i32, i32
  }
  func.func @transform_3(%arg0: i32, %arg1: i32) -> (i32, i32, i32) {
    %c0_i32 = arith.constant 0 : i32
    %c0_i32_0 = arith.constant 0 : i32
    %c0_i32_1 = arith.constant 0 : i32
    return %arg0, %c0_i32, %c0_i32_0 : i32, i32, i32
  }
}

</mosaic_0001>

<llo_original>
// kernel: tpu_custom_call.1
$region0: #{tpu_custom_call.1}
  #allocation0 [shape = 'u32[]', space=smem, size = 0x4, offset = 0x4, fixed_abs, tag = 'smem constant byte address 0x4 - core index']
  #allocation1 [shape = 'u32[144,128]{1,0:T(1,128)}', space=vmem, size = 0x12000, scoped, tag = 'internal scratch']
  #allocation2 [shape = 'f32[1024,128]{1,0:T(8,128)}', space=vmem, size = 0x80000, scoped, tag = 'scratch operand']
  %s0 = inlined_call_operand.vmem [shape: f32[2,1024,196], index: 0, kind: input, shape index: {}]
  %s1 = inlined_call_operand.vmem [shape: f32[1024,2], index: 1, kind: input, shape index: {}]
  %s2 = inlined_call_operand.vmem [shape: f32[1,2], index: 2, kind: input, shape index: {}]
  %s3 = inlined_call_operand.hbm [shape: f32[2,1,128], index: 3, kind: output, shape index: {}]
  %s4 = sld [smem:[#allocation0]]
  $region91: #{tpu_custom_call.1} parent=0
    _
  %s6 = ssub.s32 1, %s4
  %s7 = scalar_select 0, %s6, %s4
  $region1: #{tpu_custom_call.1} parent=0
    #allocation3 [shape = 'u8[1048576]{0}', space=vmem, size = 0x100000, scoped, tag = 'input window, operand 0']
    #allocation4 [shape = 'u8[1024]{0}', space=vmem, size = 0x400, scoped, tag = 'output window, operand 0']
    #allocation5 [shape = 's32[2]{0}', space=sflag, size = 0x8, scoped, tag = 'scoped memory for tpu_custom_call.1']
    %8 = vsyncpa [#allocation5], 0
    %s9 = scalar_lea.sflag [#allocation5], 1
    %10 = vsyncpa %s9, 0
    loop: start=0, step=1, limit=6
    $region2: #{tpu_custom_call.1} parent=1 // loop_pre_header
      _
    $region3: #{tpu_custom_call.1} parent=1 // loop_header
      %s12 = sphi 0, %s16
      %p13 = scmp.ge.s32.totalorder %s12, 6
      %s19 = sphi 0, %s31
      %s20 = sphi 0, %s27
      %s21 = sphi 0, %s19
      %s22 = sphi 0, %s20
      %s23 = sphi 0, %s21
      %s24 = sphi 0, %s22
      %s36 = sphi 0, %s38
      %s39 = sphi 0, %s36
      %s40 = sphi 0, %s39
      %s56 = sphi 0, %s40
      %s60 = sphi 0, %s60
      %s62 = sphi 0, %s60
      %s63 = sphi 0, %s62
      %s77 = sphi 0, %s63
      %s81 = sphi 0, %s81
      %s83 = sphi 0, %s81
      %s84 = sphi 0, %s83
      %s98 = sphi 0, %s84
      %s104 = sphi 0, %s106
      %s107 = sphi 0, %s104
      %s108 = sphi 0, %s107
      %s124 = sphi 0, %s108
    $region4: #{tpu_custom_call.1} parent=1 // loop_header_branch
      %15 = sbr.rel (%p13) target = $region8
    $region5: #{tpu_custom_call.1} parent=1 // loop_body
      %s17 = ssub.s32 %s12, 1
      %s18 = ssub.s32 %s12, 2
      %s25 = sadd.s32 1, %s20
      %p26 = scmp.ge.s32.totalorder %s25, 2
      %s27 = scalar_select %p26, 0, %s25
      %s28 = sadd.s32 1, %s19
      %s29 = scalar_select %p26, %s28, %s19
      %p30 = scmp.ge.s32.totalorder %s29, 2
      %s31 = scalar_select %p30, 0, %s29
      %s32 = ssub.s32 %s19, %s31
      %s33 = ssub.s32 %s20, %s27
      %s34 = sor.u32 %s32, %s33
      %p35 = scmp.eq.s32.totalorder %s34, 0
      %s37 = sadd.s32 %s36, 1
      %s38 = scalar_select %p35, %s36, %s37
      %p41 = pneg %p35
      %p42 = scmp.eq.s32.totalorder %s12, 3
      %p43 = por %p41, %p42
      %p44 = scmp.ne.s32.totalorder %s36, %s39
      %p45 = scmp.eq.s32.totalorder %s12, 0
      %p46 = por %p44, %p45
      %p47 = scmp.ne.s32.totalorder %s36, %s39
      %p48 = scmp.eq.s32.totalorder %s17, 3
      %p49 = por %p47, %p48
      %p50 = scmp.ne.s32.totalorder %s39, %s40
      %p51 = scmp.eq.s32.totalorder %s17, 0
      %p52 = por %p50, %p51
      %p53 = scmp.ne.s32.totalorder %s39, %s40
      %p54 = scmp.eq.s32.totalorder %s18, 3
      %p55 = por %p53, %p54
      %p57 = scmp.ne.s32.totalorder %s40, %s56
      %p58 = scmp.eq.s32.totalorder %s18, 0
      %p59 = por %p57, %p58
      %s61 = sadd.s32 %s60, 1
      %p64 = scmp.eq.s32.totalorder %s12, 3
      %p65 = scmp.ne.s32.totalorder %s60, %s62
      %p66 = scmp.eq.s32.totalorder %s12, 0
      %p67 = por %p65, %p66
      %p68 = scmp.ne.s32.totalorder %s60, %s62
      %p69 = scmp.eq.s32.totalorder %s17, 3
      %p70 = por %p68, %p69
      %p71 = scmp.ne.s32.totalorder %s62, %s63
      %p72 = scmp.eq.s32.totalorder %s17, 0
      %p73 = por %p71, %p72
      %p74 = scmp.ne.s32.totalorder %s62, %s63
      %p75 = scmp.eq.s32.totalorder %s18, 3
      %p76 = por %p74, %p75
      %p78 = scmp.ne.s32.totalorder %s63, %s77
      %p79 = scmp.eq.s32.totalorder %s18, 0
      %p80 = por %p78, %p79
      %s82 = sadd.s32 %s81, 1
      %p85 = scmp.eq.s32.totalorder %s12, 3
      %p86 = scmp.ne.s32.totalorder %s81, %s83
      %p87 = scmp.eq.s32.totalorder %s12, 0
      %p88 = por %p86, %p87
      %p89 = scmp.ne.s32.totalorder %s81, %s83
      %p90 = scmp.eq.s32.totalorder %s17, 3
      %p91 = por %p89, %p90
      %p92 = scmp.ne.s32.totalorder %s83, %s84
      %p93 = scmp.eq.s32.totalorder %s17, 0
      %p94 = por %p92, %p93
      %p95 = scmp.ne.s32.totalorder %s83, %s84
      %p96 = scmp.eq.s32.totalorder %s18, 3
      %p97 = por %p95, %p96
      %p99 = scmp.ne.s32.totalorder %s84, %s98
      %p100 = scmp.eq.s32.totalorder %s18, 0
      %p101 = por %p99, %p100
      %s102 = ssub.s32 %s19, %s31
      %p103 = scmp.eq.s32.totalorder %s102, 0
      %s105 = sadd.s32 %s104, 1
      %s106 = scalar_select %p103, %s104, %s105
      %p109 = pneg %p103
      %p110 = scmp.eq.s32.totalorder %s12, 3
      %p111 = por %p109, %p110
      %p112 = scmp.ne.s32.totalorder %s104, %s107
      %p113 = scmp.eq.s32.totalorder %s12, 0
      %p114 = por %p112, %p113
      %p115 = scmp.ne.s32.totalorder %s104, %s107
      %p116 = scmp.eq.s32.totalorder %s17, 3
      %p117 = por %p115, %p116
      %p118 = scmp.ne.s32.totalorder %s107, %s108
      %p119 = scmp.eq.s32.totalorder %s17, 0
      %p120 = por %p118, %p119
      %p121 = scmp.ne.s32.totalorder %s107, %s108
      %p122 = scmp.eq.s32.totalorder %s18, 3
      %p123 = por %p121, %p122
      %p125 = scmp.ne.s32.totalorder %s108, %s124
      %p126 = scmp.eq.s32.totalorder %s18, 0
      %p127 = por %p125, %p126
      %p128 = scmp.le.s32.totalorder 1, %s12
      %p129 = scmp.lt.s32.totalorder %s12, 5
      %p130 = pnand %p128, %p129
      %p131 = pneg %p130
      // Predicated region
      $region9: #{tpu_custom_call.1} parent=5 // pred_check
        _
      $region10: #{tpu_custom_call.1} parent=5 // pred_check_branch
        %133 = sbr.rel (%p130) target = $region12
      $region11: #{tpu_custom_call.1} parent=5 // pred_region
        %s134 = ssub.s32 %s12, 1
        // Predicated region
        $region13: #{tpu_custom_call.1} parent=11 // pred_check
          %p135 = pneg %p73
        $region14: #{tpu_custom_call.1} parent=11 // pred_check_branch
          %137 = sbr.rel (%p135) target = $region16
        $region15: #{tpu_custom_call.1} parent=11 // pred_region
          _
        $region16: #{tpu_custom_call.1} parent=11 // pred_fallthru
          _
        // Predicated region
        $region17: #{tpu_custom_call.1} parent=11 // pred_check
          %p138 = pneg %p94
        $region18: #{tpu_custom_call.1} parent=11 // pred_check_branch
          %140 = sbr.rel (%p138) target = $region20
        $region19: #{tpu_custom_call.1} parent=11 // pred_region
          _
        $region20: #{tpu_custom_call.1} parent=11 // pred_fallthru
          _
      $region12: #{tpu_custom_call.1} parent=5 // pred_fallthru
        _
      %p141 = scmp.lt.s32.totalorder %s12, 4
      // Predicated region
      $region21: #{tpu_custom_call.1} parent=5 // pred_check
        %p142 = pneg %p141
      $region22: #{tpu_custom_call.1} parent=5 // pred_check_branch
        %144 = sbr.rel (%p142) target = $region24
      $region23: #{tpu_custom_call.1} parent=5 // pred_region
        // Predicated region
        $region25: #{tpu_custom_call.1} parent=23 // pred_check
          %p145 = pneg %p46
        $region26: #{tpu_custom_call.1} parent=23 // pred_check_branch
          %147 = sbr.rel (%p145) target = $region28
        $region27: #{tpu_custom_call.1} parent=23 // pred_region
          %s148 = sand.u32 %s36, 1
          %s149 = sand.u32 %s36, 1
          %s150 = smul.addr %s149, 1024
          %s151 = scalar_lea.vmem [#allocation3], %s150
          %s152 = smul.addr %s19, 256
          %s153 = sadd.s32 %s20, %s152
          %s154 = smul.addr %s153, 8
          %s155 = scalar_lea.vmem %s0, %s154
          // Predicated region
          $region29: #{tpu_custom_call.1} parent=27 // pred_check
            _
          $region30: #{tpu_custom_call.1} parent=27 // pred_check_branch
            %157 = sbr.rel (0) target = $region32
          $region31: #{tpu_custom_call.1} parent=27 // pred_region
            // Predicated region
            $region33: #{tpu_custom_call.1} parent=31 // pred_check
              _
            $region34: #{tpu_custom_call.1} parent=31 // pred_check_branch
              %159 = sbr.rel (0) target = $region36
            $region35: #{tpu_custom_call.1} parent=31 // pred_region
              // Predicated region
              $region48: #{tpu_custom_call.1} parent=35 // pred_check
                _
              $region49: #{tpu_custom_call.1} parent=35 // pred_check_branch
                %428 = sbr.rel (0) target = $region51
              $region50: #{tpu_custom_call.1} parent=35 // pred_region
                loop: start=0, step=1, limit=1
                $region52: #{tpu_custom_call.1} parent=50 // loop_pre_header
                  _
                $region53: #{tpu_custom_call.1} parent=50 // loop_header
                  %s430 = sphi 0, %s434
                  %p431 = scmp.ge.s32.totalorder %s430, 1
                  %s435 = sphi %s155, %s155
                  %s436 = sphi %s151, %s151
                $region54: #{tpu_custom_call.1} parent=50 // loop_header_branch
                  %433 = sbr.rel (%p431) target = $region58
                $region55: #{tpu_custom_call.1} parent=50 // loop_body
                  %v437 = vld [vmem:[%s435] sm:$0xff]
                  %438 = vst [vmem:[%s436] sm:$0xff] %v437
                  %v439 = vld [vmem:[%s435 + $0x10] sm:$0xff]
                  %440 = vst [vmem:[%s436 + $0x8] sm:$0xff] %v439
                  %v441 = vld [vmem:[%s435 + $0x20] sm:$0xff]
                  %442 = vst [vmem:[%s436 + $0x10] sm:$0xff] %v441
                  %v443 = vld [vmem:[%s435 + $0x30] sm:$0xff]
                  %444 = vst [vmem:[%s436 + $0x18] sm:$0xff] %v443
                  %v445 = vld [vmem:[%s435 + $0x40] sm:$0xff]
                  %446 = vst [vmem:[%s436 + $0x20] sm:$0xff] %v445
                  %v447 = vld [vmem:[%s435 + $0x50] sm:$0xff]
                  %448 = vst [vmem:[%s436 + $0x28] sm:$0xff] %v447
                  %v449 = vld [vmem:[%s435 + $0x60] sm:$0xff]
                  %450 = vst [vmem:[%s436 + $0x30] sm:$0xff] %v449
                  %v451 = vld [vmem:[%s435 + $0x70] sm:$0xff]
                  %452 = vst [vmem:[%s436 + $0x38] sm:$0xff] %v451
                  %v453 = vld [vmem:[%s435 + $0x80] sm:$0xff]
                  %454 = vst [vmem:[%s436 + $0x40] sm:$0xff] %v453
                  %v455 = vld [vmem:[%s435 + $0x90] sm:$0xff]
                  %456 = vst [vmem:[%s436 + $0x48] sm:$0xff] %v455
                  %v457 = vld [vmem:[%s435 + $0xa0] sm:$0xff]
                  %458 = vst [vmem:[%s436 + $0x50] sm:$0xff] %v457
                  %v459 = vld [vmem:[%s435 + $0xb0] sm:$0xff]
                  %460 = vst [vmem:[%s436 + $0x58] sm:$0xff] %v459
                  %v461 = vld [vmem:[%s435 + $0xc0] sm:$0xff]
                  %462 = vst [vmem:[%s436 + $0x60] sm:$0xff] %v461
                  %v463 = vld [vmem:[%s435 + $0xd0] sm:$0xff]
                  %464 = vst [vmem:[%s436 + $0x68] sm:$0xff] %v463
                  %v465 = vld [vmem:[%s435 + $0xe0] sm:$0xff]
                  %466 = vst [vmem:[%s436 + $0x70] sm:$0xff] %v465
                  %v467 = vld [vmem:[%s435 + $0xf0] sm:$0xff]
                  %468 = vst [vmem:[%s436 + $0x78] sm:$0xff] %v467
                  %v469 = vld [vmem:[%s435 + $0x100] sm:$0xff]
                  %470 = vst [vmem:[%s436 + $0x80] sm:$0xff] %v469
                  %v471 = vld [vmem:[%s435 + $0x110] sm:$0xff]
                  %472 = vst [vmem:[%s436 + $0x88] sm:$0xff] %v471
                  %v473 = vld [vmem:[%s435 + $0x120] sm:$0xff]
                  %474 = vst [vmem:[%s436 + $0x90] sm:$0xff] %v473
                  %v475 = vld [vmem:[%s435 + $0x130] sm:$0xff]
                  %476 = vst [vmem:[%s436 + $0x98] sm:$0xff] %v475
                  %v477 = vld [vmem:[%s435 + $0x140] sm:$0xff]
                  %478 = vst [vmem:[%s436 + $0xa0] sm:$0xff] %v477
                  %v479 = vld [vmem:[%s435 + $0x150] sm:$0xff]
                  %480 = vst [vmem:[%s436 + $0xa8] sm:$0xff] %v479
                  %v481 = vld [vmem:[%s435 + $0x160] sm:$0xff]
                  %482 = vst [vmem:[%s436 + $0xb0] sm:$0xff] %v481
                  %v483 = vld [vmem:[%s435 + $0x170] sm:$0xff]
                  %484 = vst [vmem:[%s436 + $0xb8] sm:$0xff] %v483
                  %v485 = vld [vmem:[%s435 + $0x180] sm:$0xff]
                  %486 = vst [vmem:[%s436 + $0xc0] sm:$0xff] %v485
                  %v487 = vld [vmem:[%s435 + $0x190] sm:$0xff]
                  %488 = vst [vmem:[%s436 + $0xc8] sm:$0xff] %v487
                  %v489 = vld [vmem:[%s435 + $0x1a0] sm:$0xff]
                  %490 = vst [vmem:[%s436 + $0xd0] sm:$0xff] %v489
                  %v491 = vld [vmem:[%s435 + $0x1b0] sm:$0xff]
                  %492 = vst [vmem:[%s436 + $0xd8] sm:$0xff] %v491
                  %v493 = vld [vmem:[%s435 + $0x1c0] sm:$0xff]
                  %494 = vst [vmem:[%s436 + $0xe0] sm:$0xff] %v493
                  %v495 = vld [vmem:[%s435 + $0x1d0] sm:$0xff]
                  %496 = vst [vmem:[%s436 + $0xe8] sm:$0xff] %v495
                  %v497 = vld [vmem:[%s435 + $0x1e0] sm:$0xff]
                  %498 = vst [vmem:[%s436 + $0xf0] sm:$0xff] %v497
                  %v499 = vld [vmem:[%s435 + $0x1f0] sm:$0xff]
                  %500 = vst [vmem:[%s436 + $0xf8] sm:$0xff] %v499
                  %v501 = vld [vmem:[%s435 + $0x200] sm:$0xff]
                  %502 = vst [vmem:[%s436 + $0x100] sm:$0xff] %v501
                  %v503 = vld [vmem:[%s435 + $0x210] sm:$0xff]
                  %504 = vst [vmem:[%s436 + $0x108] sm:$0xff] %v503
                  %v505 = vld [vmem:[%s435 + $0x220] sm:$0xff]
                  %506 = vst [vmem:[%s436 + $0x110] sm:$0xff] %v505
                  %v507 = vld [vmem:[%s435 + $0x230] sm:$0xff]
                  %508 = vst [vmem:[%s436 + $0x118] sm:$0xff] %v507
                  %v509 = vld [vmem:[%s435 + $0x240] sm:$0xff]
                  %510 = vst [vmem:[%s436 + $0x120] sm:$0xff] %v509
                  %v511 = vld [vmem:[%s435 + $0x250] sm:$0xff]
                  %512 = vst [vmem:[%s436 + $0x128] sm:$0xff] %v511
                  %v513 = vld [vmem:[%s435 + $0x260] sm:$0xff]
                  %514 = vst [vmem:[%s436 + $0x130] sm:$0xff] %v513
                  %v515 = vld [vmem:[%s435 + $0x270] sm:$0xff]
                  %516 = vst [vmem:[%s436 + $0x138] sm:$0xff] %v515
                  %v517 = vld [vmem:[%s435 + $0x280] sm:$0xff]
                  %518 = vst [vmem:[%s436 + $0x140] sm:$0xff] %v517
                  %v519 = vld [vmem:[%s435 + $0x290] sm:$0xff]
                  %520 = vst [vmem:[%s436 + $0x148] sm:$0xff] %v519
                  %v521 = vld [vmem:[%s435 + $0x2a0] sm:$0xff]
                  %522 = vst [vmem:[%s436 + $0x150] sm:$0xff] %v521
                  %v523 = vld [vmem:[%s435 + $0x2b0] sm:$0xff]
                  %524 = vst [vmem:[%s436 + $0x158] sm:$0xff] %v523
                  %v525 = vld [vmem:[%s435 + $0x2c0] sm:$0xff]
                  %526 = vst [vmem:[%s436 + $0x160] sm:$0xff] %v525
                  %v527 = vld [vmem:[%s435 + $0x2d0] sm:$0xff]
                  %528 = vst [vmem:[%s436 + $0x168] sm:$0xff] %v527
                  %v529 = vld [vmem:[%s435 + $0x2e0] sm:$0xff]
                  %530 = vst [vmem:[%s436 + $0x170] sm:$0xff] %v529
                  %v531 = vld [vmem:[%s435 + $0x2f0] sm:$0xff]
                  %532 = vst [vmem:[%s436 + $0x178] sm:$0xff] %v531
                  %v533 = vld [vmem:[%s435 + $0x300] sm:$0xff]
                  %534 = vst [vmem:[%s436 + $0x180] sm:$0xff] %v533
                  %v535 = vld [vmem:[%s435 + $0x310] sm:$0xff]
                  %536 = vst [vmem:[%s436 + $0x188] sm:$0xff] %v535
                  %v537 = vld [vmem:[%s435 + $0x320] sm:$0xff]
                  %538 = vst [vmem:[%s436 + $0x190] sm:$0xff] %v537
                  %v539 = vld [vmem:[%s435 + $0x330] sm:$0xff]
                  %540 = vst [vmem:[%s436 + $0x198] sm:$0xff] %v539
                  %v541 = vld [vmem:[%s435 + $0x340] sm:$0xff]
                  %542 = vst [vmem:[%s436 + $0x1a0] sm:$0xff] %v541
                  %v543 = vld [vmem:[%s435 + $0x350] sm:$0xff]
                  %544 = vst [vmem:[%s436 + $0x1a8] sm:$0xff] %v543
                  %v545 = vld [vmem:[%s435 + $0x360] sm:$0xff]
                  %546 = vst [vmem:[%s436 + $0x1b0] sm:$0xff] %v545
                  %v547 = vld [vmem:[%s435 + $0x370] sm:$0xff]
                  %548 = vst [vmem:[%s436 + $0x1b8] sm:$0xff] %v547
                  %v549 = vld [vmem:[%s435 + $0x380] sm:$0xff]
                  %550 = vst [vmem:[%s436 + $0x1c0] sm:$0xff] %v549
                  %v551 = vld [vmem:[%s435 + $0x390] sm:$0xff]
                  %552 = vst [vmem:[%s436 + $0x1c8] sm:$0xff] %v551
                  %v553 = vld [vmem:[%s435 + $0x3a0] sm:$0xff]
                  %554 = vst [vmem:[%s436 + $0x1d0] sm:$0xff] %v553
                  %v555 = vld [vmem:[%s435 + $0x3b0] sm:$0xff]
                  %556 = vst [vmem:[%s436 + $0x1d8] sm:$0xff] %v555
                  %v557 = vld [vmem:[%s435 + $0x3c0] sm:$0xff]
                  %558 = vst [vmem:[%s436 + $0x1e0] sm:$0xff] %v557
                  %v559 = vld [vmem:[%s435 + $0x3d0] sm:$0xff]
                  %560 = vst [vmem:[%s436 + $0x1e8] sm:$0xff] %v559
                  %v561 = vld [vmem:[%s435 + $0x3e0] sm:$0xff]
                  %562 = vst [vmem:[%s436 + $0x1f0] sm:$0xff] %v561
                  %v563 = vld [vmem:[%s435 + $0x3f0] sm:$0xff]
                  %564 = vst [vmem:[%s436 + $0x1f8] sm:$0xff] %v563
                  %v565 = vld [vmem:[%s435 + $0x400] sm:$0xff]
                  %566 = vst [vmem:[%s436 + $0x200] sm:$0xff] %v565
                  %v567 = vld [vmem:[%s435 + $0x410] sm:$0xff]
                  %568 = vst [vmem:[%s436 + $0x208] sm:$0xff] %v567
                  %v569 = vld [vmem:[%s435 + $0x420] sm:$0xff]
                  %570 = vst [vmem:[%s436 + $0x210] sm:$0xff] %v569
                  %v571 = vld [vmem:[%s435 + $0x430] sm:$0xff]
                  %572 = vst [vmem:[%s436 + $0x218] sm:$0xff] %v571
                  %v573 = vld [vmem:[%s435 + $0x440] sm:$0xff]
                  %574 = vst [vmem:[%s436 + $0x220] sm:$0xff] %v573
                  %v575 = vld [vmem:[%s435 + $0x450] sm:$0xff]
                  %576 = vst [vmem:[%s436 + $0x228] sm:$0xff] %v575
                  %v577 = vld [vmem:[%s435 + $0x460] sm:$0xff]
                  %578 = vst [vmem:[%s436 + $0x230] sm:$0xff] %v577
                  %v579 = vld [vmem:[%s435 + $0x470] sm:$0xff]
                  %580 = vst [vmem:[%s436 + $0x238] sm:$0xff] %v579
                  %v581 = vld [vmem:[%s435 + $0x480] sm:$0xff]
                  %582 = vst [vmem:[%s436 + $0x240] sm:$0xff] %v581
                  %v583 = vld [vmem:[%s435 + $0x490] sm:$0xff]
                  %584 = vst [vmem:[%s436 + $0x248] sm:$0xff] %v583
                  %v585 = vld [vmem:[%s435 + $0x4a0] sm:$0xff]
                  %586 = vst [vmem:[%s436 + $0x250] sm:$0xff] %v585
                  %v587 = vld [vmem:[%s435 + $0x4b0] sm:$0xff]
                  %588 = vst [vmem:[%s436 + $0x258] sm:$0xff] %v587
                  %v589 = vld [vmem:[%s435 + $0x4c0] sm:$0xff]
                  %590 = vst [vmem:[%s436 + $0x260] sm:$0xff] %v589
                  %v591 = vld [vmem:[%s435 + $0x4d0] sm:$0xff]
                  %592 = vst [vmem:[%s436 + $0x268] sm:$0xff] %v591
                  %v593 = vld [vmem:[%s435 + $0x4e0] sm:$0xff]
                  %594 = vst [vmem:[%s436 + $0x270] sm:$0xff] %v593
                  %v595 = vld [vmem:[%s435 + $0x4f0] sm:$0xff]
                  %596 = vst [vmem:[%s436 + $0x278] sm:$0xff] %v595
                  %v597 = vld [vmem:[%s435 + $0x500] sm:$0xff]
                  %598 = vst [vmem:[%s436 + $0x280] sm:$0xff] %v597
                  %v599 = vld [vmem:[%s435 + $0x510] sm:$0xff]
                  %600 = vst [vmem:[%s436 + $0x288] sm:$0xff] %v599
                  %v601 = vld [vmem:[%s435 + $0x520] sm:$0xff]
                  %602 = vst [vmem:[%s436 + $0x290] sm:$0xff] %v601
                  %v603 = vld [vmem:[%s435 + $0x530] sm:$0xff]
                  %604 = vst [vmem:[%s436 + $0x298] sm:$0xff] %v603
                  %v605 = vld [vmem:[%s435 + $0x540] sm:$0xff]
                  %606 = vst [vmem:[%s436 + $0x2a0] sm:$0xff] %v605
                  %v607 = vld [vmem:[%s435 + $0x550] sm:$0xff]
                  %608 = vst [vmem:[%s436 + $0x2a8] sm:$0xff] %v607
                  %v609 = vld [vmem:[%s435 + $0x560] sm:$0xff]
                  %610 = vst [vmem:[%s436 + $0x2b0] sm:$0xff] %v609
                  %v611 = vld [vmem:[%s435 + $0x570] sm:$0xff]
                  %612 = vst [vmem:[%s436 + $0x2b8] sm:$0xff] %v611
                  %v613 = vld [vmem:[%s435 + $0x580] sm:$0xff]
                  %614 = vst [vmem:[%s436 + $0x2c0] sm:$0xff] %v613
                  %v615 = vld [vmem:[%s435 + $0x590] sm:$0xff]
                  %616 = vst [vmem:[%s436 + $0x2c8] sm:$0xff] %v615
                  %v617 = vld [vmem:[%s435 + $0x5a0] sm:$0xff]
                  %618 = vst [vmem:[%s436 + $0x2d0] sm:$0xff] %v617
                  %v619 = vld [vmem:[%s435 + $0x5b0] sm:$0xff]
                  %620 = vst [vmem:[%s436 + $0x2d8] sm:$0xff] %v619
                  %v621 = vld [vmem:[%s435 + $0x5c0] sm:$0xff]
                  %622 = vst [vmem:[%s436 + $0x2e0] sm:$0xff] %v621
                  %v623 = vld [vmem:[%s435 + $0x5d0] sm:$0xff]
                  %624 = vst [vmem:[%s436 + $0x2e8] sm:$0xff] %v623
                  %v625 = vld [vmem:[%s435 + $0x5e0] sm:$0xff]
                  %626 = vst [vmem:[%s436 + $0x2f0] sm:$0xff] %v625
                  %v627 = vld [vmem:[%s435 + $0x5f0] sm:$0xff]
                  %628 = vst [vmem:[%s436 + $0x2f8] sm:$0xff] %v627
                  %v629 = vld [vmem:[%s435 + $0x600] sm:$0xff]
                  %630 = vst [vmem:[%s436 + $0x300] sm:$0xff] %v629
                  %v631 = vld [vmem:[%s435 + $0x610] sm:$0xff]
                  %632 = vst [vmem:[%s436 + $0x308] sm:$0xff] %v631
                  %v633 = vld [vmem:[%s435 + $0x620] sm:$0xff]
                  %634 = vst [vmem:[%s436 + $0x310] sm:$0xff] %v633
                  %v635 = vld [vmem:[%s435 + $0x630] sm:$0xff]
                  %636 = vst [vmem:[%s436 + $0x318] sm:$0xff] %v635
                  %v637 = vld [vmem:[%s435 + $0x640] sm:$0xff]
                  %638 = vst [vmem:[%s436 + $0x320] sm:$0xff] %v637
                  %v639 = vld [vmem:[%s435 + $0x650] sm:$0xff]
                  %640 = vst [vmem:[%s436 + $0x328] sm:$0xff] %v639
                  %v641 = vld [vmem:[%s435 + $0x660] sm:$0xff]
                  %642 = vst [vmem:[%s436 + $0x330] sm:$0xff] %v641
                  %v643 = vld [vmem:[%s435 + $0x670] sm:$0xff]
                  %644 = vst [vmem:[%s436 + $0x338] sm:$0xff] %v643
                  %v645 = vld [vmem:[%s435 + $0x680] sm:$0xff]
                  %646 = vst [vmem:[%s436 + $0x340] sm:$0xff] %v645
                  %v647 = vld [vmem:[%s435 + $0x690] sm:$0xff]
                  %648 = vst [vmem:[%s436 + $0x348] sm:$0xff] %v647
                  %v649 = vld [vmem:[%s435 + $0x6a0] sm:$0xff]
                  %650 = vst [vmem:[%s436 + $0x350] sm:$0xff] %v649
                  %v651 = vld [vmem:[%s435 + $0x6b0] sm:$0xff]
                  %652 = vst [vmem:[%s436 + $0x358] sm:$0xff] %v651
                  %v653 = vld [vmem:[%s435 + $0x6c0] sm:$0xff]
                  %654 = vst [vmem:[%s436 + $0x360] sm:$0xff] %v653
                  %v655 = vld [vmem:[%s435 + $0x6d0] sm:$0xff]
                  %656 = vst [vmem:[%s436 + $0x368] sm:$0xff] %v655
                  %v657 = vld [vmem:[%s435 + $0x6e0] sm:$0xff]
                  %658 = vst [vmem:[%s436 + $0x370] sm:$0xff] %v657
                  %v659 = vld [vmem:[%s435 + $0x6f0] sm:$0xff]
                  %660 = vst [vmem:[%s436 + $0x378] sm:$0xff] %v659
                  %v661 = vld [vmem:[%s435 + $0x700] sm:$0xff]
                  %662 = vst [vmem:[%s436 + $0x380] sm:$0xff] %v661
                  %v663 = vld [vmem:[%s435 + $0x710] sm:$0xff]
                  %664 = vst [vmem:[%s436 + $0x388] sm:$0xff] %v663
                  %v665 = vld [vmem:[%s435 + $0x720] sm:$0xff]
                  %666 = vst [vmem:[%s436 + $0x390] sm:$0xff] %v665
                  %v667 = vld [vmem:[%s435 + $0x730] sm:$0xff]
                  %668 = vst [vmem:[%s436 + $0x398] sm:$0xff] %v667
                  %v669 = vld [vmem:[%s435 + $0x740] sm:$0xff]
                  %670 = vst [vmem:[%s436 + $0x3a0] sm:$0xff] %v669
                  %v671 = vld [vmem:[%s435 + $0x750] sm:$0xff]
                  %672 = vst [vmem:[%s436 + $0x3a8] sm:$0xff] %v671
                  %v673 = vld [vmem:[%s435 + $0x760] sm:$0xff]
                  %674 = vst [vmem:[%s436 + $0x3b0] sm:$0xff] %v673
                  %v675 = vld [vmem:[%s435 + $0x770] sm:$0xff]
                  %676 = vst [vmem:[%s436 + $0x3b8] sm:$0xff] %v675
                  %v677 = vld [vmem:[%s435 + $0x780] sm:$0xff]
                  %678 = vst [vmem:[%s436 + $0x3c0] sm:$0xff] %v677
                  %v679 = vld [vmem:[%s435 + $0x790] sm:$0xff]
                  %680 = vst [vmem:[%s436 + $0x3c8] sm:$0xff] %v679
                  %v681 = vld [vmem:[%s435 + $0x7a0] sm:$0xff]
                  %682 = vst [vmem:[%s436 + $0x3d0] sm:$0xff] %v681
                  %v683 = vld [vmem:[%s435 + $0x7b0] sm:$0xff]
                  %684 = vst [vmem:[%s436 + $0x3d8] sm:$0xff] %v683
                  %v685 = vld [vmem:[%s435 + $0x7c0] sm:$0xff]
                  %686 = vst [vmem:[%s436 + $0x3e0] sm:$0xff] %v685
                  %v687 = vld [vmem:[%s435 + $0x7d0] sm:$0xff]
                  %688 = vst [vmem:[%s436 + $0x3e8] sm:$0xff] %v687
                  %v689 = vld [vmem:[%s435 + $0x7e0] sm:$0xff]
                  %690 = vst [vmem:[%s436 + $0x3f0] sm:$0xff] %v689
                  %v691 = vld [vmem:[%s435 + $0x7f0] sm:$0xff]
                  %692 = vst [vmem:[%s436 + $0x3f8] sm:$0xff] %v691
                $region56: #{tpu_custom_call.1} parent=50 // loop_footer
                  %s434 = sadd.s32 1, %s430
                $region57: #{tpu_custom_call.1} parent=50 // loop_footer_branch
                  %429 = sbr.rel target = $region53
                $region58: #{tpu_custom_call.1} parent=50 // loop_exit
                  _
              $region51: #{tpu_custom_call.1} parent=35 // pred_fallthru
                _
              // Predicated region
              $region59: #{tpu_custom_call.1} parent=35 // pred_check
                _
              $region60: #{tpu_custom_call.1} parent=35 // pred_check_branch
                %694 = sbr.rel target = $region62
              $region61: #{tpu_custom_call.1} parent=35 // pred_region
                _
              $region62: #{tpu_custom_call.1} parent=35 // pred_fallthru
                _
            $region36: #{tpu_custom_call.1} parent=31 // pred_fallthru
              _
            // Predicated region
            $region37: #{tpu_custom_call.1} parent=31 // pred_check
              _
            $region38: #{tpu_custom_call.1} parent=31 // pred_check_branch
              %161 = sbr.rel target = $region40
            $region39: #{tpu_custom_call.1} parent=31 // pred_region
              loop: start=0, step=1, limit=1
              $region41: #{tpu_custom_call.1} parent=39 // loop_pre_header
                _
              $region42: #{tpu_custom_call.1} parent=39 // loop_header
                %s164 = sphi 0, %s168
                %p165 = scmp.ge.s32.totalorder %s164, 1
                %s169 = sphi %s155, %s155
                %s170 = sphi %s151, %s151
              $region43: #{tpu_custom_call.1} parent=39 // loop_header_branch
                %167 = sbr.rel (%p165) target = $region47
              $region44: #{tpu_custom_call.1} parent=39 // loop_body
                %v171 = vld [vmem:[%s169] sm:$0xff]
                %172 = vst [vmem:[%s170] sm:$0xff] %v171
                %v173 = vld [vmem:[%s169 + $0x10] sm:$0xff]
                %174 = vst [vmem:[%s170 + $0x8] sm:$0xff] %v173
                %v175 = vld [vmem:[%s169 + $0x20] sm:$0xff]
                %176 = vst [vmem:[%s170 + $0x10] sm:$0xff] %v175
                %v177 = vld [vmem:[%s169 + $0x30] sm:$0xff]
                %178 = vst [vmem:[%s170 + $0x18] sm:$0xff] %v177
                %v179 = vld [vmem:[%s169 + $0x40] sm:$0xff]
                %180 = vst [vmem:[%s170 + $0x20] sm:$0xff] %v179
                %v181 = vld [vmem:[%s169 + $0x50] sm:$0xff]
                %182 = vst [vmem:[%s170 + $0x28] sm:$0xff] %v181
                %v183 = vld [vmem:[%s169 + $0x60] sm:$0xff]
                %184 = vst [vmem:[%s170 + $0x30] sm:$0xff] %v183
                %v185 = vld [vmem:[%s169 + $0x70] sm:$0xff]
                %186 = vst [vmem:[%s170 + $0x38] sm:$0xff] %v185
                %v187 = vld [vmem:[%s169 + $0x80] sm:$0xff]
                %188 = vst [vmem:[%s170 + $0x40] sm:$0xff] %v187
                %v189 = vld [vmem:[%s169 + $0x90] sm:$0xff]
                %190 = vst [vmem:[%s170 + $0x48] sm:$0xff] %v189
                %v191 = vld [vmem:[%s169 + $0xa0] sm:$0xff]
                %192 = vst [vmem:[%s170 + $0x50] sm:$0xff] %v191
                %v193 = vld [vmem:[%s169 + $0xb0] sm:$0xff]
                %194 = vst [vmem:[%s170 + $0x58] sm:$0xff] %v193
                %v195 = vld [vmem:[%s169 + $0xc0] sm:$0xff]
                %196 = vst [vmem:[%s170 + $0x60] sm:$0xff] %v195
                %v197 = vld [vmem:[%s169 + $0xd0] sm:$0xff]
                %198 = vst [vmem:[%s170 + $0x68] sm:$0xff] %v197
                %v199 = vld [vmem:[%s169 + $0xe0] sm:$0xff]
                %200 = vst [vmem:[%s170 + $0x70] sm:$0xff] %v199
                %v201 = vld [vmem:[%s169 + $0xf0] sm:$0xff]
                %202 = vst [vmem:[%s170 + $0x78] sm:$0xff] %v201
                %v203 = vld [vmem:[%s169 + $0x100] sm:$0xff]
                %204 = vst [vmem:[%s170 + $0x80] sm:$0xff] %v203
                %v205 = vld [vmem:[%s169 + $0x110] sm:$0xff]
                %206 = vst [vmem:[%s170 + $0x88] sm:$0xff] %v205
                %v207 = vld [vmem:[%s169 + $0x120] sm:$0xff]
                %208 = vst [vmem:[%s170 + $0x90] sm:$0xff] %v207
                %v209 = vld [vmem:[%s169 + $0x130] sm:$0xff]
                %210 = vst [vmem:[%s170 + $0x98] sm:$0xff] %v209
                %v211 = vld [vmem:[%s169 + $0x140] sm:$0xff]
                %212 = vst [vmem:[%s170 + $0xa0] sm:$0xff] %v211
                %v213 = vld [vmem:[%s169 + $0x150] sm:$0xff]
                %214 = vst [vmem:[%s170 + $0xa8] sm:$0xff] %v213
                %v215 = vld [vmem:[%s169 + $0x160] sm:$0xff]
                %216 = vst [vmem:[%s170 + $0xb0] sm:$0xff] %v215
                %v217 = vld [vmem:[%s169 + $0x170] sm:$0xff]
                %218 = vst [vmem:[%s170 + $0xb8] sm:$0xff] %v217
                %v219 = vld [vmem:[%s169 + $0x180] sm:$0xff]
                %220 = vst [vmem:[%s170 + $0xc0] sm:$0xff] %v219
                %v221 = vld [vmem:[%s169 + $0x190] sm:$0xff]
                %222 = vst [vmem:[%s170 + $0xc8] sm:$0xff] %v221
                %v223 = vld [vmem:[%s169 + $0x1a0] sm:$0xff]
                %224 = vst [vmem:[%s170 + $0xd0] sm:$0xff] %v223
                %v225 = vld [vmem:[%s169 + $0x1b0] sm:$0xff]
                %226 = vst [vmem:[%s170 + $0xd8] sm:$0xff] %v225
                %v227 = vld [vmem:[%s169 + $0x1c0] sm:$0xff]
                %228 = vst [vmem:[%s170 + $0xe0] sm:$0xff] %v227
                %v229 = vld [vmem:[%s169 + $0x1d0] sm:$0xff]
                %230 = vst [vmem:[%s170 + $0xe8] sm:$0xff] %v229
                %v231 = vld [vmem:[%s169 + $0x1e0] sm:$0xff]
                %232 = vst [vmem:[%s170 + $0xf0] sm:$0xff] %v231
                %v233 = vld [vmem:[%s169 + $0x1f0] sm:$0xff]
                %234 = vst [vmem:[%s170 + $0xf8] sm:$0xff] %v233
                %v235 = vld [vmem:[%s169 + $0x200] sm:$0xff]
                %236 = vst [vmem:[%s170 + $0x100] sm:$0xff] %v235
                %v237 = vld [vmem:[%s169 + $0x210] sm:$0xff]
                %238 = vst [vmem:[%s170 + $0x108] sm:$0xff] %v237
                %v239 = vld [vmem:[%s169 + $0x220] sm:$0xff]
                %240 = vst [vmem:[%s170 + $0x110] sm:$0xff] %v239
                %v241 = vld [vmem:[%s169 + $0x230] sm:$0xff]
                %242 = vst [vmem:[%s170 + $0x118] sm:$0xff] %v241
                %v243 = vld [vmem:[%s169 + $0x240] sm:$0xff]
                %244 = vst [vmem:[%s170 + $0x120] sm:$0xff] %v243
                %v245 = vld [vmem:[%s169 + $0x250] sm:$0xff]
                %246 = vst [vmem:[%s170 + $0x128] sm:$0xff] %v245
                %v247 = vld [vmem:[%s169 + $0x260] sm:$0xff]
                %248 = vst [vmem:[%s170 + $0x130] sm:$0xff] %v247
                %v249 = vld [vmem:[%s169 + $0x270] sm:$0xff]
                %250 = vst [vmem:[%s170 + $0x138] sm:$0xff] %v249
                %v251 = vld [vmem:[%s169 + $0x280] sm:$0xff]
                %252 = vst [vmem:[%s170 + $0x140] sm:$0xff] %v251
                %v253 = vld [vmem:[%s169 + $0x290] sm:$0xff]
                %254 = vst [vmem:[%s170 + $0x148] sm:$0xff] %v253
                %v255 = vld [vmem:[%s169 + $0x2a0] sm:$0xff]
                %256 = vst [vmem:[%s170 + $0x150] sm:$0xff] %v255
                %v257 = vld [vmem:[%s169 + $0x2b0] sm:$0xff]
                %258 = vst [vmem:[%s170 + $0x158] sm:$0xff] %v257
                %v259 = vld [vmem:[%s169 + $0x2c0] sm:$0xff]
                %260 = vst [vmem:[%s170 + $0x160] sm:$0xff] %v259
                %v261 = vld [vmem:[%s169 + $0x2d0] sm:$0xff]
                %262 = vst [vmem:[%s170 + $0x168] sm:$0xff] %v261
                %v263 = vld [vmem:[%s169 + $0x2e0] sm:$0xff]
                %264 = vst [vmem:[%s170 + $0x170] sm:$0xff] %v263
                %v265 = vld [vmem:[%s169 + $0x2f0] sm:$0xff]
                %266 = vst [vmem:[%s170 + $0x178] sm:$0xff] %v265
                %v267 = vld [vmem:[%s169 + $0x300] sm:$0xff]
                %268 = vst [vmem:[%s170 + $0x180] sm:$0xff] %v267
                %v269 = vld [vmem:[%s169 + $0x310] sm:$0xff]
                %270 = vst [vmem:[%s170 + $0x188] sm:$0xff] %v269
                %v271 = vld [vmem:[%s169 + $0x320] sm:$0xff]
                %272 = vst [vmem:[%s170 + $0x190] sm:$0xff] %v271
                %v273 = vld [vmem:[%s169 + $0x330] sm:$0xff]
                %274 = vst [vmem:[%s170 + $0x198] sm:$0xff] %v273
                %v275 = vld [vmem:[%s169 + $0x340] sm:$0xff]
                %276 = vst [vmem:[%s170 + $0x1a0] sm:$0xff] %v275
                %v277 = vld [vmem:[%s169 + $0x350] sm:$0xff]
                %278 = vst [vmem:[%s170 + $0x1a8] sm:$0xff] %v277
                %v279 = vld [vmem:[%s169 + $0x360] sm:$0xff]
                %280 = vst [vmem:[%s170 + $0x1b0] sm:$0xff] %v279
                %v281 = vld [vmem:[%s169 + $0x370] sm:$0xff]
                %282 = vst [vmem:[%s170 + $0x1b8] sm:$0xff] %v281
                %v283 = vld [vmem:[%s169 + $0x380] sm:$0xff]
                %284 = vst [vmem:[%s170 + $0x1c0] sm:$0xff] %v283
                %v285 = vld [vmem:[%s169 + $0x390] sm:$0xff]
                %286 = vst [vmem:[%s170 + $0x1c8] sm:$0xff] %v285
                %v287 = vld [vmem:[%s169 + $0x3a0] sm:$0xff]
                %288 = vst [vmem:[%s170 + $0x1d0] sm:$0xff] %v287
                %v289 = vld [vmem:[%s169 + $0x3b0] sm:$0xff]
                %290 = vst [vmem:[%s170 + $0x1d8] sm:$0xff] %v289
                %v291 = vld [vmem:[%s169 + $0x3c0] sm:$0xff]
                %292 = vst [vmem:[%s170 + $0x1e0] sm:$0xff] %v291
                %v293 = vld [vmem:[%s169 + $0x3d0] sm:$0xff]
                %294 = vst [vmem:[%s170 + $0x1e8] sm:$0xff] %v293
                %v295 = vld [vmem:[%s169 + $0x3e0] sm:$0xff]
                %296 = vst [vmem:[%s170 + $0x1f0] sm:$0xff] %v295
                %v297 = vld [vmem:[%s169 + $0x3f0] sm:$0xff]
                %298 = vst [vmem:[%s170 + $0x1f8] sm:$0xff] %v297
                %v299 = vld [vmem:[%s169 + $0x400] sm:$0xff]
                %300 = vst [vmem:[%s170 + $0x200] sm:$0xff] %v299
                %v301 = vld [vmem:[%s169 + $0x410] sm:$0xff]
                %302 = vst [vmem:[%s170 + $0x208] sm:$0xff] %v301
                %v303 = vld [vmem:[%s169 + $0x420] sm:$0xff]
                %304 = vst [vmem:[%s170 + $0x210] sm:$0xff] %v303
                %v305 = vld [vmem:[%s169 + $0x430] sm:$0xff]
                %306 = vst [vmem:[%s170 + $0x218] sm:$0xff] %v305
                %v307 = vld [vmem:[%s169 + $0x440] sm:$0xff]
                %308 = vst [vmem:[%s170 + $0x220] sm:$0xff] %v307
                %v309 = vld [vmem:[%s169 + $0x450] sm:$0xff]
                %310 = vst [vmem:[%s170 + $0x228] sm:$0xff] %v309
                %v311 = vld [vmem:[%s169 + $0x460] sm:$0xff]
                %312 = vst [vmem:[%s170 + $0x230] sm:$0xff] %v311
                %v313 = vld [vmem:[%s169 + $0x470] sm:$0xff]
                %314 = vst [vmem:[%s170 + $0x238] sm:$0xff] %v313
                %v315 = vld [vmem:[%s169 + $0x480] sm:$0xff]
                %316 = vst [vmem:[%s170 + $0x240] sm:$0xff] %v315
                %v317 = vld [vmem:[%s169 + $0x490] sm:$0xff]
                %318 = vst [vmem:[%s170 + $0x248] sm:$0xff] %v317
                %v319 = vld [vmem:[%s169 + $0x4a0] sm:$0xff]
                %320 = vst [vmem:[%s170 + $0x250] sm:$0xff] %v319
                %v321 = vld [vmem:[%s169 + $0x4b0] sm:$0xff]
                %322 = vst [vmem:[%s170 + $0x258] sm:$0xff] %v321
                %v323 = vld [vmem:[%s169 + $0x4c0] sm:$0xff]
                %324 = vst [vmem:[%s170 + $0x260] sm:$0xff] %v323
                %v325 = vld [vmem:[%s169 + $0x4d0] sm:$0xff]
                %326 = vst [vmem:[%s170 + $0x268] sm:$0xff] %v325
                %v327 = vld [vmem:[%s169 + $0x4e0] sm:$0xff]
                %328 = vst [vmem:[%s170 + $0x270] sm:$0xff] %v327
                %v329 = vld [vmem:[%s169 + $0x4f0] sm:$0xff]
                %330 = vst [vmem:[%s170 + $0x278] sm:$0xff] %v329
                %v331 = vld [vmem:[%s169 + $0x500] sm:$0xff]
                %332 = vst [vmem:[%s170 + $0x280] sm:$0xff] %v331
                %v333 = vld [vmem:[%s169 + $0x510] sm:$0xff]
                %334 = vst [vmem:[%s170 + $0x288] sm:$0xff] %v333
                %v335 = vld [vmem:[%s169 + $0x520] sm:$0xff]
                %336 = vst [vmem:[%s170 + $0x290] sm:$0xff] %v335
                %v337 = vld [vmem:[%s169 + $0x530] sm:$0xff]
                %338 = vst [vmem:[%s170 + $0x298] sm:$0xff] %v337
                %v339 = vld [vmem:[%s169 + $0x540] sm:$0xff]
                %340 = vst [vmem:[%s170 + $0x2a0] sm:$0xff] %v339
                %v341 = vld [vmem:[%s169 + $0x550] sm:$0xff]
                %342 = vst [vmem:[%s170 + $0x2a8] sm:$0xff] %v341
                %v343 = vld [vmem:[%s169 + $0x560] sm:$0xff]
                %344 = vst [vmem:[%s170 + $0x2b0] sm:$0xff] %v343
                %v345 = vld [vmem:[%s169 + $0x570] sm:$0xff]
                %346 = vst [vmem:[%s170 + $0x2b8] sm:$0xff] %v345
                %v347 = vld [vmem:[%s169 + $0x580] sm:$0xff]
                %348 = vst [vmem:[%s170 + $0x2c0] sm:$0xff] %v347
                %v349 = vld [vmem:[%s169 + $0x590] sm:$0xff]
                %350 = vst [vmem:[%s170 + $0x2c8] sm:$0xff] %v349
                %v351 = vld [vmem:[%s169 + $0x5a0] sm:$0xff]
                %352 = vst [vmem:[%s170 + $0x2d0] sm:$0xff] %v351
                %v353 = vld [vmem:[%s169 + $0x5b0] sm:$0xff]
                %354 = vst [vmem:[%s170 + $0x2d8] sm:$0xff] %v353
                %v355 = vld [vmem:[%s169 + $0x5c0] sm:$0xff]
                %356 = vst [vmem:[%s170 + $0x2e0] sm:$0xff] %v355
                %v357 = vld [vmem:[%s169 + $0x5d0] sm:$0xff]
                %358 = vst [vmem:[%s170 + $0x2e8] sm:$0xff] %v357
                %v359 = vld [vmem:[%s169 + $0x5e0] sm:$0xff]
                %360 = vst [vmem:[%s170 + $0x2f0] sm:$0xff] %v359
                %v361 = vld [vmem:[%s169 + $0x5f0] sm:$0xff]
                %362 = vst [vmem:[%s170 + $0x2f8] sm:$0xff] %v361
                %v363 = vld [vmem:[%s169 + $0x600] sm:$0xff]
                %364 = vst [vmem:[%s170 + $0x300] sm:$0xff] %v363
                %v365 = vld [vmem:[%s169 + $0x610] sm:$0xff]
                %366 = vst [vmem:[%s170 + $0x308] sm:$0xff] %v365
                %v367 = vld [vmem:[%s169 + $0x620] sm:$0xff]
                %368 = vst [vmem:[%s170 + $0x310] sm:$0xff] %v367
                %v369 = vld [vmem:[%s169 + $0x630] sm:$0xff]
                %370 = vst [vmem:[%s170 + $0x318] sm:$0xff] %v369
                %v371 = vld [vmem:[%s169 + $0x640] sm:$0xff]
                %372 = vst [vmem:[%s170 + $0x320] sm:$0xff] %v371
                %v373 = vld [vmem:[%s169 + $0x650] sm:$0xff]
                %374 = vst [vmem:[%s170 + $0x328] sm:$0xff] %v373
                %v375 = vld [vmem:[%s169 + $0x660] sm:$0xff]
                %376 = vst [vmem:[%s170 + $0x330] sm:$0xff] %v375
                %v377 = vld [vmem:[%s169 + $0x670] sm:$0xff]
                %378 = vst [vmem:[%s170 + $0x338] sm:$0xff] %v377
                %v379 = vld [vmem:[%s169 + $0x680] sm:$0xff]
                %380 = vst [vmem:[%s170 + $0x340] sm:$0xff] %v379
                %v381 = vld [vmem:[%s169 + $0x690] sm:$0xff]
                %382 = vst [vmem:[%s170 + $0x348] sm:$0xff] %v381
                %v383 = vld [vmem:[%s169 + $0x6a0] sm:$0xff]
                %384 = vst [vmem:[%s170 + $0x350] sm:$0xff] %v383
                %v385 = vld [vmem:[%s169 + $0x6b0] sm:$0xff]
                %386 = vst [vmem:[%s170 + $0x358] sm:$0xff] %v385
                %v387 = vld [vmem:[%s169 + $0x6c0] sm:$0xff]
                %388 = vst [vmem:[%s170 + $0x360] sm:$0xff] %v387
                %v389 = vld [vmem:[%s169 + $0x6d0] sm:$0xff]
                %390 = vst [vmem:[%s170 + $0x368] sm:$0xff] %v389
                %v391 = vld [vmem:[%s169 + $0x6e0] sm:$0xff]
                %392 = vst [vmem:[%s170 + $0x370] sm:$0xff] %v391
                %v393 = vld [vmem:[%s169 + $0x6f0] sm:$0xff]
                %394 = vst [vmem:[%s170 + $0x378] sm:$0xff] %v393
                %v395 = vld [vmem:[%s169 + $0x700] sm:$0xff]
                %396 = vst [vmem:[%s170 + $0x380] sm:$0xff] %v395
                %v397 = vld [vmem:[%s169 + $0x710] sm:$0xff]
                %398 = vst [vmem:[%s170 + $0x388] sm:$0xff] %v397
                %v399 = vld [vmem:[%s169 + $0x720] sm:$0xff]
                %400 = vst [vmem:[%s170 + $0x390] sm:$0xff] %v399
                %v401 = vld [vmem:[%s169 + $0x730] sm:$0xff]
                %402 = vst [vmem:[%s170 + $0x398] sm:$0xff] %v401
                %v403 = vld [vmem:[%s169 + $0x740] sm:$0xff]
                %404 = vst [vmem:[%s170 + $0x3a0] sm:$0xff] %v403
                %v405 = vld [vmem:[%s169 + $0x750] sm:$0xff]
                %406 = vst [vmem:[%s170 + $0x3a8] sm:$0xff] %v405
                %v407 = vld [vmem:[%s169 + $0x760] sm:$0xff]
                %408 = vst [vmem:[%s170 + $0x3b0] sm:$0xff] %v407
                %v409 = vld [vmem:[%s169 + $0x770] sm:$0xff]
                %410 = vst [vmem:[%s170 + $0x3b8] sm:$0xff] %v409
                %v411 = vld [vmem:[%s169 + $0x780] sm:$0xff]
                %412 = vst [vmem:[%s170 + $0x3c0] sm:$0xff] %v411
                %v413 = vld [vmem:[%s169 + $0x790] sm:$0xff]
                %414 = vst [vmem:[%s170 + $0x3c8] sm:$0xff] %v413
                %v415 = vld [vmem:[%s169 + $0x7a0] sm:$0xff]
                %416 = vst [vmem:[%s170 + $0x3d0] sm:$0xff] %v415
                %v417 = vld [vmem:[%s169 + $0x7b0] sm:$0xff]
                %418 = vst [vmem:[%s170 + $0x3d8] sm:$0xff] %v417
                %v419 = vld [vmem:[%s169 + $0x7c0] sm:$0xff]
                %420 = vst [vmem:[%s170 + $0x3e0] sm:$0xff] %v419
                %v421 = vld [vmem:[%s169 + $0x7d0] sm:$0xff]
                %422 = vst [vmem:[%s170 + $0x3e8] sm:$0xff] %v421
                %v423 = vld [vmem:[%s169 + $0x7e0] sm:$0xff]
                %424 = vst [vmem:[%s170 + $0x3f0] sm:$0xff] %v423
                %v425 = vld [vmem:[%s169 + $0x7f0] sm:$0xff]
                %426 = vst [vmem:[%s170 + $0x3f8] sm:$0xff] %v425
              $region45: #{tpu_custom_call.1} parent=39 // loop_footer
                %s168 = sadd.s32 1, %s164
              $region46: #{tpu_custom_call.1} parent=39 // loop_footer_branch
                %163 = sbr.rel target = $region42
              $region47: #{tpu_custom_call.1} parent=39 // loop_exit
                _
            $region40: #{tpu_custom_call.1} parent=31 // pred_fallthru
              _
          $region32: #{tpu_custom_call.1} parent=27 // pred_fallthru
            _
          %695 = vnop
        $region28: #{tpu_custom_call.1} parent=23 // pred_fallthru
          _
      $region24: #{tpu_custom_call.1} parent=5 // pred_fallthru
        _
      %p696 = scmp.le.s32.totalorder 1, %s12
      %p697 = scmp.lt.s32.totalorder %s12, 5
      %p698 = pnand %p696, %p697
      %p699 = pneg %p698
      // Predicated region
      $region63: #{tpu_custom_call.1} parent=5 // pred_check
        _
      $region64: #{tpu_custom_call.1} parent=5 // pred_check_branch
        %701 = sbr.rel (%p698) target = $region66
      $region65: #{tpu_custom_call.1} parent=5 // pred_region
        %s702 = ssub.s32 %s12, 1
        %s703 = sand.u32 %s39, 1
        %s704 = sand.u32 %s39, 1
        %s705 = smul.addr %s704, 1024
        %s706 = scalar_lea.vmem [#allocation3], %s705
        // Predicated region
        $region67: #{tpu_custom_call.1} parent=65 // pred_check
          %p707 = pneg %p52
        $region68: #{tpu_custom_call.1} parent=65 // pred_check_branch
          %709 = sbr.rel (%p707) target = $region70
        $region69: #{tpu_custom_call.1} parent=65 // pred_region
          _
        $region70: #{tpu_custom_call.1} parent=65 // pred_fallthru
          _
        %s710 = sand.u32 %s39, 1
        %s711 = sand.u32 %s39, 1
        %s712 = smul.addr %s711, 1024
        %s713 = scalar_lea.vmem [#allocation3], %s712
        %p714 = pneg %p52
        %p715 = pneg %p49
        %p716 = pneg %p73
        %p717 = pneg %p70
        %p718 = pneg %p94
        %p719 = pneg %p91
        %p720 = pneg %p120
        %p721 = pneg %p117
        %s722 = sand.u32 %s107, 1
        %s723 = scalar_lea.sflag [#allocation5], %s722
        %s724 = sand.u32 %s107, 1
        %s725 = scalar_lea.vmem [#allocation4], %s724
        %p726 = scmp.eq.s32.totalorder %s22, 0
        // Predicated region
        $region71: #{tpu_custom_call.1} parent=65 // pred_check
          %p727 = pneg %p726
        $region72: #{tpu_custom_call.1} parent=65 // pred_check_branch
          %729 = sbr.rel (%p727) target = $region74
        $region73: #{tpu_custom_call.1} parent=65 // pred_region
          %730 = vst [vmem:[#allocation2] sm:$0xff] 0.0
          %731 = vst [vmem:[#allocation2 + $0x8] sm:$0xff] 0.0
          %732 = vst [vmem:[#allocation2 + $0x10] sm:$0xff] 0.0
          %733 = vst [vmem:[#allocation2 + $0x18] sm:$0xff] 0.0
          %734 = vst [vmem:[#allocation2 + $0x20] sm:$0xff] 0.0
          %735 = vst [vmem:[#allocation2 + $0x28] sm:$0xff] 0.0
          %736 = vst [vmem:[#allocation2 + $0x30] sm:$0xff] 0.0
          %737 = vst [vmem:[#allocation2 + $0x38] sm:$0xff] 0.0
          %738 = vst [vmem:[#allocation2 + $0x40] sm:$0xff] 0.0
          %739 = vst [vmem:[#allocation2 + $0x48] sm:$0xff] 0.0
          %740 = vst [vmem:[#allocation2 + $0x50] sm:$0xff] 0.0
          %741 = vst [vmem:[#allocation2 + $0x58] sm:$0xff] 0.0
          %742 = vst [vmem:[#allocation2 + $0x60] sm:$0xff] 0.0
          %743 = vst [vmem:[#allocation2 + $0x68] sm:$0xff] 0.0
          %744 = vst [vmem:[#allocation2 + $0x70] sm:$0xff] 0.0
          %745 = vst [vmem:[#allocation2 + $0x78] sm:$0xff] 0.0
          %746 = vst [vmem:[#allocation2 + $0x80] sm:$0xff] 0.0
          %747 = vst [vmem:[#allocation2 + $0x88] sm:$0xff] 0.0
          %748 = vst [vmem:[#allocation2 + $0x90] sm:$0xff] 0.0
          %749 = vst [vmem:[#allocation2 + $0x98] sm:$0xff] 0.0
          %750 = vst [vmem:[#allocation2 + $0xa0] sm:$0xff] 0.0
          %751 = vst [vmem:[#allocation2 + $0xa8] sm:$0xff] 0.0
          %752 = vst [vmem:[#allocation2 + $0xb0] sm:$0xff] 0.0
          %753 = vst [vmem:[#allocation2 + $0xb8] sm:$0xff] 0.0
          %754 = vst [vmem:[#allocation2 + $0xc0] sm:$0xff] 0.0
          %755 = vst [vmem:[#allocation2 + $0xc8] sm:$0xff] 0.0
          %756 = vst [vmem:[#allocation2 + $0xd0] sm:$0xff] 0.0
          %757 = vst [vmem:[#allocation2 + $0xd8] sm:$0xff] 0.0
          %758 = vst [vmem:[#allocation2 + $0xe0] sm:$0xff] 0.0
          %759 = vst [vmem:[#allocation2 + $0xe8] sm:$0xff] 0.0
          %760 = vst [vmem:[#allocation2 + $0xf0] sm:$0xff] 0.0
          %761 = vst [vmem:[#allocation2 + $0xf8] sm:$0xff] 0.0
          %762 = vst [vmem:[#allocation2 + $0x100] sm:$0xff] 0.0
          %763 = vst [vmem:[#allocation2 + $0x108] sm:$0xff] 0.0
          %764 = vst [vmem:[#allocation2 + $0x110] sm:$0xff] 0.0
          %765 = vst [vmem:[#allocation2 + $0x118] sm:$0xff] 0.0
          %766 = vst [vmem:[#allocation2 + $0x120] sm:$0xff] 0.0
          %767 = vst [vmem:[#allocation2 + $0x128] sm:$0xff] 0.0
          %768 = vst [vmem:[#allocation2 + $0x130] sm:$0xff] 0.0
          %769 = vst [vmem:[#allocation2 + $0x138] sm:$0xff] 0.0
          %770 = vst [vmem:[#allocation2 + $0x140] sm:$0xff] 0.0
          %771 = vst [vmem:[#allocation2 + $0x148] sm:$0xff] 0.0
          %772 = vst [vmem:[#allocation2 + $0x150] sm:$0xff] 0.0
          %773 = vst [vmem:[#allocation2 + $0x158] sm:$0xff] 0.0
          %774 = vst [vmem:[#allocation2 + $0x160] sm:$0xff] 0.0
          %775 = vst [vmem:[#allocation2 + $0x168] sm:$0xff] 0.0
          %776 = vst [vmem:[#allocation2 + $0x170] sm:$0xff] 0.0
          %777 = vst [vmem:[#allocation2 + $0x178] sm:$0xff] 0.0
          %778 = vst [vmem:[#allocation2 + $0x180] sm:$0xff] 0.0
          %779 = vst [vmem:[#allocation2 + $0x188] sm:$0xff] 0.0
          %780 = vst [vmem:[#allocation2 + $0x190] sm:$0xff] 0.0
          %781 = vst [vmem:[#allocation2 + $0x198] sm:$0xff] 0.0
          %782 = vst [vmem:[#allocation2 + $0x1a0] sm:$0xff] 0.0
          %783 = vst [vmem:[#allocation2 + $0x1a8] sm:$0xff] 0.0
          %784 = vst [vmem:[#allocation2 + $0x1b0] sm:$0xff] 0.0
          %785 = vst [vmem:[#allocation2 + $0x1b8] sm:$0xff] 0.0
          %786 = vst [vmem:[#allocation2 + $0x1c0] sm:$0xff] 0.0
          %787 = vst [vmem:[#allocation2 + $0x1c8] sm:$0xff] 0.0
          %788 = vst [vmem:[#allocation2 + $0x1d0] sm:$0xff] 0.0
          %789 = vst [vmem:[#allocation2 + $0x1d8] sm:$0xff] 0.0
          %790 = vst [vmem:[#allocation2 + $0x1e0] sm:$0xff] 0.0
          %791 = vst [vmem:[#allocation2 + $0x1e8] sm:$0xff] 0.0
          %792 = vst [vmem:[#allocation2 + $0x1f0] sm:$0xff] 0.0
          %793 = vst [vmem:[#allocation2 + $0x1f8] sm:$0xff] 0.0
          %794 = vst [vmem:[#allocation2 + $0x200] sm:$0xff] 0.0
          %795 = vst [vmem:[#allocation2 + $0x208] sm:$0xff] 0.0
          %796 = vst [vmem:[#allocation2 + $0x210] sm:$0xff] 0.0
          %797 = vst [vmem:[#allocation2 + $0x218] sm:$0xff] 0.0
          %798 = vst [vmem:[#allocation2 + $0x220] sm:$0xff] 0.0
          %799 = vst [vmem:[#allocation2 + $0x228] sm:$0xff] 0.0
          %800 = vst [vmem:[#allocation2 + $0x230] sm:$0xff] 0.0
          %801 = vst [vmem:[#allocation2 + $0x238] sm:$0xff] 0.0
          %802 = vst [vmem:[#allocation2 + $0x240] sm:$0xff] 0.0
          %803 = vst [vmem:[#allocation2 + $0x248] sm:$0xff] 0.0
          %804 = vst [vmem:[#allocation2 + $0x250] sm:$0xff] 0.0
          %805 = vst [vmem:[#allocation2 + $0x258] sm:$0xff] 0.0
          %806 = vst [vmem:[#allocation2 + $0x260] sm:$0xff] 0.0
          %807 = vst [vmem:[#allocation2 + $0x268] sm:$0xff] 0.0
          %808 = vst [vmem:[#allocation2 + $0x270] sm:$0xff] 0.0
          %809 = vst [vmem:[#allocation2 + $0x278] sm:$0xff] 0.0
          %810 = vst [vmem:[#allocation2 + $0x280] sm:$0xff] 0.0
          %811 = vst [vmem:[#allocation2 + $0x288] sm:$0xff] 0.0
          %812 = vst [vmem:[#allocation2 + $0x290] sm:$0xff] 0.0
          %813 = vst [vmem:[#allocation2 + $0x298] sm:$0xff] 0.0
          %814 = vst [vmem:[#allocation2 + $0x2a0] sm:$0xff] 0.0
          %815 = vst [vmem:[#allocation2 + $0x2a8] sm:$0xff] 0.0
          %816 = vst [vmem:[#allocation2 + $0x2b0] sm:$0xff] 0.0
          %817 = vst [vmem:[#allocation2 + $0x2b8] sm:$0xff] 0.0
          %818 = vst [vmem:[#allocation2 + $0x2c0] sm:$0xff] 0.0
          %819 = vst [vmem:[#allocation2 + $0x2c8] sm:$0xff] 0.0
          %820 = vst [vmem:[#allocation2 + $0x2d0] sm:$0xff] 0.0
          %821 = vst [vmem:[#allocation2 + $0x2d8] sm:$0xff] 0.0
          %822 = vst [vmem:[#allocation2 + $0x2e0] sm:$0xff] 0.0
          %823 = vst [vmem:[#allocation2 + $0x2e8] sm:$0xff] 0.0
          %824 = vst [vmem:[#allocation2 + $0x2f0] sm:$0xff] 0.0
          %825 = vst [vmem:[#allocation2 + $0x2f8] sm:$0xff] 0.0
          %826 = vst [vmem:[#allocation2 + $0x300] sm:$0xff] 0.0
          %827 = vst [vmem:[#allocation2 + $0x308] sm:$0xff] 0.0
          %828 = vst [vmem:[#allocation2 + $0x310] sm:$0xff] 0.0
          %829 = vst [vmem:[#allocation2 + $0x318] sm:$0xff] 0.0
          %830 = vst [vmem:[#allocation2 + $0x320] sm:$0xff] 0.0
          %831 = vst [vmem:[#allocation2 + $0x328] sm:$0xff] 0.0
          %832 = vst [vmem:[#allocation2 + $0x330] sm:$0xff] 0.0
          %833 = vst [vmem:[#allocation2 + $0x338] sm:$0xff] 0.0
          %834 = vst [vmem:[#allocation2 + $0x340] sm:$0xff] 0.0
          %835 = vst [vmem:[#allocation2 + $0x348] sm:$0xff] 0.0
          %836 = vst [vmem:[#allocation2 + $0x350] sm:$0xff] 0.0
          %837 = vst [vmem:[#allocation2 + $0x358] sm:$0xff] 0.0
          %838 = vst [vmem:[#allocation2 + $0x360] sm:$0xff] 0.0
          %839 = vst [vmem:[#allocation2 + $0x368] sm:$0xff] 0.0
          %840 = vst [vmem:[#allocation2 + $0x370] sm:$0xff] 0.0
          %841 = vst [vmem:[#allocation2 + $0x378] sm:$0xff] 0.0
          %842 = vst [vmem:[#allocation2 + $0x380] sm:$0xff] 0.0
          %843 = vst [vmem:[#allocation2 + $0x388] sm:$0xff] 0.0
          %844 = vst [vmem:[#allocation2 + $0x390] sm:$0xff] 0.0
          %845 = vst [vmem:[#allocation2 + $0x398] sm:$0xff] 0.0
          %846 = vst [vmem:[#allocation2 + $0x3a0] sm:$0xff] 0.0
          %847 = vst [vmem:[#allocation2 + $0x3a8] sm:$0xff] 0.0
          %848 = vst [vmem:[#allocation2 + $0x3b0] sm:$0xff] 0.0
          %849 = vst [vmem:[#allocation2 + $0x3b8] sm:$0xff] 0.0
          %850 = vst [vmem:[#allocation2 + $0x3c0] sm:$0xff] 0.0
          %851 = vst [vmem:[#allocation2 + $0x3c8] sm:$0xff] 0.0
          %852 = vst [vmem:[#allocation2 + $0x3d0] sm:$0xff] 0.0
          %853 = vst [vmem:[#allocation2 + $0x3d8] sm:$0xff] 0.0
          %854 = vst [vmem:[#allocation2 + $0x3e0] sm:$0xff] 0.0
          %855 = vst [vmem:[#allocation2 + $0x3e8] sm:$0xff] 0.0
          %856 = vst [vmem:[#allocation2 + $0x3f0] sm:$0xff] 0.0
          %857 = vst [vmem:[#allocation2 + $0x3f8] sm:$0xff] 0.0
        $region74: #{tpu_custom_call.1} parent=65 // pred_fallthru
          _
        %v858 = vld [vmem:[%s706] sm:$0xff]
        %v859 = vld [vmem:[%s706 + $0x8] sm:$0xff]
        %v860 = vld [vmem:[%s706 + $0x10] sm:$0xff]
        %v861 = vld [vmem:[%s706 + $0x18] sm:$0xff]
        %v862 = vld [vmem:[%s706 + $0x20] sm:$0xff]
        %v863 = vld [vmem:[%s706 + $0x28] sm:$0xff]
        %v864 = vld [vmem:[%s706 + $0x30] sm:$0xff]
        %v865 = vld [vmem:[%s706 + $0x38] sm:$0xff]
        %v866 = vld [vmem:[%s706 + $0x40] sm:$0xff]
        %v867 = vld [vmem:[%s706 + $0x48] sm:$0xff]
        %v868 = vld [vmem:[%s706 + $0x50] sm:$0xff]
        %v869 = vld [vmem:[%s706 + $0x58] sm:$0xff]
        %v870 = vld [vmem:[%s706 + $0x60] sm:$0xff]
        %v871 = vld [vmem:[%s706 + $0x68] sm:$0xff]
        %v872 = vld [vmem:[%s706 + $0x70] sm:$0xff]
        %v873 = vld [vmem:[%s706 + $0x78] sm:$0xff]
        %v874 = vld [vmem:[%s706 + $0x80] sm:$0xff]
        %v875 = vld [vmem:[%s706 + $0x88] sm:$0xff]
        %v876 = vld [vmem:[%s706 + $0x90] sm:$0xff]
        %v877 = vld [vmem:[%s706 + $0x98] sm:$0xff]
        %v878 = vld [vmem:[%s706 + $0xa0] sm:$0xff]
        %v879 = vld [vmem:[%s706 + $0xa8] sm:$0xff]
        %v880 = vld [vmem:[%s706 + $0xb0] sm:$0xff]
        %v881 = vld [vmem:[%s706 + $0xb8] sm:$0xff]
        %v882 = vld [vmem:[%s706 + $0xc0] sm:$0xff]
        %v883 = vld [vmem:[%s706 + $0xc8] sm:$0xff]
        %v884 = vld [vmem:[%s706 + $0xd0] sm:$0xff]
        %v885 = vld [vmem:[%s706 + $0xd8] sm:$0xff]
        %v886 = vld [vmem:[%s706 + $0xe0] sm:$0xff]
        %v887 = vld [vmem:[%s706 + $0xe8] sm:$0xff]
        %v888 = vld [vmem:[%s706 + $0xf0] sm:$0xff]
        %v889 = vld [vmem:[%s706 + $0xf8] sm:$0xff]
        %v890 = vld [vmem:[%s706 + $0x100] sm:$0xff]
        %v891 = vld [vmem:[%s706 + $0x108] sm:$0xff]
        %v892 = vld [vmem:[%s706 + $0x110] sm:$0xff]
        %v893 = vld [vmem:[%s706 + $0x118] sm:$0xff]
        %v894 = vld [vmem:[%s706 + $0x120] sm:$0xff]
        %v895 = vld [vmem:[%s706 + $0x128] sm:$0xff]
        %v896 = vld [vmem:[%s706 + $0x130] sm:$0xff]
        %v897 = vld [vmem:[%s706 + $0x138] sm:$0xff]
        %v898 = vld [vmem:[%s706 + $0x140] sm:$0xff]
        %v899 = vld [vmem:[%s706 + $0x148] sm:$0xff]
        %v900 = vld [vmem:[%s706 + $0x150] sm:$0xff]
        %v901 = vld [vmem:[%s706 + $0x158] sm:$0xff]
        %v902 = vld [vmem:[%s706 + $0x160] sm:$0xff]
        %v903 = vld [vmem:[%s706 + $0x168] sm:$0xff]
        %v904 = vld [vmem:[%s706 + $0x170] sm:$0xff]
        %v905 = vld [vmem:[%s706 + $0x178] sm:$0xff]
        %v906 = vld [vmem:[%s706 + $0x180] sm:$0xff]
        %v907 = vld [vmem:[%s706 + $0x188] sm:$0xff]
        %v908 = vld [vmem:[%s706 + $0x190] sm:$0xff]
        %v909 = vld [vmem:[%s706 + $0x198] sm:$0xff]
        %v910 = vld [vmem:[%s706 + $0x1a0] sm:$0xff]
        %v911 = vld [vmem:[%s706 + $0x1a8] sm:$0xff]
        %v912 = vld [vmem:[%s706 + $0x1b0] sm:$0xff]
        %v913 = vld [vmem:[%s706 + $0x1b8] sm:$0xff]
        %v914 = vld [vmem:[%s706 + $0x1c0] sm:$0xff]
        %v915 = vld [vmem:[%s706 + $0x1c8] sm:$0xff]
        %v916 = vld [vmem:[%s706 + $0x1d0] sm:$0xff]
        %v917 = vld [vmem:[%s706 + $0x1d8] sm:$0xff]
        %v918 = vld [vmem:[%s706 + $0x1e0] sm:$0xff]
        %v919 = vld [vmem:[%s706 + $0x1e8] sm:$0xff]
        %v920 = vld [vmem:[%s706 + $0x1f0] sm:$0xff]
        %v921 = vld [vmem:[%s706 + $0x1f8] sm:$0xff]
        %v922 = vld [vmem:[%s706 + $0x200] sm:$0xff]
        %v923 = vld [vmem:[%s706 + $0x208] sm:$0xff]
        %v924 = vld [vmem:[%s706 + $0x210] sm:$0xff]
        %v925 = vld [vmem:[%s706 + $0x218] sm:$0xff]
        %v926 = vld [vmem:[%s706 + $0x220] sm:$0xff]
        %v927 = vld [vmem:[%s706 + $0x228] sm:$0xff]
        %v928 = vld [vmem:[%s706 + $0x230] sm:$0xff]
        %v929 = vld [vmem:[%s706 + $0x238] sm:$0xff]
        %v930 = vld [vmem:[%s706 + $0x240] sm:$0xff]
        %v931 = vld [vmem:[%s706 + $0x248] sm:$0xff]
        %v932 = vld [vmem:[%s706 + $0x250] sm:$0xff]
        %v933 = vld [vmem:[%s706 + $0x258] sm:$0xff]
        %v934 = vld [vmem:[%s706 + $0x260] sm:$0xff]
        %v935 = vld [vmem:[%s706 + $0x268] sm:$0xff]
        %v936 = vld [vmem:[%s706 + $0x270] sm:$0xff]
        %v937 = vld [vmem:[%s706 + $0x278] sm:$0xff]
        %v938 = vld [vmem:[%s706 + $0x280] sm:$0xff]
        %v939 = vld [vmem:[%s706 + $0x288] sm:$0xff]
        %v940 = vld [vmem:[%s706 + $0x290] sm:$0xff]
        %v941 = vld [vmem:[%s706 + $0x298] sm:$0xff]
        %v942 = vld [vmem:[%s706 + $0x2a0] sm:$0xff]
        %v943 = vld [vmem:[%s706 + $0x2a8] sm:$0xff]
        %v944 = vld [vmem:[%s706 + $0x2b0] sm:$0xff]
        %v945 = vld [vmem:[%s706 + $0x2b8] sm:$0xff]
        %v946 = vld [vmem:[%s706 + $0x2c0] sm:$0xff]
        %v947 = vld [vmem:[%s706 + $0x2c8] sm:$0xff]
        %v948 = vld [vmem:[%s706 + $0x2d0] sm:$0xff]
        %v949 = vld [vmem:[%s706 + $0x2d8] sm:$0xff]
        %v950 = vld [vmem:[%s706 + $0x2e0] sm:$0xff]
        %v951 = vld [vmem:[%s706 + $0x2e8] sm:$0xff]
        %v952 = vld [vmem:[%s706 + $0x2f0] sm:$0xff]
        %v953 = vld [vmem:[%s706 + $0x2f8] sm:$0xff]
        %v954 = vld [vmem:[%s706 + $0x300] sm:$0xff]
        %v955 = vld [vmem:[%s706 + $0x308] sm:$0xff]
        %v956 = vld [vmem:[%s706 + $0x310] sm:$0xff]
        %v957 = vld [vmem:[%s706 + $0x318] sm:$0xff]
        %v958 = vld [vmem:[%s706 + $0x320] sm:$0xff]
        %v959 = vld [vmem:[%s706 + $0x328] sm:$0xff]
        %v960 = vld [vmem:[%s706 + $0x330] sm:$0xff]
        %v961 = vld [vmem:[%s706 + $0x338] sm:$0xff]
        %v962 = vld [vmem:[%s706 + $0x340] sm:$0xff]
        %v963 = vld [vmem:[%s706 + $0x348] sm:$0xff]
        %v964 = vld [vmem:[%s706 + $0x350] sm:$0xff]
        %v965 = vld [vmem:[%s706 + $0x358] sm:$0xff]
        %v966 = vld [vmem:[%s706 + $0x360] sm:$0xff]
        %v967 = vld [vmem:[%s706 + $0x368] sm:$0xff]
        %v968 = vld [vmem:[%s706 + $0x370] sm:$0xff]
        %v969 = vld [vmem:[%s706 + $0x378] sm:$0xff]
        %v970 = vld [vmem:[%s706 + $0x380] sm:$0xff]
        %v971 = vld [vmem:[%s706 + $0x388] sm:$0xff]
        %v972 = vld [vmem:[%s706 + $0x390] sm:$0xff]
        %v973 = vld [vmem:[%s706 + $0x398] sm:$0xff]
        %v974 = vld [vmem:[%s706 + $0x3a0] sm:$0xff]
        %v975 = vld [vmem:[%s706 + $0x3a8] sm:$0xff]
        %v976 = vld [vmem:[%s706 + $0x3b0] sm:$0xff]
        %v977 = vld [vmem:[%s706 + $0x3b8] sm:$0xff]
        %v978 = vld [vmem:[%s706 + $0x3c0] sm:$0xff]
        %v979 = vld [vmem:[%s706 + $0x3c8] sm:$0xff]
        %v980 = vld [vmem:[%s706 + $0x3d0] sm:$0xff]
        %v981 = vld [vmem:[%s706 + $0x3d8] sm:$0xff]
        %v982 = vld [vmem:[%s706 + $0x3e0] sm:$0xff]
        %v983 = vld [vmem:[%s706 + $0x3e8] sm:$0xff]
        %v984 = vld [vmem:[%s706 + $0x3f0] sm:$0xff]
        %v985 = vld [vmem:[%s706 + $0x3f8] sm:$0xff]
        %s986 = smul.u32 %s22, 128
        %v987 = vlaneseq
        %v988 = vand.u32 %v987, 127
        %v989 = vstv %s986
        %v990 = vadd.s32 %v989, %v988
        %vm991 = vcmp.lt.s32.totalorder %v990, 196
        %v992 = vsel %vm991, %v858, 0.0
        %v993 = vsel %vm991, %v859, 0.0
        %v994 = vsel %vm991, %v860, 0.0
        %v995 = vsel %vm991, %v861, 0.0
        %v996 = vsel %vm991, %v862, 0.0
        %v997 = vsel %vm991, %v863, 0.0
        %v998 = vsel %vm991, %v864, 0.0
        %v999 = vsel %vm991, %v865, 0.0
        %v1000 = vsel %vm991, %v866, 0.0
        %v1001 = vsel %vm991, %v867, 0.0
        %v1002 = vsel %vm991, %v868, 0.0
        %v1003 = vsel %vm991, %v869, 0.0
        %v1004 = vsel %vm991, %v870, 0.0
        %v1005 = vsel %vm991, %v871, 0.0
        %v1006 = vsel %vm991, %v872, 0.0
        %v1007 = vsel %vm991, %v873, 0.0
        %v1008 = vsel %vm991, %v874, 0.0
        %v1009 = vsel %vm991, %v875, 0.0
        %v1010 = vsel %vm991, %v876, 0.0
        %v1011 = vsel %vm991, %v877, 0.0
        %v1012 = vsel %vm991, %v878, 0.0
        %v1013 = vsel %vm991, %v879, 0.0
        %v1014 = vsel %vm991, %v880, 0.0
        %v1015 = vsel %vm991, %v881, 0.0
        %v1016 = vsel %vm991, %v882, 0.0
        %v1017 = vsel %vm991, %v883, 0.0
        %v1018 = vsel %vm991, %v884, 0.0
        %v1019 = vsel %vm991, %v885, 0.0
        %v1020 = vsel %vm991, %v886, 0.0
        %v1021 = vsel %vm991, %v887, 0.0
        %v1022 = vsel %vm991, %v888, 0.0
        %v1023 = vsel %vm991, %v889, 0.0
        %v1024 = vsel %vm991, %v890, 0.0
        %v1025 = vsel %vm991, %v891, 0.0
        %v1026 = vsel %vm991, %v892, 0.0
        %v1027 = vsel %vm991, %v893, 0.0
        %v1028 = vsel %vm991, %v894, 0.0
        %v1029 = vsel %vm991, %v895, 0.0
        %v1030 = vsel %vm991, %v896, 0.0
        %v1031 = vsel %vm991, %v897, 0.0
        %v1032 = vsel %vm991, %v898, 0.0
        %v1033 = vsel %vm991, %v899, 0.0
        %v1034 = vsel %vm991, %v900, 0.0
        %v1035 = vsel %vm991, %v901, 0.0
        %v1036 = vsel %vm991, %v902, 0.0
        %v1037 = vsel %vm991, %v903, 0.0
        %v1038 = vsel %vm991, %v904, 0.0
        %v1039 = vsel %vm991, %v905, 0.0
        %v1040 = vsel %vm991, %v906, 0.0
        %v1041 = vsel %vm991, %v907, 0.0
        %v1042 = vsel %vm991, %v908, 0.0
        %v1043 = vsel %vm991, %v909, 0.0
        %v1044 = vsel %vm991, %v910, 0.0
        %v1045 = vsel %vm991, %v911, 0.0
        %v1046 = vsel %vm991, %v912, 0.0
        %v1047 = vsel %vm991, %v913, 0.0
        %v1048 = vsel %vm991, %v914, 0.0
        %v1049 = vsel %vm991, %v915, 0.0
        %v1050 = vsel %vm991, %v916, 0.0
        %v1051 = vsel %vm991, %v917, 0.0
        %v1052 = vsel %vm991, %v918, 0.0
        %v1053 = vsel %vm991, %v919, 0.0
        %v1054 = vsel %vm991, %v920, 0.0
        %v1055 = vsel %vm991, %v921, 0.0
        %v1056 = vsel %vm991, %v922, 0.0
        %v1057 = vsel %vm991, %v923, 0.0
        %v1058 = vsel %vm991, %v924, 0.0
        %v1059 = vsel %vm991, %v925, 0.0
        %v1060 = vsel %vm991, %v926, 0.0
        %v1061 = vsel %vm991, %v927, 0.0
        %v1062 = vsel %vm991, %v928, 0.0
        %v1063 = vsel %vm991, %v929, 0.0
        %v1064 = vsel %vm991, %v930, 0.0
        %v1065 = vsel %vm991, %v931, 0.0
        %v1066 = vsel %vm991, %v932, 0.0
        %v1067 = vsel %vm991, %v933, 0.0
        %v1068 = vsel %vm991, %v934, 0.0
        %v1069 = vsel %vm991, %v935, 0.0
        %v1070 = vsel %vm991, %v936, 0.0
        %v1071 = vsel %vm991, %v937, 0.0
        %v1072 = vsel %vm991, %v938, 0.0
        %v1073 = vsel %vm991, %v939, 0.0
        %v1074 = vsel %vm991, %v940, 0.0
        %v1075 = vsel %vm991, %v941, 0.0
        %v1076 = vsel %vm991, %v942, 0.0
        %v1077 = vsel %vm991, %v943, 0.0
        %v1078 = vsel %vm991, %v944, 0.0
        %v1079 = vsel %vm991, %v945, 0.0
        %v1080 = vsel %vm991, %v946, 0.0
        %v1081 = vsel %vm991, %v947, 0.0
        %v1082 = vsel %vm991, %v948, 0.0
        %v1083 = vsel %vm991, %v949, 0.0
        %v1084 = vsel %vm991, %v950, 0.0
        %v1085 = vsel %vm991, %v951, 0.0
        %v1086 = vsel %vm991, %v952, 0.0
        %v1087 = vsel %vm991, %v953, 0.0
        %v1088 = vsel %vm991, %v954, 0.0
        %v1089 = vsel %vm991, %v955, 0.0
        %v1090 = vsel %vm991, %v956, 0.0
        %v1091 = vsel %vm991, %v957, 0.0
        %v1092 = vsel %vm991, %v958, 0.0
        %v1093 = vsel %vm991, %v959, 0.0
        %v1094 = vsel %vm991, %v960, 0.0
        %v1095 = vsel %vm991, %v961, 0.0
        %v1096 = vsel %vm991, %v962, 0.0
        %v1097 = vsel %vm991, %v963, 0.0
        %v1098 = vsel %vm991, %v964, 0.0
        %v1099 = vsel %vm991, %v965, 0.0
        %v1100 = vsel %vm991, %v966, 0.0
        %v1101 = vsel %vm991, %v967, 0.0
        %v1102 = vsel %vm991, %v968, 0.0
        %v1103 = vsel %vm991, %v969, 0.0
        %v1104 = vsel %vm991, %v970, 0.0
        %v1105 = vsel %vm991, %v971, 0.0
        %v1106 = vsel %vm991, %v972, 0.0
        %v1107 = vsel %vm991, %v973, 0.0
        %v1108 = vsel %vm991, %v974, 0.0
        %v1109 = vsel %vm991, %v975, 0.0
        %v1110 = vsel %vm991, %v976, 0.0
        %v1111 = vsel %vm991, %v977, 0.0
        %v1112 = vsel %vm991, %v978, 0.0
        %v1113 = vsel %vm991, %v979, 0.0
        %v1114 = vsel %vm991, %v980, 0.0
        %v1115 = vsel %vm991, %v981, 0.0
        %v1116 = vsel %vm991, %v982, 0.0
        %v1117 = vsel %vm991, %v983, 0.0
        %v1118 = vsel %vm991, %v984, 0.0
        %v1119 = vsel %vm991, %v985, 0.0
        %v1120 = vld [vmem:[#allocation2] sm:$0xff]
        %v1121 = vld [vmem:[#allocation2 + $0x8] sm:$0xff]
        %v1122 = vld [vmem:[#allocation2 + $0x10] sm:$0xff]
        %v1123 = vld [vmem:[#allocation2 + $0x18] sm:$0xff]
        %v1124 = vld [vmem:[#allocation2 + $0x20] sm:$0xff]
        %v1125 = vld [vmem:[#allocation2 + $0x28] sm:$0xff]
        %v1126 = vld [vmem:[#allocation2 + $0x30] sm:$0xff]
        %v1127 = vld [vmem:[#allocation2 + $0x38] sm:$0xff]
        %v1128 = vld [vmem:[#allocation2 + $0x40] sm:$0xff]
        %v1129 = vld [vmem:[#allocation2 + $0x48] sm:$0xff]
        %v1130 = vld [vmem:[#allocation2 + $0x50] sm:$0xff]
        %v1131 = vld [vmem:[#allocation2 + $0x58] sm:$0xff]
        %v1132 = vld [vmem:[#allocation2 + $0x60] sm:$0xff]
        %v1133 = vld [vmem:[#allocation2 + $0x68] sm:$0xff]
        %v1134 = vld [vmem:[#allocation2 + $0x70] sm:$0xff]
        %v1135 = vld [vmem:[#allocation2 + $0x78] sm:$0xff]
        %v1136 = vld [vmem:[#allocation2 + $0x80] sm:$0xff]
        %v1137 = vld [vmem:[#allocation2 + $0x88] sm:$0xff]
        %v1138 = vld [vmem:[#allocation2 + $0x90] sm:$0xff]
        %v1139 = vld [vmem:[#allocation2 + $0x98] sm:$0xff]
        %v1140 = vld [vmem:[#allocation2 + $0xa0] sm:$0xff]
        %v1141 = vld [vmem:[#allocation2 + $0xa8] sm:$0xff]
        %v1142 = vld [vmem:[#allocation2 + $0xb0] sm:$0xff]
        %v1143 = vld [vmem:[#allocation2 + $0xb8] sm:$0xff]
        %v1144 = vld [vmem:[#allocation2 + $0xc0] sm:$0xff]
        %v1145 = vld [vmem:[#allocation2 + $0xc8] sm:$0xff]
        %v1146 = vld [vmem:[#allocation2 + $0xd0] sm:$0xff]
        %v1147 = vld [vmem:[#allocation2 + $0xd8] sm:$0xff]
        %v1148 = vld [vmem:[#allocation2 + $0xe0] sm:$0xff]
        %v1149 = vld [vmem:[#allocation2 + $0xe8] sm:$0xff]
        %v1150 = vld [vmem:[#allocation2 + $0xf0] sm:$0xff]
        %v1151 = vld [vmem:[#allocation2 + $0xf8] sm:$0xff]
        %v1152 = vld [vmem:[#allocation2 + $0x100] sm:$0xff]
        %v1153 = vld [vmem:[#allocation2 + $0x108] sm:$0xff]
        %v1154 = vld [vmem:[#allocation2 + $0x110] sm:$0xff]
        %v1155 = vld [vmem:[#allocation2 + $0x118] sm:$0xff]
        %v1156 = vld [vmem:[#allocation2 + $0x120] sm:$0xff]
        %v1157 = vld [vmem:[#allocation2 + $0x128] sm:$0xff]
        %v1158 = vld [vmem:[#allocation2 + $0x130] sm:$0xff]
        %v1159 = vld [vmem:[#allocation2 + $0x138] sm:$0xff]
        %v1160 = vld [vmem:[#allocation2 + $0x140] sm:$0xff]
        %v1161 = vld [vmem:[#allocation2 + $0x148] sm:$0xff]
        %v1162 = vld [vmem:[#allocation2 + $0x150] sm:$0xff]
        %v1163 = vld [vmem:[#allocation2 + $0x158] sm:$0xff]
        %v1164 = vld [vmem:[#allocation2 + $0x160] sm:$0xff]
        %v1165 = vld [vmem:[#allocation2 + $0x168] sm:$0xff]
        %v1166 = vld [vmem:[#allocation2 + $0x170] sm:$0xff]
        %v1167 = vld [vmem:[#allocation2 + $0x178] sm:$0xff]
        %v1168 = vld [vmem:[#allocation2 + $0x180] sm:$0xff]
        %v1169 = vld [vmem:[#allocation2 + $0x188] sm:$0xff]
        %v1170 = vld [vmem:[#allocation2 + $0x190] sm:$0xff]
        %v1171 = vld [vmem:[#allocation2 + $0x198] sm:$0xff]
        %v1172 = vld [vmem:[#allocation2 + $0x1a0] sm:$0xff]
        %v1173 = vld [vmem:[#allocation2 + $0x1a8] sm:$0xff]
        %v1174 = vld [vmem:[#allocation2 + $0x1b0] sm:$0xff]
        %v1175 = vld [vmem:[#allocation2 + $0x1b8] sm:$0xff]
        %v1176 = vld [vmem:[#allocation2 + $0x1c0] sm:$0xff]
        %v1177 = vld [vmem:[#allocation2 + $0x1c8] sm:$0xff]
        %v1178 = vld [vmem:[#allocation2 + $0x1d0] sm:$0xff]
        %v1179 = vld [vmem:[#allocation2 + $0x1d8] sm:$0xff]
        %v1180 = vld [vmem:[#allocation2 + $0x1e0] sm:$0xff]
        %v1181 = vld [vmem:[#allocation2 + $0x1e8] sm:$0xff]
        %v1182 = vld [vmem:[#allocation2 + $0x1f0] sm:$0xff]
        %v1183 = vld [vmem:[#allocation2 + $0x1f8] sm:$0xff]
        %v1184 = vld [vmem:[#allocation2 + $0x200] sm:$0xff]
        %v1185 = vld [vmem:[#allocation2 + $0x208] sm:$0xff]
        %v1186 = vld [vmem:[#allocation2 + $0x210] sm:$0xff]
        %v1187 = vld [vmem:[#allocation2 + $0x218] sm:$0xff]
        %v1188 = vld [vmem:[#allocation2 + $0x220] sm:$0xff]
        %v1189 = vld [vmem:[#allocation2 + $0x228] sm:$0xff]
        %v1190 = vld [vmem:[#allocation2 + $0x230] sm:$0xff]
        %v1191 = vld [vmem:[#allocation2 + $0x238] sm:$0xff]
        %v1192 = vld [vmem:[#allocation2 + $0x240] sm:$0xff]
        %v1193 = vld [vmem:[#allocation2 + $0x248] sm:$0xff]
        %v1194 = vld [vmem:[#allocation2 + $0x250] sm:$0xff]
        %v1195 = vld [vmem:[#allocation2 + $0x258] sm:$0xff]
        %v1196 = vld [vmem:[#allocation2 + $0x260] sm:$0xff]
        %v1197 = vld [vmem:[#allocation2 + $0x268] sm:$0xff]
        %v1198 = vld [vmem:[#allocation2 + $0x270] sm:$0xff]
        %v1199 = vld [vmem:[#allocation2 + $0x278] sm:$0xff]
        %v1200 = vld [vmem:[#allocation2 + $0x280] sm:$0xff]
        %v1201 = vld [vmem:[#allocation2 + $0x288] sm:$0xff]
        %v1202 = vld [vmem:[#allocation2 + $0x290] sm:$0xff]
        %v1203 = vld [vmem:[#allocation2 + $0x298] sm:$0xff]
        %v1204 = vld [vmem:[#allocation2 + $0x2a0] sm:$0xff]
        %v1205 = vld [vmem:[#allocation2 + $0x2a8] sm:$0xff]
        %v1206 = vld [vmem:[#allocation2 + $0x2b0] sm:$0xff]
        %v1207 = vld [vmem:[#allocation2 + $0x2b8] sm:$0xff]
        %v1208 = vld [vmem:[#allocation2 + $0x2c0] sm:$0xff]
        %v1209 = vld [vmem:[#allocation2 + $0x2c8] sm:$0xff]
        %v1210 = vld [vmem:[#allocation2 + $0x2d0] sm:$0xff]
        %v1211 = vld [vmem:[#allocation2 + $0x2d8] sm:$0xff]
        %v1212 = vld [vmem:[#allocation2 + $0x2e0] sm:$0xff]
        %v1213 = vld [vmem:[#allocation2 + $0x2e8] sm:$0xff]
        %v1214 = vld [vmem:[#allocation2 + $0x2f0] sm:$0xff]
        %v1215 = vld [vmem:[#allocation2 + $0x2f8] sm:$0xff]
        %v1216 = vld [vmem:[#allocation2 + $0x300] sm:$0xff]
        %v1217 = vld [vmem:[#allocation2 + $0x308] sm:$0xff]
        %v1218 = vld [vmem:[#allocation2 + $0x310] sm:$0xff]
        %v1219 = vld [vmem:[#allocation2 + $0x318] sm:$0xff]
        %v1220 = vld [vmem:[#allocation2 + $0x320] sm:$0xff]
        %v1221 = vld [vmem:[#allocation2 + $0x328] sm:$0xff]
        %v1222 = vld [vmem:[#allocation2 + $0x330] sm:$0xff]
        %v1223 = vld [vmem:[#allocation2 + $0x338] sm:$0xff]
        %v1224 = vld [vmem:[#allocation2 + $0x340] sm:$0xff]
        %v1225 = vld [vmem:[#allocation2 + $0x348] sm:$0xff]
        %v1226 = vld [vmem:[#allocation2 + $0x350] sm:$0xff]
        %v1227 = vld [vmem:[#allocation2 + $0x358] sm:$0xff]
        %v1228 = vld [vmem:[#allocation2 + $0x360] sm:$0xff]
        %v1229 = vld [vmem:[#allocation2 + $0x368] sm:$0xff]
        %v1230 = vld [vmem:[#allocation2 + $0x370] sm:$0xff]
        %v1231 = vld [vmem:[#allocation2 + $0x378] sm:$0xff]
        %v1232 = vld [vmem:[#allocation2 + $0x380] sm:$0xff]
        %v1233 = vld [vmem:[#allocation2 + $0x388] sm:$0xff]
        %v1234 = vld [vmem:[#allocation2 + $0x390] sm:$0xff]
        %v1235 = vld [vmem:[#allocation2 + $0x398] sm:$0xff]
        %v1236 = vld [vmem:[#allocation2 + $0x3a0] sm:$0xff]
        %v1237 = vld [vmem:[#allocation2 + $0x3a8] sm:$0xff]
        %v1238 = vld [vmem:[#allocation2 + $0x3b0] sm:$0xff]
        %v1239 = vld [vmem:[#allocation2 + $0x3b8] sm:$0xff]
        %v1240 = vld [vmem:[#allocation2 + $0x3c0] sm:$0xff]
        %v1241 = vld [vmem:[#allocation2 + $0x3c8] sm:$0xff]
        %v1242 = vld [vmem:[#allocation2 + $0x3d0] sm:$0xff]
        %v1243 = vld [vmem:[#allocation2 + $0x3d8] sm:$0xff]
        %v1244 = vld [vmem:[#allocation2 + $0x3e0] sm:$0xff]
        %v1245 = vld [vmem:[#allocation2 + $0x3e8] sm:$0xff]
        %v1246 = vld [vmem:[#allocation2 + $0x3f0] sm:$0xff]
        %v1247 = vld [vmem:[#allocation2 + $0x3f8] sm:$0xff]
        %v1248 = vadd.f32 %v1120, %v992
        %v1249 = vadd.f32 %v1121, %v993
        %v1250 = vadd.f32 %v1122, %v994
        %v1251 = vadd.f32 %v1123, %v995
        %v1252 = vadd.f32 %v1124, %v996
        %v1253 = vadd.f32 %v1125, %v997
        %v1254 = vadd.f32 %v1126, %v998
        %v1255 = vadd.f32 %v1127, %v999
        %v1256 = vadd.f32 %v1128, %v1000
        %v1257 = vadd.f32 %v1129, %v1001
        %v1258 = vadd.f32 %v1130, %v1002
        %v1259 = vadd.f32 %v1131, %v1003
        %v1260 = vadd.f32 %v1132, %v1004
        %v1261 = vadd.f32 %v1133, %v1005
        %v1262 = vadd.f32 %v1134, %v1006
        %v1263 = vadd.f32 %v1135, %v1007
        %v1264 = vadd.f32 %v1136, %v1008
        %v1265 = vadd.f32 %v1137, %v1009
        %v1266 = vadd.f32 %v1138, %v1010
        %v1267 = vadd.f32 %v1139, %v1011
        %v1268 = vadd.f32 %v1140, %v1012
        %v1269 = vadd.f32 %v1141, %v1013
        %v1270 = vadd.f32 %v1142, %v1014
        %v1271 = vadd.f32 %v1143, %v1015
        %v1272 = vadd.f32 %v1144, %v1016
        %v1273 = vadd.f32 %v1145, %v1017
        %v1274 = vadd.f32 %v1146, %v1018
        %v1275 = vadd.f32 %v1147, %v1019
        %v1276 = vadd.f32 %v1148, %v1020
        %v1277 = vadd.f32 %v1149, %v1021
        %v1278 = vadd.f32 %v1150, %v1022
        %v1279 = vadd.f32 %v1151, %v1023
        %v1280 = vadd.f32 %v1152, %v1024
        %v1281 = vadd.f32 %v1153, %v1025
        %v1282 = vadd.f32 %v1154, %v1026
        %v1283 = vadd.f32 %v1155, %v1027
        %v1284 = vadd.f32 %v1156, %v1028
        %v1285 = vadd.f32 %v1157, %v1029
        %v1286 = vadd.f32 %v1158, %v1030
        %v1287 = vadd.f32 %v1159, %v1031
        %v1288 = vadd.f32 %v1160, %v1032
        %v1289 = vadd.f32 %v1161, %v1033
        %v1290 = vadd.f32 %v1162, %v1034
        %v1291 = vadd.f32 %v1163, %v1035
        %v1292 = vadd.f32 %v1164, %v1036
        %v1293 = vadd.f32 %v1165, %v1037
        %v1294 = vadd.f32 %v1166, %v1038
        %v1295 = vadd.f32 %v1167, %v1039
        %v1296 = vadd.f32 %v1168, %v1040
        %v1297 = vadd.f32 %v1169, %v1041
        %v1298 = vadd.f32 %v1170, %v1042
        %v1299 = vadd.f32 %v1171, %v1043
        %v1300 = vadd.f32 %v1172, %v1044
        %v1301 = vadd.f32 %v1173, %v1045
        %v1302 = vadd.f32 %v1174, %v1046
        %v1303 = vadd.f32 %v1175, %v1047
        %v1304 = vadd.f32 %v1176, %v1048
        %v1305 = vadd.f32 %v1177, %v1049
        %v1306 = vadd.f32 %v1178, %v1050
        %v1307 = vadd.f32 %v1179, %v1051
        %v1308 = vadd.f32 %v1180, %v1052
        %v1309 = vadd.f32 %v1181, %v1053
        %v1310 = vadd.f32 %v1182, %v1054
        %v1311 = vadd.f32 %v1183, %v1055
        %v1312 = vadd.f32 %v1184, %v1056
        %v1313 = vadd.f32 %v1185, %v1057
        %v1314 = vadd.f32 %v1186, %v1058
        %v1315 = vadd.f32 %v1187, %v1059
        %v1316 = vadd.f32 %v1188, %v1060
        %v1317 = vadd.f32 %v1189, %v1061
        %v1318 = vadd.f32 %v1190, %v1062
        %v1319 = vadd.f32 %v1191, %v1063
        %v1320 = vadd.f32 %v1192, %v1064
        %v1321 = vadd.f32 %v1193, %v1065
        %v1322 = vadd.f32 %v1194, %v1066
        %v1323 = vadd.f32 %v1195, %v1067
        %v1324 = vadd.f32 %v1196, %v1068
        %v1325 = vadd.f32 %v1197, %v1069
        %v1326 = vadd.f32 %v1198, %v1070
        %v1327 = vadd.f32 %v1199, %v1071
        %v1328 = vadd.f32 %v1200, %v1072
        %v1329 = vadd.f32 %v1201, %v1073
        %v1330 = vadd.f32 %v1202, %v1074
        %v1331 = vadd.f32 %v1203, %v1075
        %v1332 = vadd.f32 %v1204, %v1076
        %v1333 = vadd.f32 %v1205, %v1077
        %v1334 = vadd.f32 %v1206, %v1078
        %v1335 = vadd.f32 %v1207, %v1079
        %v1336 = vadd.f32 %v1208, %v1080
        %v1337 = vadd.f32 %v1209, %v1081
        %v1338 = vadd.f32 %v1210, %v1082
        %v1339 = vadd.f32 %v1211, %v1083
        %v1340 = vadd.f32 %v1212, %v1084
        %v1341 = vadd.f32 %v1213, %v1085
        %v1342 = vadd.f32 %v1214, %v1086
        %v1343 = vadd.f32 %v1215, %v1087
        %v1344 = vadd.f32 %v1216, %v1088
        %v1345 = vadd.f32 %v1217, %v1089
        %v1346 = vadd.f32 %v1218, %v1090
        %v1347 = vadd.f32 %v1219, %v1091
        %v1348 = vadd.f32 %v1220, %v1092
        %v1349 = vadd.f32 %v1221, %v1093
        %v1350 = vadd.f32 %v1222, %v1094
        %v1351 = vadd.f32 %v1223, %v1095
        %v1352 = vadd.f32 %v1224, %v1096
        %v1353 = vadd.f32 %v1225, %v1097
        %v1354 = vadd.f32 %v1226, %v1098
        %v1355 = vadd.f32 %v1227, %v1099
        %v1356 = vadd.f32 %v1228, %v1100
        %v1357 = vadd.f32 %v1229, %v1101
        %v1358 = vadd.f32 %v1230, %v1102
        %v1359 = vadd.f32 %v1231, %v1103
        %v1360 = vadd.f32 %v1232, %v1104
        %v1361 = vadd.f32 %v1233, %v1105
        %v1362 = vadd.f32 %v1234, %v1106
        %v1363 = vadd.f32 %v1235, %v1107
        %v1364 = vadd.f32 %v1236, %v1108
        %v1365 = vadd.f32 %v1237, %v1109
        %v1366 = vadd.f32 %v1238, %v1110
        %v1367 = vadd.f32 %v1239, %v1111
        %v1368 = vadd.f32 %v1240, %v1112
        %v1369 = vadd.f32 %v1241, %v1113
        %v1370 = vadd.f32 %v1242, %v1114
        %v1371 = vadd.f32 %v1243, %v1115
        %v1372 = vadd.f32 %v1244, %v1116
        %v1373 = vadd.f32 %v1245, %v1117
        %v1374 = vadd.f32 %v1246, %v1118
        %v1375 = vadd.f32 %v1247, %v1119
        %1376 = vst [vmem:[#allocation2] sm:$0xff] %v1248
        %1377 = vst [vmem:[#allocation2 + $0x8] sm:$0xff] %v1249
        %1378 = vst [vmem:[#allocation2 + $0x10] sm:$0xff] %v1250
        %1379 = vst [vmem:[#allocation2 + $0x18] sm:$0xff] %v1251
        %1380 = vst [vmem:[#allocation2 + $0x20] sm:$0xff] %v1252
        %1381 = vst [vmem:[#allocation2 + $0x28] sm:$0xff] %v1253
        %1382 = vst [vmem:[#allocation2 + $0x30] sm:$0xff] %v1254
        %1383 = vst [vmem:[#allocation2 + $0x38] sm:$0xff] %v1255
        %1384 = vst [vmem:[#allocation2 + $0x40] sm:$0xff] %v1256
        %1385 = vst [vmem:[#allocation2 + $0x48] sm:$0xff] %v1257
        %1386 = vst [vmem:[#allocation2 + $0x50] sm:$0xff] %v1258
        %1387 = vst [vmem:[#allocation2 + $0x58] sm:$0xff] %v1259
        %1388 = vst [vmem:[#allocation2 + $0x60] sm:$0xff] %v1260
        %1389 = vst [vmem:[#allocation2 + $0x68] sm:$0xff] %v1261
        %1390 = vst [vmem:[#allocation2 + $0x70] sm:$0xff] %v1262
        %1391 = vst [vmem:[#allocation2 + $0x78] sm:$0xff] %v1263
        %1392 = vst [vmem:[#allocation2 + $0x80] sm:$0xff] %v1264
        %1393 = vst [vmem:[#allocation2 + $0x88] sm:$0xff] %v1265
        %1394 = vst [vmem:[#allocation2 + $0x90] sm:$0xff] %v1266
        %1395 = vst [vmem:[#allocation2 + $0x98] sm:$0xff] %v1267
        %1396 = vst [vmem:[#allocation2 + $0xa0] sm:$0xff] %v1268
        %1397 = vst [vmem:[#allocation2 + $0xa8] sm:$0xff] %v1269
        %1398 = vst [vmem:[#allocation2 + $0xb0] sm:$0xff] %v1270
        %1399 = vst [vmem:[#allocation2 + $0xb8] sm:$0xff] %v1271
        %1400 = vst [vmem:[#allocation2 + $0xc0] sm:$0xff] %v1272
        %1401 = vst [vmem:[#allocation2 + $0xc8] sm:$0xff] %v1273
        %1402 = vst [vmem:[#allocation2 + $0xd0] sm:$0xff] %v1274
        %1403 = vst [vmem:[#allocation2 + $0xd8] sm:$0xff] %v1275
        %1404 = vst [vmem:[#allocation2 + $0xe0] sm:$0xff] %v1276
        %1405 = vst [vmem:[#allocation2 + $0xe8] sm:$0xff] %v1277
        %1406 = vst [vmem:[#allocation2 + $0xf0] sm:$0xff] %v1278
        %1407 = vst [vmem:[#allocation2 + $0xf8] sm:$0xff] %v1279
        %1408 = vst [vmem:[#allocation2 + $0x100] sm:$0xff] %v1280
        %1409 = vst [vmem:[#allocation2 + $0x108] sm:$0xff] %v1281
        %1410 = vst [vmem:[#allocation2 + $0x110] sm:$0xff] %v1282
        %1411 = vst [vmem:[#allocation2 + $0x118] sm:$0xff] %v1283
        %1412 = vst [vmem:[#allocation2 + $0x120] sm:$0xff] %v1284
        %1413 = vst [vmem:[#allocation2 + $0x128] sm:$0xff] %v1285
        %1414 = vst [vmem:[#allocation2 + $0x130] sm:$0xff] %v1286
        %1415 = vst [vmem:[#allocation2 + $0x138] sm:$0xff] %v1287
        %1416 = vst [vmem:[#allocation2 + $0x140] sm:$0xff] %v1288
        %1417 = vst [vmem:[#allocation2 + $0x148] sm:$0xff] %v1289
        %1418 = vst [vmem:[#allocation2 + $0x150] sm:$0xff] %v1290
        %1419 = vst [vmem:[#allocation2 + $0x158] sm:$0xff] %v1291
        %1420 = vst [vmem:[#allocation2 + $0x160] sm:$0xff] %v1292
        %1421 = vst [vmem:[#allocation2 + $0x168] sm:$0xff] %v1293
        %1422 = vst [vmem:[#allocation2 + $0x170] sm:$0xff] %v1294
        %1423 = vst [vmem:[#allocation2 + $0x178] sm:$0xff] %v1295
        %1424 = vst [vmem:[#allocation2 + $0x180] sm:$0xff] %v1296
        %1425 = vst [vmem:[#allocation2 + $0x188] sm:$0xff] %v1297
        %1426 = vst [vmem:[#allocation2 + $0x190] sm:$0xff] %v1298
        %1427 = vst [vmem:[#allocation2 + $0x198] sm:$0xff] %v1299
        %1428 = vst [vmem:[#allocation2 + $0x1a0] sm:$0xff] %v1300
        %1429 = vst [vmem:[#allocation2 + $0x1a8] sm:$0xff] %v1301
        %1430 = vst [vmem:[#allocation2 + $0x1b0] sm:$0xff] %v1302
        %1431 = vst [vmem:[#allocation2 + $0x1b8] sm:$0xff] %v1303
        %1432 = vst [vmem:[#allocation2 + $0x1c0] sm:$0xff] %v1304
        %1433 = vst [vmem:[#allocation2 + $0x1c8] sm:$0xff] %v1305
        %1434 = vst [vmem:[#allocation2 + $0x1d0] sm:$0xff] %v1306
        %1435 = vst [vmem:[#allocation2 + $0x1d8] sm:$0xff] %v1307
        %1436 = vst [vmem:[#allocation2 + $0x1e0] sm:$0xff] %v1308
        %1437 = vst [vmem:[#allocation2 + $0x1e8] sm:$0xff] %v1309
        %1438 = vst [vmem:[#allocation2 + $0x1f0] sm:$0xff] %v1310
        %1439 = vst [vmem:[#allocation2 + $0x1f8] sm:$0xff] %v1311
        %1440 = vst [vmem:[#allocation2 + $0x200] sm:$0xff] %v1312
        %1441 = vst [vmem:[#allocation2 + $0x208] sm:$0xff] %v1313
        %1442 = vst [vmem:[#allocation2 + $0x210] sm:$0xff] %v1314
        %1443 = vst [vmem:[#allocation2 + $0x218] sm:$0xff] %v1315
        %1444 = vst [vmem:[#allocation2 + $0x220] sm:$0xff] %v1316
        %1445 = vst [vmem:[#allocation2 + $0x228] sm:$0xff] %v1317
        %1446 = vst [vmem:[#allocation2 + $0x230] sm:$0xff] %v1318
        %1447 = vst [vmem:[#allocation2 + $0x238] sm:$0xff] %v1319
        %1448 = vst [vmem:[#allocation2 + $0x240] sm:$0xff] %v1320
        %1449 = vst [vmem:[#allocation2 + $0x248] sm:$0xff] %v1321
        %1450 = vst [vmem:[#allocation2 + $0x250] sm:$0xff] %v1322
        %1451 = vst [vmem:[#allocation2 + $0x258] sm:$0xff] %v1323
        %1452 = vst [vmem:[#allocation2 + $0x260] sm:$0xff] %v1324
        %1453 = vst [vmem:[#allocation2 + $0x268] sm:$0xff] %v1325
        %1454 = vst [vmem:[#allocation2 + $0x270] sm:$0xff] %v1326
        %1455 = vst [vmem:[#allocation2 + $0x278] sm:$0xff] %v1327
        %1456 = vst [vmem:[#allocation2 + $0x280] sm:$0xff] %v1328
        %1457 = vst [vmem:[#allocation2 + $0x288] sm:$0xff] %v1329
        %1458 = vst [vmem:[#allocation2 + $0x290] sm:$0xff] %v1330
        %1459 = vst [vmem:[#allocation2 + $0x298] sm:$0xff] %v1331
        %1460 = vst [vmem:[#allocation2 + $0x2a0] sm:$0xff] %v1332
        %1461 = vst [vmem:[#allocation2 + $0x2a8] sm:$0xff] %v1333
        %1462 = vst [vmem:[#allocation2 + $0x2b0] sm:$0xff] %v1334
        %1463 = vst [vmem:[#allocation2 + $0x2b8] sm:$0xff] %v1335
        %1464 = vst [vmem:[#allocation2 + $0x2c0] sm:$0xff] %v1336
        %1465 = vst [vmem:[#allocation2 + $0x2c8] sm:$0xff] %v1337
        %1466 = vst [vmem:[#allocation2 + $0x2d0] sm:$0xff] %v1338
        %1467 = vst [vmem:[#allocation2 + $0x2d8] sm:$0xff] %v1339
        %1468 = vst [vmem:[#allocation2 + $0x2e0] sm:$0xff] %v1340
        %1469 = vst [vmem:[#allocation2 + $0x2e8] sm:$0xff] %v1341
        %1470 = vst [vmem:[#allocation2 + $0x2f0] sm:$0xff] %v1342
        %1471 = vst [vmem:[#allocation2 + $0x2f8] sm:$0xff] %v1343
        %1472 = vst [vmem:[#allocation2 + $0x300] sm:$0xff] %v1344
        %1473 = vst [vmem:[#allocation2 + $0x308] sm:$0xff] %v1345
        %1474 = vst [vmem:[#allocation2 + $0x310] sm:$0xff] %v1346
        %1475 = vst [vmem:[#allocation2 + $0x318] sm:$0xff] %v1347
        %1476 = vst [vmem:[#allocation2 + $0x320] sm:$0xff] %v1348
        %1477 = vst [vmem:[#allocation2 + $0x328] sm:$0xff] %v1349
        %1478 = vst [vmem:[#allocation2 + $0x330] sm:$0xff] %v1350
        %1479 = vst [vmem:[#allocation2 + $0x338] sm:$0xff] %v1351
        %1480 = vst [vmem:[#allocation2 + $0x340] sm:$0xff] %v1352
        %1481 = vst [vmem:[#allocation2 + $0x348] sm:$0xff] %v1353
        %1482 = vst [vmem:[#allocation2 + $0x350] sm:$0xff] %v1354
        %1483 = vst [vmem:[#allocation2 + $0x358] sm:$0xff] %v1355
        %1484 = vst [vmem:[#allocation2 + $0x360] sm:$0xff] %v1356
        %1485 = vst [vmem:[#allocation2 + $0x368] sm:$0xff] %v1357
        %1486 = vst [vmem:[#allocation2 + $0x370] sm:$0xff] %v1358
        %1487 = vst [vmem:[#allocation2 + $0x378] sm:$0xff] %v1359
        %1488 = vst [vmem:[#allocation2 + $0x380] sm:$0xff] %v1360
        %1489 = vst [vmem:[#allocation2 + $0x388] sm:$0xff] %v1361
        %1490 = vst [vmem:[#allocation2 + $0x390] sm:$0xff] %v1362
        %1491 = vst [vmem:[#allocation2 + $0x398] sm:$0xff] %v1363
        %1492 = vst [vmem:[#allocation2 + $0x3a0] sm:$0xff] %v1364
        %1493 = vst [vmem:[#allocation2 + $0x3a8] sm:$0xff] %v1365
        %1494 = vst [vmem:[#allocation2 + $0x3b0] sm:$0xff] %v1366
        %1495 = vst [vmem:[#allocation2 + $0x3b8] sm:$0xff] %v1367
        %1496 = vst [vmem:[#allocation2 + $0x3c0] sm:$0xff] %v1368
        %1497 = vst [vmem:[#allocation2 + $0x3c8] sm:$0xff] %v1369
        %1498 = vst [vmem:[#allocation2 + $0x3d0] sm:$0xff] %v1370
        %1499 = vst [vmem:[#allocation2 + $0x3d8] sm:$0xff] %v1371
        %1500 = vst [vmem:[#allocation2 + $0x3e0] sm:$0xff] %v1372
        %1501 = vst [vmem:[#allocation2 + $0x3e8] sm:$0xff] %v1373
        %1502 = vst [vmem:[#allocation2 + $0x3f0] sm:$0xff] %v1374
        %1503 = vst [vmem:[#allocation2 + $0x3f8] sm:$0xff] %v1375
        %p1504 = scmp.eq.s32.totalorder %s22, 1
        // Predicated region
        $region75: #{tpu_custom_call.1} parent=65 // pred_check
          %p1505 = pneg %p1504
        $region76: #{tpu_custom_call.1} parent=65 // pred_check_branch
          %1507 = sbr.rel (%p1505) target = $region78
        $region77: #{tpu_custom_call.1} parent=65 // pred_region
          %v1508 = vld [vmem:[#allocation2] sm:$0xff]
          %v1509 = vld [vmem:[#allocation2 + $0x8] sm:$0xff]
          %v1510 = vld [vmem:[#allocation2 + $0x10] sm:$0xff]
          %v1511 = vld [vmem:[#allocation2 + $0x18] sm:$0xff]
          %v1512 = vld [vmem:[#allocation2 + $0x20] sm:$0xff]
          %v1513 = vld [vmem:[#allocation2 + $0x28] sm:$0xff]
          %v1514 = vld [vmem:[#allocation2 + $0x30] sm:$0xff]
          %v1515 = vld [vmem:[#allocation2 + $0x38] sm:$0xff]
          %v1516 = vld [vmem:[#allocation2 + $0x40] sm:$0xff]
          %v1517 = vld [vmem:[#allocation2 + $0x48] sm:$0xff]
          %v1518 = vld [vmem:[#allocation2 + $0x50] sm:$0xff]
          %v1519 = vld [vmem:[#allocation2 + $0x58] sm:$0xff]
          %v1520 = vld [vmem:[#allocation2 + $0x60] sm:$0xff]
          %v1521 = vld [vmem:[#allocation2 + $0x68] sm:$0xff]
          %v1522 = vld [vmem:[#allocation2 + $0x70] sm:$0xff]
          %v1523 = vld [vmem:[#allocation2 + $0x78] sm:$0xff]
          %v1524 = vld [vmem:[#allocation2 + $0x80] sm:$0xff]
          %v1525 = vld [vmem:[#allocation2 + $0x88] sm:$0xff]
          %v1526 = vld [vmem:[#allocation2 + $0x90] sm:$0xff]
          %v1527 = vld [vmem:[#allocation2 + $0x98] sm:$0xff]
          %v1528 = vld [vmem:[#allocation2 + $0xa0] sm:$0xff]
          %v1529 = vld [vmem:[#allocation2 + $0xa8] sm:$0xff]
          %v1530 = vld [vmem:[#allocation2 + $0xb0] sm:$0xff]
          %v1531 = vld [vmem:[#allocation2 + $0xb8] sm:$0xff]
          %v1532 = vld [vmem:[#allocation2 + $0xc0] sm:$0xff]
          %v1533 = vld [vmem:[#allocation2 + $0xc8] sm:$0xff]
          %v1534 = vld [vmem:[#allocation2 + $0xd0] sm:$0xff]
          %v1535 = vld [vmem:[#allocation2 + $0xd8] sm:$0xff]
          %v1536 = vld [vmem:[#allocation2 + $0xe0] sm:$0xff]
          %v1537 = vld [vmem:[#allocation2 + $0xe8] sm:$0xff]
          %v1538 = vld [vmem:[#allocation2 + $0xf0] sm:$0xff]
          %v1539 = vld [vmem:[#allocation2 + $0xf8] sm:$0xff]
          %v1540 = vld [vmem:[#allocation2 + $0x100] sm:$0xff]
          %v1541 = vld [vmem:[#allocation2 + $0x108] sm:$0xff]
          %v1542 = vld [vmem:[#allocation2 + $0x110] sm:$0xff]
          %v1543 = vld [vmem:[#allocation2 + $0x118] sm:$0xff]
          %v1544 = vld [vmem:[#allocation2 + $0x120] sm:$0xff]
          %v1545 = vld [vmem:[#allocation2 + $0x128] sm:$0xff]
          %v1546 = vld [vmem:[#allocation2 + $0x130] sm:$0xff]
          %v1547 = vld [vmem:[#allocation2 + $0x138] sm:$0xff]
          %v1548 = vld [vmem:[#allocation2 + $0x140] sm:$0xff]
          %v1549 = vld [vmem:[#allocation2 + $0x148] sm:$0xff]
          %v1550 = vld [vmem:[#allocation2 + $0x150] sm:$0xff]
          %v1551 = vld [vmem:[#allocation2 + $0x158] sm:$0xff]
          %v1552 = vld [vmem:[#allocation2 + $0x160] sm:$0xff]
          %v1553 = vld [vmem:[#allocation2 + $0x168] sm:$0xff]
          %v1554 = vld [vmem:[#allocation2 + $0x170] sm:$0xff]
          %v1555 = vld [vmem:[#allocation2 + $0x178] sm:$0xff]
          %v1556 = vld [vmem:[#allocation2 + $0x180] sm:$0xff]
          %v1557 = vld [vmem:[#allocation2 + $0x188] sm:$0xff]
          %v1558 = vld [vmem:[#allocation2 + $0x190] sm:$0xff]
          %v1559 = vld [vmem:[#allocation2 + $0x198] sm:$0xff]
          %v1560 = vld [vmem:[#allocation2 + $0x1a0] sm:$0xff]
          %v1561 = vld [vmem:[#allocation2 + $0x1a8] sm:$0xff]
          %v1562 = vld [vmem:[#allocation2 + $0x1b0] sm:$0xff]
          %v1563 = vld [vmem:[#allocation2 + $0x1b8] sm:$0xff]
          %v1564 = vld [vmem:[#allocation2 + $0x1c0] sm:$0xff]
          %v1565 = vld [vmem:[#allocation2 + $0x1c8] sm:$0xff]
          %v1566 = vld [vmem:[#allocation2 + $0x1d0] sm:$0xff]
          %v1567 = vld [vmem:[#allocation2 + $0x1d8] sm:$0xff]
          %v1568 = vld [vmem:[#allocation2 + $0x1e0] sm:$0xff]
          %v1569 = vld [vmem:[#allocation2 + $0x1e8] sm:$0xff]
          %v1570 = vld [vmem:[#allocation2 + $0x1f0] sm:$0xff]
          %v1571 = vld [vmem:[#allocation2 + $0x1f8] sm:$0xff]
          %v1572 = vld [vmem:[#allocation2 + $0x200] sm:$0xff]
          %v1573 = vld [vmem:[#allocation2 + $0x208] sm:$0xff]
          %v1574 = vld [vmem:[#allocation2 + $0x210] sm:$0xff]
          %v1575 = vld [vmem:[#allocation2 + $0x218] sm:$0xff]
          %v1576 = vld [vmem:[#allocation2 + $0x220] sm:$0xff]
          %v1577 = vld [vmem:[#allocation2 + $0x228] sm:$0xff]
          %v1578 = vld [vmem:[#allocation2 + $0x230] sm:$0xff]
          %v1579 = vld [vmem:[#allocation2 + $0x238] sm:$0xff]
          %v1580 = vld [vmem:[#allocation2 + $0x240] sm:$0xff]
          %v1581 = vld [vmem:[#allocation2 + $0x248] sm:$0xff]
          %v1582 = vld [vmem:[#allocation2 + $0x250] sm:$0xff]
          %v1583 = vld [vmem:[#allocation2 + $0x258] sm:$0xff]
          %v1584 = vld [vmem:[#allocation2 + $0x260] sm:$0xff]
          %v1585 = vld [vmem:[#allocation2 + $0x268] sm:$0xff]
          %v1586 = vld [vmem:[#allocation2 + $0x270] sm:$0xff]
          %v1587 = vld [vmem:[#allocation2 + $0x278] sm:$0xff]
          %v1588 = vld [vmem:[#allocation2 + $0x280] sm:$0xff]
          %v1589 = vld [vmem:[#allocation2 + $0x288] sm:$0xff]
          %v1590 = vld [vmem:[#allocation2 + $0x290] sm:$0xff]
          %v1591 = vld [vmem:[#allocation2 + $0x298] sm:$0xff]
          %v1592 = vld [vmem:[#allocation2 + $0x2a0] sm:$0xff]
          %v1593 = vld [vmem:[#allocation2 + $0x2a8] sm:$0xff]
          %v1594 = vld [vmem:[#allocation2 + $0x2b0] sm:$0xff]
          %v1595 = vld [vmem:[#allocation2 + $0x2b8] sm:$0xff]
          %v1596 = vld [vmem:[#allocation2 + $0x2c0] sm:$0xff]
          %v1597 = vld [vmem:[#allocation2 + $0x2c8] sm:$0xff]
          %v1598 = vld [vmem:[#allocation2 + $0x2d0] sm:$0xff]
          %v1599 = vld [vmem:[#allocation2 + $0x2d8] sm:$0xff]
          %v1600 = vld [vmem:[#allocation2 + $0x2e0] sm:$0xff]
          %v1601 = vld [vmem:[#allocation2 + $0x2e8] sm:$0xff]
          %v1602 = vld [vmem:[#allocation2 + $0x2f0] sm:$0xff]
          %v1603 = vld [vmem:[#allocation2 + $0x2f8] sm:$0xff]
          %v1604 = vld [vmem:[#allocation2 + $0x300] sm:$0xff]
          %v1605 = vld [vmem:[#allocation2 + $0x308] sm:$0xff]
          %v1606 = vld [vmem:[#allocation2 + $0x310] sm:$0xff]
          %v1607 = vld [vmem:[#allocation2 + $0x318] sm:$0xff]
          %v1608 = vld [vmem:[#allocation2 + $0x320] sm:$0xff]
          %v1609 = vld [vmem:[#allocation2 + $0x328] sm:$0xff]
          %v1610 = vld [vmem:[#allocation2 + $0x330] sm:$0xff]
          %v1611 = vld [vmem:[#allocation2 + $0x338] sm:$0xff]
          %v1612 = vld [vmem:[#allocation2 + $0x340] sm:$0xff]
          %v1613 = vld [vmem:[#allocation2 + $0x348] sm:$0xff]
          %v1614 = vld [vmem:[#allocation2 + $0x350] sm:$0xff]
          %v1615 = vld [vmem:[#allocation2 + $0x358] sm:$0xff]
          %v1616 = vld [vmem:[#allocation2 + $0x360] sm:$0xff]
          %v1617 = vld [vmem:[#allocation2 + $0x368] sm:$0xff]
          %v1618 = vld [vmem:[#allocation2 + $0x370] sm:$0xff]
          %v1619 = vld [vmem:[#allocation2 + $0x378] sm:$0xff]
          %v1620 = vld [vmem:[#allocation2 + $0x380] sm:$0xff]
          %v1621 = vld [vmem:[#allocation2 + $0x388] sm:$0xff]
          %v1622 = vld [vmem:[#allocation2 + $0x390] sm:$0xff]
          %v1623 = vld [vmem:[#allocation2 + $0x398] sm:$0xff]
          %v1624 = vld [vmem:[#allocation2 + $0x3a0] sm:$0xff]
          %v1625 = vld [vmem:[#allocation2 + $0x3a8] sm:$0xff]
          %v1626 = vld [vmem:[#allocation2 + $0x3b0] sm:$0xff]
          %v1627 = vld [vmem:[#allocation2 + $0x3b8] sm:$0xff]
          %v1628 = vld [vmem:[#allocation2 + $0x3c0] sm:$0xff]
          %v1629 = vld [vmem:[#allocation2 + $0x3c8] sm:$0xff]
          %v1630 = vld [vmem:[#allocation2 + $0x3d0] sm:$0xff]
          %v1631 = vld [vmem:[#allocation2 + $0x3d8] sm:$0xff]
          %v1632 = vld [vmem:[#allocation2 + $0x3e0] sm:$0xff]
          %v1633 = vld [vmem:[#allocation2 + $0x3e8] sm:$0xff]
          %v1634 = vld [vmem:[#allocation2 + $0x3f0] sm:$0xff]
          %v1635 = vld [vmem:[#allocation2 + $0x3f8] sm:$0xff]
          %1636 = vadd.xlane.f32.xlu0 %v1508
          %v1637 = vpop.xlane.xlu0 %1636
          %1638 = vadd.xlane.f32.xlu0 %v1509
          %v1639 = vpop.xlane.xlu0 %1638
          %1640 = vadd.xlane.f32.xlu0 %v1510
          %v1641 = vpop.xlane.xlu0 %1640
          %1642 = vadd.xlane.f32.xlu0 %v1511
          %v1643 = vpop.xlane.xlu0 %1642
          %1644 = vadd.xlane.f32.xlu0 %v1512
          %v1645 = vpop.xlane.xlu0 %1644
          %1646 = vadd.xlane.f32.xlu0 %v1513
          %v1647 = vpop.xlane.xlu0 %1646
          %1648 = vadd.xlane.f32.xlu0 %v1514
          %v1649 = vpop.xlane.xlu0 %1648
          %1650 = vadd.xlane.f32.xlu0 %v1515
          %v1651 = vpop.xlane.xlu0 %1650
          %1652 = vadd.xlane.f32.xlu0 %v1516
          %v1653 = vpop.xlane.xlu0 %1652
          %1654 = vadd.xlane.f32.xlu0 %v1517
          %v1655 = vpop.xlane.xlu0 %1654
          %1656 = vadd.xlane.f32.xlu0 %v1518
          %v1657 = vpop.xlane.xlu0 %1656
          %1658 = vadd.xlane.f32.xlu0 %v1519
          %v1659 = vpop.xlane.xlu0 %1658
          %1660 = vadd.xlane.f32.xlu0 %v1520
          %v1661 = vpop.xlane.xlu0 %1660
          %1662 = vadd.xlane.f32.xlu0 %v1521
          %v1663 = vpop.xlane.xlu0 %1662
          %1664 = vadd.xlane.f32.xlu0 %v1522
          %v1665 = vpop.xlane.xlu0 %1664
          %1666 = vadd.xlane.f32.xlu0 %v1523
          %v1667 = vpop.xlane.xlu0 %1666
          %1668 = vadd.xlane.f32.xlu0 %v1524
          %v1669 = vpop.xlane.xlu0 %1668
          %1670 = vadd.xlane.f32.xlu0 %v1525
          %v1671 = vpop.xlane.xlu0 %1670
          %1672 = vadd.xlane.f32.xlu0 %v1526
          %v1673 = vpop.xlane.xlu0 %1672
          %1674 = vadd.xlane.f32.xlu0 %v1527
          %v1675 = vpop.xlane.xlu0 %1674
          %1676 = vadd.xlane.f32.xlu0 %v1528
          %v1677 = vpop.xlane.xlu0 %1676
          %1678 = vadd.xlane.f32.xlu0 %v1529
          %v1679 = vpop.xlane.xlu0 %1678
          %1680 = vadd.xlane.f32.xlu0 %v1530
          %v1681 = vpop.xlane.xlu0 %1680
          %1682 = vadd.xlane.f32.xlu0 %v1531
          %v1683 = vpop.xlane.xlu0 %1682
          %1684 = vadd.xlane.f32.xlu0 %v1532
          %v1685 = vpop.xlane.xlu0 %1684
          %1686 = vadd.xlane.f32.xlu0 %v1533
          %v1687 = vpop.xlane.xlu0 %1686
          %1688 = vadd.xlane.f32.xlu0 %v1534
          %v1689 = vpop.xlane.xlu0 %1688
          %1690 = vadd.xlane.f32.xlu0 %v1535
          %v1691 = vpop.xlane.xlu0 %1690
          %1692 = vadd.xlane.f32.xlu0 %v1536
          %v1693 = vpop.xlane.xlu0 %1692
          %1694 = vadd.xlane.f32.xlu0 %v1537
          %v1695 = vpop.xlane.xlu0 %1694
          %1696 = vadd.xlane.f32.xlu0 %v1538
          %v1697 = vpop.xlane.xlu0 %1696
          %1698 = vadd.xlane.f32.xlu0 %v1539
          %v1699 = vpop.xlane.xlu0 %1698
          %1700 = vadd.xlane.f32.xlu0 %v1540
          %v1701 = vpop.xlane.xlu0 %1700
          %1702 = vadd.xlane.f32.xlu0 %v1541
          %v1703 = vpop.xlane.xlu0 %1702
          %1704 = vadd.xlane.f32.xlu0 %v1542
          %v1705 = vpop.xlane.xlu0 %1704
          %1706 = vadd.xlane.f32.xlu0 %v1543
          %v1707 = vpop.xlane.xlu0 %1706
          %1708 = vadd.xlane.f32.xlu0 %v1544
          %v1709 = vpop.xlane.xlu0 %1708
          %1710 = vadd.xlane.f32.xlu0 %v1545
          %v1711 = vpop.xlane.xlu0 %1710
          %1712 = vadd.xlane.f32.xlu0 %v1546
          %v1713 = vpop.xlane.xlu0 %1712
          %1714 = vadd.xlane.f32.xlu0 %v1547
          %v1715 = vpop.xlane.xlu0 %1714
          %1716 = vadd.xlane.f32.xlu0 %v1548
          %v1717 = vpop.xlane.xlu0 %1716
          %1718 = vadd.xlane.f32.xlu0 %v1549
          %v1719 = vpop.xlane.xlu0 %1718
          %1720 = vadd.xlane.f32.xlu0 %v1550
          %v1721 = vpop.xlane.xlu0 %1720
          %1722 = vadd.xlane.f32.xlu0 %v1551
          %v1723 = vpop.xlane.xlu0 %1722
          %1724 = vadd.xlane.f32.xlu0 %v1552
          %v1725 = vpop.xlane.xlu0 %1724
          %1726 = vadd.xlane.f32.xlu0 %v1553
          %v1727 = vpop.xlane.xlu0 %1726
          %1728 = vadd.xlane.f32.xlu0 %v1554
          %v1729 = vpop.xlane.xlu0 %1728
          %1730 = vadd.xlane.f32.xlu0 %v1555
          %v1731 = vpop.xlane.xlu0 %1730
          %1732 = vadd.xlane.f32.xlu0 %v1556
          %v1733 = vpop.xlane.xlu0 %1732
          %1734 = vadd.xlane.f32.xlu0 %v1557
          %v1735 = vpop.xlane.xlu0 %1734
          %1736 = vadd.xlane.f32.xlu0 %v1558
          %v1737 = vpop.xlane.xlu0 %1736
          %1738 = vadd.xlane.f32.xlu0 %v1559
          %v1739 = vpop.xlane.xlu0 %1738
          %1740 = vadd.xlane.f32.xlu0 %v1560
          %v1741 = vpop.xlane.xlu0 %1740
          %1742 = vadd.xlane.f32.xlu0 %v1561
          %v1743 = vpop.xlane.xlu0 %1742
          %1744 = vadd.xlane.f32.xlu0 %v1562
          %v1745 = vpop.xlane.xlu0 %1744
          %1746 = vadd.xlane.f32.xlu0 %v1563
          %v1747 = vpop.xlane.xlu0 %1746
          %1748 = vadd.xlane.f32.xlu0 %v1564
          %v1749 = vpop.xlane.xlu0 %1748
          %1750 = vadd.xlane.f32.xlu0 %v1565
          %v1751 = vpop.xlane.xlu0 %1750
          %1752 = vadd.xlane.f32.xlu0 %v1566
          %v1753 = vpop.xlane.xlu0 %1752
          %1754 = vadd.xlane.f32.xlu0 %v1567
          %v1755 = vpop.xlane.xlu0 %1754
          %1756 = vadd.xlane.f32.xlu0 %v1568
          %v1757 = vpop.xlane.xlu0 %1756
          %1758 = vadd.xlane.f32.xlu0 %v1569
          %v1759 = vpop.xlane.xlu0 %1758
          %1760 = vadd.xlane.f32.xlu0 %v1570
          %v1761 = vpop.xlane.xlu0 %1760
          %1762 = vadd.xlane.f32.xlu0 %v1571
          %v1763 = vpop.xlane.xlu0 %1762
          %1764 = vadd.xlane.f32.xlu0 %v1572
          %v1765 = vpop.xlane.xlu0 %1764
          %1766 = vadd.xlane.f32.xlu0 %v1573
          %v1767 = vpop.xlane.xlu0 %1766
          %1768 = vadd.xlane.f32.xlu0 %v1574
          %v1769 = vpop.xlane.xlu0 %1768
          %1770 = vadd.xlane.f32.xlu0 %v1575
          %v1771 = vpop.xlane.xlu0 %1770
          %1772 = vadd.xlane.f32.xlu0 %v1576
          %v1773 = vpop.xlane.xlu0 %1772
          %1774 = vadd.xlane.f32.xlu0 %v1577
          %v1775 = vpop.xlane.xlu0 %1774
          %1776 = vadd.xlane.f32.xlu0 %v1578
          %v1777 = vpop.xlane.xlu0 %1776
          %1778 = vadd.xlane.f32.xlu0 %v1579
          %v1779 = vpop.xlane.xlu0 %1778
          %1780 = vadd.xlane.f32.xlu0 %v1580
          %v1781 = vpop.xlane.xlu0 %1780
          %1782 = vadd.xlane.f32.xlu0 %v1581
          %v1783 = vpop.xlane.xlu0 %1782
          %1784 = vadd.xlane.f32.xlu0 %v1582
          %v1785 = vpop.xlane.xlu0 %1784
          %1786 = vadd.xlane.f32.xlu0 %v1583
          %v1787 = vpop.xlane.xlu0 %1786
          %1788 = vadd.xlane.f32.xlu0 %v1584
          %v1789 = vpop.xlane.xlu0 %1788
          %1790 = vadd.xlane.f32.xlu0 %v1585
          %v1791 = vpop.xlane.xlu0 %1790
          %1792 = vadd.xlane.f32.xlu0 %v1586
          %v1793 = vpop.xlane.xlu0 %1792
          %1794 = vadd.xlane.f32.xlu0 %v1587
          %v1795 = vpop.xlane.xlu0 %1794
          %1796 = vadd.xlane.f32.xlu0 %v1588
          %v1797 = vpop.xlane.xlu0 %1796
          %1798 = vadd.xlane.f32.xlu0 %v1589
          %v1799 = vpop.xlane.xlu0 %1798
          %1800 = vadd.xlane.f32.xlu0 %v1590
          %v1801 = vpop.xlane.xlu0 %1800
          %1802 = vadd.xlane.f32.xlu0 %v1591
          %v1803 = vpop.xlane.xlu0 %1802
          %1804 = vadd.xlane.f32.xlu0 %v1592
          %v1805 = vpop.xlane.xlu0 %1804
          %1806 = vadd.xlane.f32.xlu0 %v1593
          %v1807 = vpop.xlane.xlu0 %1806
          %1808 = vadd.xlane.f32.xlu0 %v1594
          %v1809 = vpop.xlane.xlu0 %1808
          %1810 = vadd.xlane.f32.xlu0 %v1595
          %v1811 = vpop.xlane.xlu0 %1810
          %1812 = vadd.xlane.f32.xlu0 %v1596
          %v1813 = vpop.xlane.xlu0 %1812
          %1814 = vadd.xlane.f32.xlu0 %v1597
          %v1815 = vpop.xlane.xlu0 %1814
          %1816 = vadd.xlane.f32.xlu0 %v1598
          %v1817 = vpop.xlane.xlu0 %1816
          %1818 = vadd.xlane.f32.xlu0 %v1599
          %v1819 = vpop.xlane.xlu0 %1818
          %1820 = vadd.xlane.f32.xlu0 %v1600
          %v1821 = vpop.xlane.xlu0 %1820
          %1822 = vadd.xlane.f32.xlu0 %v1601
          %v1823 = vpop.xlane.xlu0 %1822
          %1824 = vadd.xlane.f32.xlu0 %v1602
          %v1825 = vpop.xlane.xlu0 %1824
          %1826 = vadd.xlane.f32.xlu0 %v1603
          %v1827 = vpop.xlane.xlu0 %1826
          %1828 = vadd.xlane.f32.xlu0 %v1604
          %v1829 = vpop.xlane.xlu0 %1828
          %1830 = vadd.xlane.f32.xlu0 %v1605
          %v1831 = vpop.xlane.xlu0 %1830
          %1832 = vadd.xlane.f32.xlu0 %v1606
          %v1833 = vpop.xlane.xlu0 %1832
          %1834 = vadd.xlane.f32.xlu0 %v1607
          %v1835 = vpop.xlane.xlu0 %1834
          %1836 = vadd.xlane.f32.xlu0 %v1608
          %v1837 = vpop.xlane.xlu0 %1836
          %1838 = vadd.xlane.f32.xlu0 %v1609
          %v1839 = vpop.xlane.xlu0 %1838
          %1840 = vadd.xlane.f32.xlu0 %v1610
          %v1841 = vpop.xlane.xlu0 %1840
          %1842 = vadd.xlane.f32.xlu0 %v1611
          %v1843 = vpop.xlane.xlu0 %1842
          %1844 = vadd.xlane.f32.xlu0 %v1612
          %v1845 = vpop.xlane.xlu0 %1844
          %1846 = vadd.xlane.f32.xlu0 %v1613
          %v1847 = vpop.xlane.xlu0 %1846
          %1848 = vadd.xlane.f32.xlu0 %v1614
          %v1849 = vpop.xlane.xlu0 %1848
          %1850 = vadd.xlane.f32.xlu0 %v1615
          %v1851 = vpop.xlane.xlu0 %1850
          %1852 = vadd.xlane.f32.xlu0 %v1616
          %v1853 = vpop.xlane.xlu0 %1852
          %1854 = vadd.xlane.f32.xlu0 %v1617
          %v1855 = vpop.xlane.xlu0 %1854
          %1856 = vadd.xlane.f32.xlu0 %v1618
          %v1857 = vpop.xlane.xlu0 %1856
          %1858 = vadd.xlane.f32.xlu0 %v1619
          %v1859 = vpop.xlane.xlu0 %1858
          %1860 = vadd.xlane.f32.xlu0 %v1620
          %v1861 = vpop.xlane.xlu0 %1860
          %1862 = vadd.xlane.f32.xlu0 %v1621
          %v1863 = vpop.xlane.xlu0 %1862
          %1864 = vadd.xlane.f32.xlu0 %v1622
          %v1865 = vpop.xlane.xlu0 %1864
          %1866 = vadd.xlane.f32.xlu0 %v1623
          %v1867 = vpop.xlane.xlu0 %1866
          %1868 = vadd.xlane.f32.xlu0 %v1624
          %v1869 = vpop.xlane.xlu0 %1868
          %1870 = vadd.xlane.f32.xlu0 %v1625
          %v1871 = vpop.xlane.xlu0 %1870
          %1872 = vadd.xlane.f32.xlu0 %v1626
          %v1873 = vpop.xlane.xlu0 %1872
          %1874 = vadd.xlane.f32.xlu0 %v1627
          %v1875 = vpop.xlane.xlu0 %1874
          %1876 = vadd.xlane.f32.xlu0 %v1628
          %v1877 = vpop.xlane.xlu0 %1876
          %1878 = vadd.xlane.f32.xlu0 %v1629
          %v1879 = vpop.xlane.xlu0 %1878
          %1880 = vadd.xlane.f32.xlu0 %v1630
          %v1881 = vpop.xlane.xlu0 %1880
          %1882 = vadd.xlane.f32.xlu0 %v1631
          %v1883 = vpop.xlane.xlu0 %1882
          %1884 = vadd.xlane.f32.xlu0 %v1632
          %v1885 = vpop.xlane.xlu0 %1884
          %1886 = vadd.xlane.f32.xlu0 %v1633
          %v1887 = vpop.xlane.xlu0 %1886
          %1888 = vadd.xlane.f32.xlu0 %v1634
          %v1889 = vpop.xlane.xlu0 %1888
          %1890 = vadd.xlane.f32.xlu0 %v1635
          %v1891 = vpop.xlane.xlu0 %1890
          %v1892 = vld [vmem:[%s1] sm:$0xff]
          %v1893 = vld [vmem:[%s1 + $0x8] sm:$0xff]
          %v1894 = vld [vmem:[%s1 + $0x10] sm:$0xff]
          %v1895 = vld [vmem:[%s1 + $0x18] sm:$0xff]
          %v1896 = vld [vmem:[%s1 + $0x20] sm:$0xff]
          %v1897 = vld [vmem:[%s1 + $0x28] sm:$0xff]
          %v1898 = vld [vmem:[%s1 + $0x30] sm:$0xff]
          %v1899 = vld [vmem:[%s1 + $0x38] sm:$0xff]
          %v1900 = vld [vmem:[%s1 + $0x40] sm:$0xff]
          %v1901 = vld [vmem:[%s1 + $0x48] sm:$0xff]
          %v1902 = vld [vmem:[%s1 + $0x50] sm:$0xff]
          %v1903 = vld [vmem:[%s1 + $0x58] sm:$0xff]
          %v1904 = vld [vmem:[%s1 + $0x60] sm:$0xff]
          %v1905 = vld [vmem:[%s1 + $0x68] sm:$0xff]
          %v1906 = vld [vmem:[%s1 + $0x70] sm:$0xff]
          %v1907 = vld [vmem:[%s1 + $0x78] sm:$0xff]
          %v1908 = vld [vmem:[%s1 + $0x80] sm:$0xff]
          %v1909 = vld [vmem:[%s1 + $0x88] sm:$0xff]
          %v1910 = vld [vmem:[%s1 + $0x90] sm:$0xff]
          %v1911 = vld [vmem:[%s1 + $0x98] sm:$0xff]
          %v1912 = vld [vmem:[%s1 + $0xa0] sm:$0xff]
          %v1913 = vld [vmem:[%s1 + $0xa8] sm:$0xff]
          %v1914 = vld [vmem:[%s1 + $0xb0] sm:$0xff]
          %v1915 = vld [vmem:[%s1 + $0xb8] sm:$0xff]
          %v1916 = vld [vmem:[%s1 + $0xc0] sm:$0xff]
          %v1917 = vld [vmem:[%s1 + $0xc8] sm:$0xff]
          %v1918 = vld [vmem:[%s1 + $0xd0] sm:$0xff]
          %v1919 = vld [vmem:[%s1 + $0xd8] sm:$0xff]
          %v1920 = vld [vmem:[%s1 + $0xe0] sm:$0xff]
          %v1921 = vld [vmem:[%s1 + $0xe8] sm:$0xff]
          %v1922 = vld [vmem:[%s1 + $0xf0] sm:$0xff]
          %v1923 = vld [vmem:[%s1 + $0xf8] sm:$0xff]
          %v1924 = vld [vmem:[%s1 + $0x100] sm:$0xff]
          %v1925 = vld [vmem:[%s1 + $0x108] sm:$0xff]
          %v1926 = vld [vmem:[%s1 + $0x110] sm:$0xff]
          %v1927 = vld [vmem:[%s1 + $0x118] sm:$0xff]
          %v1928 = vld [vmem:[%s1 + $0x120] sm:$0xff]
          %v1929 = vld [vmem:[%s1 + $0x128] sm:$0xff]
          %v1930 = vld [vmem:[%s1 + $0x130] sm:$0xff]
          %v1931 = vld [vmem:[%s1 + $0x138] sm:$0xff]
          %v1932 = vld [vmem:[%s1 + $0x140] sm:$0xff]
          %v1933 = vld [vmem:[%s1 + $0x148] sm:$0xff]
          %v1934 = vld [vmem:[%s1 + $0x150] sm:$0xff]
          %v1935 = vld [vmem:[%s1 + $0x158] sm:$0xff]
          %v1936 = vld [vmem:[%s1 + $0x160] sm:$0xff]
          %v1937 = vld [vmem:[%s1 + $0x168] sm:$0xff]
          %v1938 = vld [vmem:[%s1 + $0x170] sm:$0xff]
          %v1939 = vld [vmem:[%s1 + $0x178] sm:$0xff]
          %v1940 = vld [vmem:[%s1 + $0x180] sm:$0xff]
          %v1941 = vld [vmem:[%s1 + $0x188] sm:$0xff]
          %v1942 = vld [vmem:[%s1 + $0x190] sm:$0xff]
          %v1943 = vld [vmem:[%s1 + $0x198] sm:$0xff]
          %v1944 = vld [vmem:[%s1 + $0x1a0] sm:$0xff]
          %v1945 = vld [vmem:[%s1 + $0x1a8] sm:$0xff]
          %v1946 = vld [vmem:[%s1 + $0x1b0] sm:$0xff]
          %v1947 = vld [vmem:[%s1 + $0x1b8] sm:$0xff]
          %v1948 = vld [vmem:[%s1 + $0x1c0] sm:$0xff]
          %v1949 = vld [vmem:[%s1 + $0x1c8] sm:$0xff]
          %v1950 = vld [vmem:[%s1 + $0x1d0] sm:$0xff]
          %v1951 = vld [vmem:[%s1 + $0x1d8] sm:$0xff]
          %v1952 = vld [vmem:[%s1 + $0x1e0] sm:$0xff]
          %v1953 = vld [vmem:[%s1 + $0x1e8] sm:$0xff]
          %v1954 = vld [vmem:[%s1 + $0x1f0] sm:$0xff]
          %v1955 = vld [vmem:[%s1 + $0x1f8] sm:$0xff]
          %v1956 = vld [vmem:[%s1 + $0x200] sm:$0xff]
          %v1957 = vld [vmem:[%s1 + $0x208] sm:$0xff]
          %v1958 = vld [vmem:[%s1 + $0x210] sm:$0xff]
          %v1959 = vld [vmem:[%s1 + $0x218] sm:$0xff]
          %v1960 = vld [vmem:[%s1 + $0x220] sm:$0xff]
          %v1961 = vld [vmem:[%s1 + $0x228] sm:$0xff]
          %v1962 = vld [vmem:[%s1 + $0x230] sm:$0xff]
          %v1963 = vld [vmem:[%s1 + $0x238] sm:$0xff]
          %v1964 = vld [vmem:[%s1 + $0x240] sm:$0xff]
          %v1965 = vld [vmem:[%s1 + $0x248] sm:$0xff]
          %v1966 = vld [vmem:[%s1 + $0x250] sm:$0xff]
          %v1967 = vld [vmem:[%s1 + $0x258] sm:$0xff]
          %v1968 = vld [vmem:[%s1 + $0x260] sm:$0xff]
          %v1969 = vld [vmem:[%s1 + $0x268] sm:$0xff]
          %v1970 = vld [vmem:[%s1 + $0x270] sm:$0xff]
          %v1971 = vld [vmem:[%s1 + $0x278] sm:$0xff]
          %v1972 = vld [vmem:[%s1 + $0x280] sm:$0xff]
          %v1973 = vld [vmem:[%s1 + $0x288] sm:$0xff]
          %v1974 = vld [vmem:[%s1 + $0x290] sm:$0xff]
          %v1975 = vld [vmem:[%s1 + $0x298] sm:$0xff]
          %v1976 = vld [vmem:[%s1 + $0x2a0] sm:$0xff]
          %v1977 = vld [vmem:[%s1 + $0x2a8] sm:$0xff]
          %v1978 = vld [vmem:[%s1 + $0x2b0] sm:$0xff]
          %v1979 = vld [vmem:[%s1 + $0x2b8] sm:$0xff]
          %v1980 = vld [vmem:[%s1 + $0x2c0] sm:$0xff]
          %v1981 = vld [vmem:[%s1 + $0x2c8] sm:$0xff]
          %v1982 = vld [vmem:[%s1 + $0x2d0] sm:$0xff]
          %v1983 = vld [vmem:[%s1 + $0x2d8] sm:$0xff]
          %v1984 = vld [vmem:[%s1 + $0x2e0] sm:$0xff]
          %v1985 = vld [vmem:[%s1 + $0x2e8] sm:$0xff]
          %v1986 = vld [vmem:[%s1 + $0x2f0] sm:$0xff]
          %v1987 = vld [vmem:[%s1 + $0x2f8] sm:$0xff]
          %v1988 = vld [vmem:[%s1 + $0x300] sm:$0xff]
          %v1989 = vld [vmem:[%s1 + $0x308] sm:$0xff]
          %v1990 = vld [vmem:[%s1 + $0x310] sm:$0xff]
          %v1991 = vld [vmem:[%s1 + $0x318] sm:$0xff]
          %v1992 = vld [vmem:[%s1 + $0x320] sm:$0xff]
          %v1993 = vld [vmem:[%s1 + $0x328] sm:$0xff]
          %v1994 = vld [vmem:[%s1 + $0x330] sm:$0xff]
          %v1995 = vld [vmem:[%s1 + $0x338] sm:$0xff]
          %v1996 = vld [vmem:[%s1 + $0x340] sm:$0xff]
          %v1997 = vld [vmem:[%s1 + $0x348] sm:$0xff]
          %v1998 = vld [vmem:[%s1 + $0x350] sm:$0xff]
          %v1999 = vld [vmem:[%s1 + $0x358] sm:$0xff]
          %v2000 = vld [vmem:[%s1 + $0x360] sm:$0xff]
          %v2001 = vld [vmem:[%s1 + $0x368] sm:$0xff]
          %v2002 = vld [vmem:[%s1 + $0x370] sm:$0xff]
          %v2003 = vld [vmem:[%s1 + $0x378] sm:$0xff]
          %v2004 = vld [vmem:[%s1 + $0x380] sm:$0xff]
          %v2005 = vld [vmem:[%s1 + $0x388] sm:$0xff]
          %v2006 = vld [vmem:[%s1 + $0x390] sm:$0xff]
          %v2007 = vld [vmem:[%s1 + $0x398] sm:$0xff]
          %v2008 = vld [vmem:[%s1 + $0x3a0] sm:$0xff]
          %v2009 = vld [vmem:[%s1 + $0x3a8] sm:$0xff]
          %v2010 = vld [vmem:[%s1 + $0x3b0] sm:$0xff]
          %v2011 = vld [vmem:[%s1 + $0x3b8] sm:$0xff]
          %v2012 = vld [vmem:[%s1 + $0x3c0] sm:$0xff]
          %v2013 = vld [vmem:[%s1 + $0x3c8] sm:$0xff]
          %v2014 = vld [vmem:[%s1 + $0x3d0] sm:$0xff]
          %v2015 = vld [vmem:[%s1 + $0x3d8] sm:$0xff]
          %v2016 = vld [vmem:[%s1 + $0x3e0] sm:$0xff]
          %v2017 = vld [vmem:[%s1 + $0x3e8] sm:$0xff]
          %v2018 = vld [vmem:[%s1 + $0x3f0] sm:$0xff]
          %v2019 = vld [vmem:[%s1 + $0x3f8] sm:$0xff]
          %v2020 = vld [vmem:[%s2] sm:$0x1]
          %v2149 = vlaneseq
          %v2150 = vshrl.u32 %v2149, 7
          %v2151 = vsub.s32 %v988, %v2150
          %v2152 = vrot.slane %v1637, %v2151
          %v2153 = vadd.s32 %v988, 4294967288
          %v2154 = vlaneseq
          %v2155 = vshrl.u32 %v2154, 7
          %v2156 = vsub.s32 %v2153, %v2155
          %v2157 = vrot.slane %v1639, %v2156
          %vm2158 = vcmask 130112
          %v2159 = vsel %vm2158, %v2157, %v2152
          %v2160 = vadd.s32 %v988, 4294967280
          %v2161 = vlaneseq
          %v2162 = vshrl.u32 %v2161, 7
          %v2163 = vsub.s32 %v2160, %v2162
          %v2164 = vrot.slane %v1641, %v2163
          %vm2165 = vcmask 195712
          %v2166 = vsel %vm2165, %v2164, %v2159
          %v2167 = vadd.s32 %v988, 4294967272
          %v2168 = vlaneseq
          %v2169 = vshrl.u32 %v2168, 7
          %v2170 = vsub.s32 %v2167, %v2169
          %v2171 = vrot.slane %v1643, %v2170
          %vm2172 = vcmask 261312
          %v2173 = vsel %vm2172, %v2171, %v2166
          %v2174 = vadd.s32 %v988, 4294967264
          %v2175 = vlaneseq
          %v2176 = vshrl.u32 %v2175, 7
          %v2177 = vsub.s32 %v2174, %v2176
          %v2178 = vrot.slane %v1645, %v2177
          %vm2179 = vcmask 326912
          %v2180 = vsel %vm2179, %v2178, %v2173
          %v2181 = vadd.s32 %v988, 4294967256
          %v2182 = vlaneseq
          %v2183 = vshrl.u32 %v2182, 7
          %v2184 = vsub.s32 %v2181, %v2183
          %v2185 = vrot.slane %v1647, %v2184
          %vm2186 = vcmask 392512
          %v2187 = vsel %vm2186, %v2185, %v2180
          %v2188 = vadd.s32 %v988, 4294967248
          %v2189 = vlaneseq
          %v2190 = vshrl.u32 %v2189, 7
          %v2191 = vsub.s32 %v2188, %v2190
          %v2192 = vrot.slane %v1649, %v2191
          %vm2193 = vcmask 458112
          %v2194 = vsel %vm2193, %v2192, %v2187
          %v2195 = vadd.s32 %v988, 4294967240
          %v2196 = vlaneseq
          %v2197 = vshrl.u32 %v2196, 7
          %v2198 = vsub.s32 %v2195, %v2197
          %v2199 = vrot.slane %v1651, %v2198
          %vm2200 = vcmask 523712
          %v2201 = vsel %vm2200, %v2199, %v2194
          %v2202 = vadd.s32 %v988, 4294967232
          %v2203 = vlaneseq
          %v2204 = vshrl.u32 %v2203, 7
          %v2205 = vsub.s32 %v2202, %v2204
          %v2206 = vrot.slane %v1653, %v2205
          %vm2207 = vcmask 589312
          %v2208 = vsel %vm2207, %v2206, %v2201
          %v2209 = vadd.s32 %v988, 4294967224
          %v2210 = vlaneseq
          %v2211 = vshrl.u32 %v2210, 7
          %v2212 = vsub.s32 %v2209, %v2211
          %v2213 = vrot.slane %v1655, %v2212
          %vm2214 = vcmask 654912
          %v2215 = vsel %vm2214, %v2213, %v2208
          %v2216 = vadd.s32 %v988, 4294967216
          %v2217 = vlaneseq
          %v2218 = vshrl.u32 %v2217, 7
          %v2219 = vsub.s32 %v2216, %v2218
          %v2220 = vrot.slane %v1657, %v2219
          %vm2221 = vcmask 720512
          %v2222 = vsel %vm2221, %v2220, %v2215
          %v2223 = vadd.s32 %v988, 4294967208
          %v2224 = vlaneseq
          %v2225 = vshrl.u32 %v2224, 7
          %v2226 = vsub.s32 %v2223, %v2225
          %v2227 = vrot.slane %v1659, %v2226
          %vm2228 = vcmask 786112
          %v2229 = vsel %vm2228, %v2227, %v2222
          %v2230 = vadd.s32 %v988, 4294967200
          %v2231 = vlaneseq
          %v2232 = vshrl.u32 %v2231, 7
          %v2233 = vsub.s32 %v2230, %v2232
          %v2234 = vrot.slane %v1661, %v2233
          %vm2235 = vcmask 851712
          %v2236 = vsel %vm2235, %v2234, %v2229
          %v2237 = vadd.s32 %v988, 4294967192
          %v2238 = vlaneseq
          %v2239 = vshrl.u32 %v2238, 7
          %v2240 = vsub.s32 %v2237, %v2239
          %v2241 = vrot.slane %v1663, %v2240
          %vm2242 = vcmask 917312
          %v2243 = vsel %vm2242, %v2241, %v2236
          %v2244 = vadd.s32 %v988, 4294967184
          %v2245 = vlaneseq
          %v2246 = vshrl.u32 %v2245, 7
          %v2247 = vsub.s32 %v2244, %v2246
          %v2248 = vrot.slane %v1665, %v2247
          %vm2249 = vcmask 982912
          %v2250 = vsel %vm2249, %v2248, %v2243
          %v2251 = vadd.s32 %v988, 4294967176
          %v2252 = vlaneseq
          %v2253 = vshrl.u32 %v2252, 7
          %v2254 = vsub.s32 %v2251, %v2253
          %v2255 = vrot.slane %v1667, %v2254
          %vm2256 = vcmask 1048512
          %v2257 = vsel %vm2256, %v2255, %v2250
          %v2258 = vlaneseq
          %v2259 = vshrl.u32 %v2258, 7
          %v2260 = vsub.s32 %v988, %v2259
          %v2261 = vrot.slane %v1669, %v2260
          %v2262 = vlaneseq
          %v2263 = vshrl.u32 %v2262, 7
          %v2264 = vsub.s32 %v2153, %v2263
          %v2265 = vrot.slane %v1671, %v2264
          %v2266 = vsel %vm2158, %v2265, %v2261
          %v2267 = vlaneseq
          %v2268 = vshrl.u32 %v2267, 7
          %v2269 = vsub.s32 %v2160, %v2268
          %v2270 = vrot.slane %v1673, %v2269
          %v2271 = vsel %vm2165, %v2270, %v2266
          %v2272 = vlaneseq
          %v2273 = vshrl.u32 %v2272, 7
          %v2274 = vsub.s32 %v2167, %v2273
          %v2275 = vrot.slane %v1675, %v2274
          %v2276 = vsel %vm2172, %v2275, %v2271
          %v2277 = vlaneseq
          %v2278 = vshrl.u32 %v2277, 7
          %v2279 = vsub.s32 %v2174, %v2278
          %v2280 = vrot.slane %v1677, %v2279
          %v2281 = vsel %vm2179, %v2280, %v2276
          %v2282 = vlaneseq
          %v2283 = vshrl.u32 %v2282, 7
          %v2284 = vsub.s32 %v2181, %v2283
          %v2285 = vrot.slane %v1679, %v2284
          %v2286 = vsel %vm2186, %v2285, %v2281
          %v2287 = vlaneseq
          %v2288 = vshrl.u32 %v2287, 7
          %v2289 = vsub.s32 %v2188, %v2288
          %v2290 = vrot.slane %v1681, %v2289
          %v2291 = vsel %vm2193, %v2290, %v2286
          %v2292 = vlaneseq
          %v2293 = vshrl.u32 %v2292, 7
          %v2294 = vsub.s32 %v2195, %v2293
          %v2295 = vrot.slane %v1683, %v2294
          %v2296 = vsel %vm2200, %v2295, %v2291
          %v2297 = vlaneseq
          %v2298 = vshrl.u32 %v2297, 7
          %v2299 = vsub.s32 %v2202, %v2298
          %v2300 = vrot.slane %v1685, %v2299
          %v2301 = vsel %vm2207, %v2300, %v2296
          %v2302 = vlaneseq
          %v2303 = vshrl.u32 %v2302, 7
          %v2304 = vsub.s32 %v2209, %v2303
          %v2305 = vrot.slane %v1687, %v2304
          %v2306 = vsel %vm2214, %v2305, %v2301
          %v2307 = vlaneseq
          %v2308 = vshrl.u32 %v2307, 7
          %v2309 = vsub.s32 %v2216, %v2308
          %v2310 = vrot.slane %v1689, %v2309
          %v2311 = vsel %vm2221, %v2310, %v2306
          %v2312 = vlaneseq
          %v2313 = vshrl.u32 %v2312, 7
          %v2314 = vsub.s32 %v2223, %v2313
          %v2315 = vrot.slane %v1691, %v2314
          %v2316 = vsel %vm2228, %v2315, %v2311
          %v2317 = vlaneseq
          %v2318 = vshrl.u32 %v2317, 7
          %v2319 = vsub.s32 %v2230, %v2318
          %v2320 = vrot.slane %v1693, %v2319
          %v2321 = vsel %vm2235, %v2320, %v2316
          %v2322 = vlaneseq
          %v2323 = vshrl.u32 %v2322, 7
          %v2324 = vsub.s32 %v2237, %v2323
          %v2325 = vrot.slane %v1695, %v2324
          %v2326 = vsel %vm2242, %v2325, %v2321
          %v2327 = vlaneseq
          %v2328 = vshrl.u32 %v2327, 7
          %v2329 = vsub.s32 %v2244, %v2328
          %v2330 = vrot.slane %v1697, %v2329
          %v2331 = vsel %vm2249, %v2330, %v2326
          %v2332 = vlaneseq
          %v2333 = vshrl.u32 %v2332, 7
          %v2334 = vsub.s32 %v2251, %v2333
          %v2335 = vrot.slane %v1699, %v2334
          %v2336 = vsel %vm2256, %v2335, %v2331
          %v2337 = vlaneseq
          %v2338 = vshrl.u32 %v2337, 7
          %v2339 = vsub.s32 %v988, %v2338
          %v2340 = vrot.slane %v1701, %v2339
          %v2341 = vlaneseq
          %v2342 = vshrl.u32 %v2341, 7
          %v2343 = vsub.s32 %v2153, %v2342
          %v2344 = vrot.slane %v1703, %v2343
          %v2345 = vsel %vm2158, %v2344, %v2340
          %v2346 = vlaneseq
          %v2347 = vshrl.u32 %v2346, 7
          %v2348 = vsub.s32 %v2160, %v2347
          %v2349 = vrot.slane %v1705, %v2348
          %v2350 = vsel %vm2165, %v2349, %v2345
          %v2351 = vlaneseq
          %v2352 = vshrl.u32 %v2351, 7
          %v2353 = vsub.s32 %v2167, %v2352
          %v2354 = vrot.slane %v1707, %v2353
          %v2355 = vsel %vm2172, %v2354, %v2350
          %v2356 = vlaneseq
          %v2357 = vshrl.u32 %v2356, 7
          %v2358 = vsub.s32 %v2174, %v2357
          %v2359 = vrot.slane %v1709, %v2358
          %v2360 = vsel %vm2179, %v2359, %v2355
          %v2361 = vlaneseq
          %v2362 = vshrl.u32 %v2361, 7
          %v2363 = vsub.s32 %v2181, %v2362
          %v2364 = vrot.slane %v1711, %v2363
          %v2365 = vsel %vm2186, %v2364, %v2360
          %v2366 = vlaneseq
          %v2367 = vshrl.u32 %v2366, 7
          %v2368 = vsub.s32 %v2188, %v2367
          %v2369 = vrot.slane %v1713, %v2368
          %v2370 = vsel %vm2193, %v2369, %v2365
          %v2371 = vlaneseq
          %v2372 = vshrl.u32 %v2371, 7
          %v2373 = vsub.s32 %v2195, %v2372
          %v2374 = vrot.slane %v1715, %v2373
          %v2375 = vsel %vm2200, %v2374, %v2370
          %v2376 = vlaneseq
          %v2377 = vshrl.u32 %v2376, 7
          %v2378 = vsub.s32 %v2202, %v2377
          %v2379 = vrot.slane %v1717, %v2378
          %v2380 = vsel %vm2207, %v2379, %v2375
          %v2381 = vlaneseq
          %v2382 = vshrl.u32 %v2381, 7
          %v2383 = vsub.s32 %v2209, %v2382
          %v2384 = vrot.slane %v1719, %v2383
          %v2385 = vsel %vm2214, %v2384, %v2380
          %v2386 = vlaneseq
          %v2387 = vshrl.u32 %v2386, 7
          %v2388 = vsub.s32 %v2216, %v2387
          %v2389 = vrot.slane %v1721, %v2388
          %v2390 = vsel %vm2221, %v2389, %v2385
          %v2391 = vlaneseq
          %v2392 = vshrl.u32 %v2391, 7
          %v2393 = vsub.s32 %v2223, %v2392
          %v2394 = vrot.slane %v1723, %v2393
          %v2395 = vsel %vm2228, %v2394, %v2390
          %v2396 = vlaneseq
          %v2397 = vshrl.u32 %v2396, 7
          %v2398 = vsub.s32 %v2230, %v2397
          %v2399 = vrot.slane %v1725, %v2398
          %v2400 = vsel %vm2235, %v2399, %v2395
          %v2401 = vlaneseq
          %v2402 = vshrl.u32 %v2401, 7
          %v2403 = vsub.s32 %v2237, %v2402
          %v2404 = vrot.slane %v1727, %v2403
          %v2405 = vsel %vm2242, %v2404, %v2400
          %v2406 = vlaneseq
          %v2407 = vshrl.u32 %v2406, 7
          %v2408 = vsub.s32 %v2244, %v2407
          %v2409 = vrot.slane %v1729, %v2408
          %v2410 = vsel %vm2249, %v2409, %v2405
          %v2411 = vlaneseq
          %v2412 = vshrl.u32 %v2411, 7
          %v2413 = vsub.s32 %v2251, %v2412
          %v2414 = vrot.slane %v1731, %v2413
          %v2415 = vsel %vm2256, %v2414, %v2410
          %v2416 = vlaneseq
          %v2417 = vshrl.u32 %v2416, 7
          %v2418 = vsub.s32 %v988, %v2417
          %v2419 = vrot.slane %v1733, %v2418
          %v2420 = vlaneseq
          %v2421 = vshrl.u32 %v2420, 7
          %v2422 = vsub.s32 %v2153, %v2421
          %v2423 = vrot.slane %v1735, %v2422
          %v2424 = vsel %vm2158, %v2423, %v2419
          %v2425 = vlaneseq
          %v2426 = vshrl.u32 %v2425, 7
          %v2427 = vsub.s32 %v2160, %v2426
          %v2428 = vrot.slane %v1737, %v2427
          %v2429 = vsel %vm2165, %v2428, %v2424
          %v2430 = vlaneseq
          %v2431 = vshrl.u32 %v2430, 7
          %v2432 = vsub.s32 %v2167, %v2431
          %v2433 = vrot.slane %v1739, %v2432
          %v2434 = vsel %vm2172, %v2433, %v2429
          %v2435 = vlaneseq
          %v2436 = vshrl.u32 %v2435, 7
          %v2437 = vsub.s32 %v2174, %v2436
          %v2438 = vrot.slane %v1741, %v2437
          %v2439 = vsel %vm2179, %v2438, %v2434
          %v2440 = vlaneseq
          %v2441 = vshrl.u32 %v2440, 7
          %v2442 = vsub.s32 %v2181, %v2441
          %v2443 = vrot.slane %v1743, %v2442
          %v2444 = vsel %vm2186, %v2443, %v2439
          %v2445 = vlaneseq
          %v2446 = vshrl.u32 %v2445, 7
          %v2447 = vsub.s32 %v2188, %v2446
          %v2448 = vrot.slane %v1745, %v2447
          %v2449 = vsel %vm2193, %v2448, %v2444
          %v2450 = vlaneseq
          %v2451 = vshrl.u32 %v2450, 7
          %v2452 = vsub.s32 %v2195, %v2451
          %v2453 = vrot.slane %v1747, %v2452
          %v2454 = vsel %vm2200, %v2453, %v2449
          %v2455 = vlaneseq
          %v2456 = vshrl.u32 %v2455, 7
          %v2457 = vsub.s32 %v2202, %v2456
          %v2458 = vrot.slane %v1749, %v2457
          %v2459 = vsel %vm2207, %v2458, %v2454
          %v2460 = vlaneseq
          %v2461 = vshrl.u32 %v2460, 7
          %v2462 = vsub.s32 %v2209, %v2461
          %v2463 = vrot.slane %v1751, %v2462
          %v2464 = vsel %vm2214, %v2463, %v2459
          %v2465 = vlaneseq
          %v2466 = vshrl.u32 %v2465, 7
          %v2467 = vsub.s32 %v2216, %v2466
          %v2468 = vrot.slane %v1753, %v2467
          %v2469 = vsel %vm2221, %v2468, %v2464
          %v2470 = vlaneseq
          %v2471 = vshrl.u32 %v2470, 7
          %v2472 = vsub.s32 %v2223, %v2471
          %v2473 = vrot.slane %v1755, %v2472
          %v2474 = vsel %vm2228, %v2473, %v2469
          %v2475 = vlaneseq
          %v2476 = vshrl.u32 %v2475, 7
          %v2477 = vsub.s32 %v2230, %v2476
          %v2478 = vrot.slane %v1757, %v2477
          %v2479 = vsel %vm2235, %v2478, %v2474
          %v2480 = vlaneseq
          %v2481 = vshrl.u32 %v2480, 7
          %v2482 = vsub.s32 %v2237, %v2481
          %v2483 = vrot.slane %v1759, %v2482
          %v2484 = vsel %vm2242, %v2483, %v2479
          %v2485 = vlaneseq
          %v2486 = vshrl.u32 %v2485, 7
          %v2487 = vsub.s32 %v2244, %v2486
          %v2488 = vrot.slane %v1761, %v2487
          %v2489 = vsel %vm2249, %v2488, %v2484
          %v2490 = vlaneseq
          %v2491 = vshrl.u32 %v2490, 7
          %v2492 = vsub.s32 %v2251, %v2491
          %v2493 = vrot.slane %v1763, %v2492
          %v2494 = vsel %vm2256, %v2493, %v2489
          %v2495 = vlaneseq
          %v2496 = vshrl.u32 %v2495, 7
          %v2497 = vsub.s32 %v988, %v2496
          %v2498 = vrot.slane %v1765, %v2497
          %v2499 = vlaneseq
          %v2500 = vshrl.u32 %v2499, 7
          %v2501 = vsub.s32 %v2153, %v2500
          %v2502 = vrot.slane %v1767, %v2501
          %v2503 = vsel %vm2158, %v2502, %v2498
          %v2504 = vlaneseq
          %v2505 = vshrl.u32 %v2504, 7
          %v2506 = vsub.s32 %v2160, %v2505
          %v2507 = vrot.slane %v1769, %v2506
          %v2508 = vsel %vm2165, %v2507, %v2503
          %v2509 = vlaneseq
          %v2510 = vshrl.u32 %v2509, 7
          %v2511 = vsub.s32 %v2167, %v2510
          %v2512 = vrot.slane %v1771, %v2511
          %v2513 = vsel %vm2172, %v2512, %v2508
          %v2514 = vlaneseq
          %v2515 = vshrl.u32 %v2514, 7
          %v2516 = vsub.s32 %v2174, %v2515
          %v2517 = vrot.slane %v1773, %v2516
          %v2518 = vsel %vm2179, %v2517, %v2513
          %v2519 = vlaneseq
          %v2520 = vshrl.u32 %v2519, 7
          %v2521 = vsub.s32 %v2181, %v2520
          %v2522 = vrot.slane %v1775, %v2521
          %v2523 = vsel %vm2186, %v2522, %v2518
          %v2524 = vlaneseq
          %v2525 = vshrl.u32 %v2524, 7
          %v2526 = vsub.s32 %v2188, %v2525
          %v2527 = vrot.slane %v1777, %v2526
          %v2528 = vsel %vm2193, %v2527, %v2523
          %v2529 = vlaneseq
          %v2530 = vshrl.u32 %v2529, 7
          %v2531 = vsub.s32 %v2195, %v2530
          %v2532 = vrot.slane %v1779, %v2531
          %v2533 = vsel %vm2200, %v2532, %v2528
          %v2534 = vlaneseq
          %v2535 = vshrl.u32 %v2534, 7
          %v2536 = vsub.s32 %v2202, %v2535
          %v2537 = vrot.slane %v1781, %v2536
          %v2538 = vsel %vm2207, %v2537, %v2533
          %v2539 = vlaneseq
          %v2540 = vshrl.u32 %v2539, 7
          %v2541 = vsub.s32 %v2209, %v2540
          %v2542 = vrot.slane %v1783, %v2541
          %v2543 = vsel %vm2214, %v2542, %v2538
          %v2544 = vlaneseq
          %v2545 = vshrl.u32 %v2544, 7
          %v2546 = vsub.s32 %v2216, %v2545
          %v2547 = vrot.slane %v1785, %v2546
          %v2548 = vsel %vm2221, %v2547, %v2543
          %v2549 = vlaneseq
          %v2550 = vshrl.u32 %v2549, 7
          %v2551 = vsub.s32 %v2223, %v2550
          %v2552 = vrot.slane %v1787, %v2551
          %v2553 = vsel %vm2228, %v2552, %v2548
          %v2554 = vlaneseq
          %v2555 = vshrl.u32 %v2554, 7
          %v2556 = vsub.s32 %v2230, %v2555
          %v2557 = vrot.slane %v1789, %v2556
          %v2558 = vsel %vm2235, %v2557, %v2553
          %v2559 = vlaneseq
          %v2560 = vshrl.u32 %v2559, 7
          %v2561 = vsub.s32 %v2237, %v2560
          %v2562 = vrot.slane %v1791, %v2561
          %v2563 = vsel %vm2242, %v2562, %v2558
          %v2564 = vlaneseq
          %v2565 = vshrl.u32 %v2564, 7
          %v2566 = vsub.s32 %v2244, %v2565
          %v2567 = vrot.slane %v1793, %v2566
          %v2568 = vsel %vm2249, %v2567, %v2563
          %v2569 = vlaneseq
          %v2570 = vshrl.u32 %v2569, 7
          %v2571 = vsub.s32 %v2251, %v2570
          %v2572 = vrot.slane %v1795, %v2571
          %v2573 = vsel %vm2256, %v2572, %v2568
          %v2574 = vlaneseq
          %v2575 = vshrl.u32 %v2574, 7
          %v2576 = vsub.s32 %v988, %v2575
          %v2577 = vrot.slane %v1797, %v2576
          %v2578 = vlaneseq
          %v2579 = vshrl.u32 %v2578, 7
          %v2580 = vsub.s32 %v2153, %v2579
          %v2581 = vrot.slane %v1799, %v2580
          %v2582 = vsel %vm2158, %v2581, %v2577
          %v2583 = vlaneseq
          %v2584 = vshrl.u32 %v2583, 7
          %v2585 = vsub.s32 %v2160, %v2584
          %v2586 = vrot.slane %v1801, %v2585
          %v2587 = vsel %vm2165, %v2586, %v2582
          %v2588 = vlaneseq
          %v2589 = vshrl.u32 %v2588, 7
          %v2590 = vsub.s32 %v2167, %v2589
          %v2591 = vrot.slane %v1803, %v2590
          %v2592 = vsel %vm2172, %v2591, %v2587
          %v2593 = vlaneseq
          %v2594 = vshrl.u32 %v2593, 7
          %v2595 = vsub.s32 %v2174, %v2594
          %v2596 = vrot.slane %v1805, %v2595
          %v2597 = vsel %vm2179, %v2596, %v2592
          %v2598 = vlaneseq
          %v2599 = vshrl.u32 %v2598, 7
          %v2600 = vsub.s32 %v2181, %v2599
          %v2601 = vrot.slane %v1807, %v2600
          %v2602 = vsel %vm2186, %v2601, %v2597
          %v2603 = vlaneseq
          %v2604 = vshrl.u32 %v2603, 7
          %v2605 = vsub.s32 %v2188, %v2604
          %v2606 = vrot.slane %v1809, %v2605
          %v2607 = vsel %vm2193, %v2606, %v2602
          %v2608 = vlaneseq
          %v2609 = vshrl.u32 %v2608, 7
          %v2610 = vsub.s32 %v2195, %v2609
          %v2611 = vrot.slane %v1811, %v2610
          %v2612 = vsel %vm2200, %v2611, %v2607
          %v2613 = vlaneseq
          %v2614 = vshrl.u32 %v2613, 7
          %v2615 = vsub.s32 %v2202, %v2614
          %v2616 = vrot.slane %v1813, %v2615
          %v2617 = vsel %vm2207, %v2616, %v2612
          %v2618 = vlaneseq
          %v2619 = vshrl.u32 %v2618, 7
          %v2620 = vsub.s32 %v2209, %v2619
          %v2621 = vrot.slane %v1815, %v2620
          %v2622 = vsel %vm2214, %v2621, %v2617
          %v2623 = vlaneseq
          %v2624 = vshrl.u32 %v2623, 7
          %v2625 = vsub.s32 %v2216, %v2624
          %v2626 = vrot.slane %v1817, %v2625
          %v2627 = vsel %vm2221, %v2626, %v2622
          %v2628 = vlaneseq
          %v2629 = vshrl.u32 %v2628, 7
          %v2630 = vsub.s32 %v2223, %v2629
          %v2631 = vrot.slane %v1819, %v2630
          %v2632 = vsel %vm2228, %v2631, %v2627
          %v2633 = vlaneseq
          %v2634 = vshrl.u32 %v2633, 7
          %v2635 = vsub.s32 %v2230, %v2634
          %v2636 = vrot.slane %v1821, %v2635
          %v2637 = vsel %vm2235, %v2636, %v2632
          %v2638 = vlaneseq
          %v2639 = vshrl.u32 %v2638, 7
          %v2640 = vsub.s32 %v2237, %v2639
          %v2641 = vrot.slane %v1823, %v2640
          %v2642 = vsel %vm2242, %v2641, %v2637
          %v2643 = vlaneseq
          %v2644 = vshrl.u32 %v2643, 7
          %v2645 = vsub.s32 %v2244, %v2644
          %v2646 = vrot.slane %v1825, %v2645
          %v2647 = vsel %vm2249, %v2646, %v2642
          %v2648 = vlaneseq
          %v2649 = vshrl.u32 %v2648, 7
          %v2650 = vsub.s32 %v2251, %v2649
          %v2651 = vrot.slane %v1827, %v2650
          %v2652 = vsel %vm2256, %v2651, %v2647
          %v2653 = vlaneseq
          %v2654 = vshrl.u32 %v2653, 7
          %v2655 = vsub.s32 %v988, %v2654
          %v2656 = vrot.slane %v1829, %v2655
          %v2657 = vlaneseq
          %v2658 = vshrl.u32 %v2657, 7
          %v2659 = vsub.s32 %v2153, %v2658
          %v2660 = vrot.slane %v1831, %v2659
          %v2661 = vsel %vm2158, %v2660, %v2656
          %v2662 = vlaneseq
          %v2663 = vshrl.u32 %v2662, 7
          %v2664 = vsub.s32 %v2160, %v2663
          %v2665 = vrot.slane %v1833, %v2664
          %v2666 = vsel %vm2165, %v2665, %v2661
          %v2667 = vlaneseq
          %v2668 = vshrl.u32 %v2667, 7
          %v2669 = vsub.s32 %v2167, %v2668
          %v2670 = vrot.slane %v1835, %v2669
          %v2671 = vsel %vm2172, %v2670, %v2666
          %v2672 = vlaneseq
          %v2673 = vshrl.u32 %v2672, 7
          %v2674 = vsub.s32 %v2174, %v2673
          %v2675 = vrot.slane %v1837, %v2674
          %v2676 = vsel %vm2179, %v2675, %v2671
          %v2677 = vlaneseq
          %v2678 = vshrl.u32 %v2677, 7
          %v2679 = vsub.s32 %v2181, %v2678
          %v2680 = vrot.slane %v1839, %v2679
          %v2681 = vsel %vm2186, %v2680, %v2676
          %v2682 = vlaneseq
          %v2683 = vshrl.u32 %v2682, 7
          %v2684 = vsub.s32 %v2188, %v2683
          %v2685 = vrot.slane %v1841, %v2684
          %v2686 = vsel %vm2193, %v2685, %v2681
          %v2687 = vlaneseq
          %v2688 = vshrl.u32 %v2687, 7
          %v2689 = vsub.s32 %v2195, %v2688
          %v2690 = vrot.slane %v1843, %v2689
          %v2691 = vsel %vm2200, %v2690, %v2686
          %v2692 = vlaneseq
          %v2693 = vshrl.u32 %v2692, 7
          %v2694 = vsub.s32 %v2202, %v2693
          %v2695 = vrot.slane %v1845, %v2694
          %v2696 = vsel %vm2207, %v2695, %v2691
          %v2697 = vlaneseq
          %v2698 = vshrl.u32 %v2697, 7
          %v2699 = vsub.s32 %v2209, %v2698
          %v2700 = vrot.slane %v1847, %v2699
          %v2701 = vsel %vm2214, %v2700, %v2696
          %v2702 = vlaneseq
          %v2703 = vshrl.u32 %v2702, 7
          %v2704 = vsub.s32 %v2216, %v2703
          %v2705 = vrot.slane %v1849, %v2704
          %v2706 = vsel %vm2221, %v2705, %v2701
          %v2707 = vlaneseq
          %v2708 = vshrl.u32 %v2707, 7
          %v2709 = vsub.s32 %v2223, %v2708
          %v2710 = vrot.slane %v1851, %v2709
          %v2711 = vsel %vm2228, %v2710, %v2706
          %v2712 = vlaneseq
          %v2713 = vshrl.u32 %v2712, 7
          %v2714 = vsub.s32 %v2230, %v2713
          %v2715 = vrot.slane %v1853, %v2714
          %v2716 = vsel %vm2235, %v2715, %v2711
          %v2717 = vlaneseq
          %v2718 = vshrl.u32 %v2717, 7
          %v2719 = vsub.s32 %v2237, %v2718
          %v2720 = vrot.slane %v1855, %v2719
          %v2721 = vsel %vm2242, %v2720, %v2716
          %v2722 = vlaneseq
          %v2723 = vshrl.u32 %v2722, 7
          %v2724 = vsub.s32 %v2244, %v2723
          %v2725 = vrot.slane %v1857, %v2724
          %v2726 = vsel %vm2249, %v2725, %v2721
          %v2727 = vlaneseq
          %v2728 = vshrl.u32 %v2727, 7
          %v2729 = vsub.s32 %v2251, %v2728
          %v2730 = vrot.slane %v1859, %v2729
          %v2731 = vsel %vm2256, %v2730, %v2726
          %v2732 = vlaneseq
          %v2733 = vshrl.u32 %v2732, 7
          %v2734 = vsub.s32 %v988, %v2733
          %v2735 = vrot.slane %v1861, %v2734
          %v2736 = vlaneseq
          %v2737 = vshrl.u32 %v2736, 7
          %v2738 = vsub.s32 %v2153, %v2737
          %v2739 = vrot.slane %v1863, %v2738
          %v2740 = vsel %vm2158, %v2739, %v2735
          %v2741 = vlaneseq
          %v2742 = vshrl.u32 %v2741, 7
          %v2743 = vsub.s32 %v2160, %v2742
          %v2744 = vrot.slane %v1865, %v2743
          %v2745 = vsel %vm2165, %v2744, %v2740
          %v2746 = vlaneseq
          %v2747 = vshrl.u32 %v2746, 7
          %v2748 = vsub.s32 %v2167, %v2747
          %v2749 = vrot.slane %v1867, %v2748
          %v2750 = vsel %vm2172, %v2749, %v2745
          %v2751 = vlaneseq
          %v2752 = vshrl.u32 %v2751, 7
          %v2753 = vsub.s32 %v2174, %v2752
          %v2754 = vrot.slane %v1869, %v2753
          %v2755 = vsel %vm2179, %v2754, %v2750
          %v2756 = vlaneseq
          %v2757 = vshrl.u32 %v2756, 7
          %v2758 = vsub.s32 %v2181, %v2757
          %v2759 = vrot.slane %v1871, %v2758
          %v2760 = vsel %vm2186, %v2759, %v2755
          %v2761 = vlaneseq
          %v2762 = vshrl.u32 %v2761, 7
          %v2763 = vsub.s32 %v2188, %v2762
          %v2764 = vrot.slane %v1873, %v2763
          %v2765 = vsel %vm2193, %v2764, %v2760
          %v2766 = vlaneseq
          %v2767 = vshrl.u32 %v2766, 7
          %v2768 = vsub.s32 %v2195, %v2767
          %v2769 = vrot.slane %v1875, %v2768
          %v2770 = vsel %vm2200, %v2769, %v2765
          %v2771 = vlaneseq
          %v2772 = vshrl.u32 %v2771, 7
          %v2773 = vsub.s32 %v2202, %v2772
          %v2774 = vrot.slane %v1877, %v2773
          %v2775 = vsel %vm2207, %v2774, %v2770
          %v2776 = vlaneseq
          %v2777 = vshrl.u32 %v2776, 7
          %v2778 = vsub.s32 %v2209, %v2777
          %v2779 = vrot.slane %v1879, %v2778
          %v2780 = vsel %vm2214, %v2779, %v2775
          %v2781 = vlaneseq
          %v2782 = vshrl.u32 %v2781, 7
          %v2783 = vsub.s32 %v2216, %v2782
          %v2784 = vrot.slane %v1881, %v2783
          %v2785 = vsel %vm2221, %v2784, %v2780
          %v2786 = vlaneseq
          %v2787 = vshrl.u32 %v2786, 7
          %v2788 = vsub.s32 %v2223, %v2787
          %v2789 = vrot.slane %v1883, %v2788
          %v2790 = vsel %vm2228, %v2789, %v2785
          %v2791 = vlaneseq
          %v2792 = vshrl.u32 %v2791, 7
          %v2793 = vsub.s32 %v2230, %v2792
          %v2794 = vrot.slane %v1885, %v2793
          %v2795 = vsel %vm2235, %v2794, %v2790
          %v2796 = vlaneseq
          %v2797 = vshrl.u32 %v2796, 7
          %v2798 = vsub.s32 %v2237, %v2797
          %v2799 = vrot.slane %v1887, %v2798
          %v2800 = vsel %vm2242, %v2799, %v2795
          %v2801 = vlaneseq
          %v2802 = vshrl.u32 %v2801, 7
          %v2803 = vsub.s32 %v2244, %v2802
          %v2804 = vrot.slane %v1889, %v2803
          %v2805 = vsel %vm2249, %v2804, %v2800
          %v2806 = vlaneseq
          %v2807 = vshrl.u32 %v2806, 7
          %v2808 = vsub.s32 %v2251, %v2807
          %v2809 = vrot.slane %v1891, %v2808
          %v2810 = vsel %vm2256, %v2809, %v2805
          %2819 = vmatprep.subr.mxu0 0.0
          %2820 = vmatpush1.msra.mxu0 %v1892
          %2821 = vmatprep.subr.mxu0 0.0
          %2822 = vmatpush1.msra.mxu0 %v1893
          %2823 = vmatprep.subr.mxu0 0.0
          %2824 = vmatpush1.msra.mxu0 %v1894
          %2825 = vmatprep.subr.mxu0 0.0
          %2826 = vmatpush1.msra.mxu0 %v1895
          %2827 = vmatprep.subr.mxu0 0.0
          %2828 = vmatpush1.msra.mxu0 %v1896
          %2829 = vmatprep.subr.mxu0 0.0
          %2830 = vmatpush1.msra.mxu0 %v1897
          %2831 = vmatprep.subr.mxu0 0.0
          %2832 = vmatpush1.msra.mxu0 %v1898
          %2833 = vmatprep.subr.mxu0 0.0
          %2834 = vmatpush1.msra.mxu0 %v1899
          %2835 = vmatprep.subr.mxu0 0.0
          %2836 = vmatpush1.msra.mxu0 %v1900
          %2837 = vmatprep.subr.mxu0 0.0
          %2838 = vmatpush1.msra.mxu0 %v1901
          %2839 = vmatprep.subr.mxu0 0.0
          %2840 = vmatpush1.msra.mxu0 %v1902
          %2841 = vmatprep.subr.mxu0 0.0
          %2842 = vmatpush1.msra.mxu0 %v1903
          %2843 = vmatprep.subr.mxu0 0.0
          %2844 = vmatpush1.msra.mxu0 %v1904
          %2845 = vmatprep.subr.mxu0 0.0
          %2846 = vmatpush1.msra.mxu0 %v1905
          %2847 = vmatprep.subr.mxu0 0.0
          %2848 = vmatpush1.msra.mxu0 %v1906
          %2849 = vmatprep.subr.mxu0 0.0
          %2850 = vmatpush1.msra.mxu0 %v1907
          %2851 = vmatprep.subr.mxu0 0.0
          %2852 = vmatpush1.msra.mxu0 %v1908
          %2853 = vmatprep.subr.mxu0 0.0
          %2854 = vmatpush1.msra.mxu0 %v1909
          %2855 = vmatprep.subr.mxu0 0.0
          %2856 = vmatpush1.msra.mxu0 %v1910
          %2857 = vmatprep.subr.mxu0 0.0
          %2858 = vmatpush1.msra.mxu0 %v1911
          %2859 = vmatprep.subr.mxu0 0.0
          %2860 = vmatpush1.msra.mxu0 %v1912
          %2861 = vmatprep.subr.mxu0 0.0
          %2862 = vmatpush1.msra.mxu0 %v1913
          %2863 = vmatprep.subr.mxu0 0.0
          %2864 = vmatpush1.msra.mxu0 %v1914
          %2865 = vmatprep.subr.mxu0 0.0
          %2866 = vmatpush1.msra.mxu0 %v1915
          %2867 = vmatprep.subr.mxu0 0.0
          %2868 = vmatpush1.msra.mxu0 %v1916
          %2869 = vmatprep.subr.mxu0 0.0
          %2870 = vmatpush1.msra.mxu0 %v1917
          %2871 = vmatprep.subr.mxu0 0.0
          %2872 = vmatpush1.msra.mxu0 %v1918
          %2873 = vmatprep.subr.mxu0 0.0
          %2874 = vmatpush1.msra.mxu0 %v1919
          %2875 = vmatprep.subr.mxu0 0.0
          %2876 = vmatpush1.msra.mxu0 %v1920
          %2877 = vmatprep.subr.mxu0 0.0
          %2878 = vmatpush1.msra.mxu0 %v1921
          %2879 = vmatprep.subr.mxu0 0.0
          %2880 = vmatpush1.msra.mxu0 %v1922
          %2881 = vmatprep.subr.mxu0 0.0
          %2882 = vmatpush1.msra.mxu0 %v1923
          %2883 = vmatprep.mubr.f32.mxu0 %v2336
          %2884 = vmatmul.mubr.f32.gmra.mrb[0].mxu0 %v2257
          %v2885 = vpop.f32.mrb[0].mxu0
          %v2886 = vadd.f32 %v2020, %v2885
          %v2887 = vpop.f32.mrb[0].mxu0
          %2888 = vdwg.mxu0
          %2889 = vmatprep.subr.mxu0 0.0
          %2890 = vmatpush1.msra.mxu0 %v1924
          %2891 = vmatprep.subr.mxu0 0.0
          %2892 = vmatpush1.msra.mxu0 %v1925
          %2893 = vmatprep.subr.mxu0 0.0
          %2894 = vmatpush1.msra.mxu0 %v1926
          %2895 = vmatprep.subr.mxu0 0.0
          %2896 = vmatpush1.msra.mxu0 %v1927
          %2897 = vmatprep.subr.mxu0 0.0
          %2898 = vmatpush1.msra.mxu0 %v1928
          %2899 = vmatprep.subr.mxu0 0.0
          %2900 = vmatpush1.msra.mxu0 %v1929
          %2901 = vmatprep.subr.mxu0 0.0
          %2902 = vmatpush1.msra.mxu0 %v1930
          %2903 = vmatprep.subr.mxu0 0.0
          %2904 = vmatpush1.msra.mxu0 %v1931
          %2905 = vmatprep.subr.mxu0 0.0
          %2906 = vmatpush1.msra.mxu0 %v1932
          %2907 = vmatprep.subr.mxu0 0.0
          %2908 = vmatpush1.msra.mxu0 %v1933
          %2909 = vmatprep.subr.mxu0 0.0
          %2910 = vmatpush1.msra.mxu0 %v1934
          %2911 = vmatprep.subr.mxu0 0.0
          %2912 = vmatpush1.msra.mxu0 %v1935
          %2913 = vmatprep.subr.mxu0 0.0
          %2914 = vmatpush1.msra.mxu0 %v1936
          %2915 = vmatprep.subr.mxu0 0.0
          %2916 = vmatpush1.msra.mxu0 %v1937
          %2917 = vmatprep.subr.mxu0 0.0
          %2918 = vmatpush1.msra.mxu0 %v1938
          %2919 = vmatprep.subr.mxu0 0.0
          %2920 = vmatpush1.msra.mxu0 %v1939
          %2921 = vmatprep.subr.mxu0 0.0
          %2922 = vmatpush1.msra.mxu0 %v1940
          %2923 = vmatprep.subr.mxu0 0.0
          %2924 = vmatpush1.msra.mxu0 %v1941
          %2925 = vmatprep.subr.mxu0 0.0
          %2926 = vmatpush1.msra.mxu0 %v1942
          %2927 = vmatprep.subr.mxu0 0.0
          %2928 = vmatpush1.msra.mxu0 %v1943
          %2929 = vmatprep.subr.mxu0 0.0
          %2930 = vmatpush1.msra.mxu0 %v1944
          %2931 = vmatprep.subr.mxu0 0.0
          %2932 = vmatpush1.msra.mxu0 %v1945
          %2933 = vmatprep.subr.mxu0 0.0
          %2934 = vmatpush1.msra.mxu0 %v1946
          %2935 = vmatprep.subr.mxu0 0.0
          %2936 = vmatpush1.msra.mxu0 %v1947
          %2937 = vmatprep.subr.mxu0 0.0
          %2938 = vmatpush1.msra.mxu0 %v1948
          %2939 = vmatprep.subr.mxu0 0.0
          %2940 = vmatpush1.msra.mxu0 %v1949
          %2941 = vmatprep.subr.mxu0 0.0
          %2942 = vmatpush1.msra.mxu0 %v1950
          %2943 = vmatprep.subr.mxu0 0.0
          %2944 = vmatpush1.msra.mxu0 %v1951
          %2945 = vmatprep.subr.mxu0 0.0
          %2946 = vmatpush1.msra.mxu0 %v1952
          %2947 = vmatprep.subr.mxu0 0.0
          %2948 = vmatpush1.msra.mxu0 %v1953
          %2949 = vmatprep.subr.mxu0 0.0
          %2950 = vmatpush1.msra.mxu0 %v1954
          %2951 = vmatprep.subr.mxu0 0.0
          %2952 = vmatpush1.msra.mxu0 %v1955
          %2953 = vmatprep.mubr.f32.mxu0 %v2494
          %2954 = vmatmul.mubr.f32.gmra.mrb[0].mxu0 %v2415
          %v2955 = vpop.f32.mrb[0].mxu0
          %v2956 = vadd.f32 %v2886, %v2955
          %v2957 = vpop.f32.mrb[0].mxu0
          %2958 = vdwg.mxu0
          %2959 = vmatprep.subr.mxu0 0.0
          %2960 = vmatpush1.msra.mxu0 %v1956
          %2961 = vmatprep.subr.mxu0 0.0
          %2962 = vmatpush1.msra.mxu0 %v1957
          %2963 = vmatprep.subr.mxu0 0.0
          %2964 = vmatpush1.msra.mxu0 %v1958
          %2965 = vmatprep.subr.mxu0 0.0
          %2966 = vmatpush1.msra.mxu0 %v1959
          %2967 = vmatprep.subr.mxu0 0.0
          %2968 = vmatpush1.msra.mxu0 %v1960
          %2969 = vmatprep.subr.mxu0 0.0
          %2970 = vmatpush1.msra.mxu0 %v1961
          %2971 = vmatprep.subr.mxu0 0.0
          %2972 = vmatpush1.msra.mxu0 %v1962
          %2973 = vmatprep.subr.mxu0 0.0
          %2974 = vmatpush1.msra.mxu0 %v1963
          %2975 = vmatprep.subr.mxu0 0.0
          %2976 = vmatpush1.msra.mxu0 %v1964
          %2977 = vmatprep.subr.mxu0 0.0
          %2978 = vmatpush1.msra.mxu0 %v1965
          %2979 = vmatprep.subr.mxu0 0.0
          %2980 = vmatpush1.msra.mxu0 %v1966
          %2981 = vmatprep.subr.mxu0 0.0
          %2982 = vmatpush1.msra.mxu0 %v1967
          %2983 = vmatprep.subr.mxu0 0.0
          %2984 = vmatpush1.msra.mxu0 %v1968
          %2985 = vmatprep.subr.mxu0 0.0
          %2986 = vmatpush1.msra.mxu0 %v1969
          %2987 = vmatprep.subr.mxu0 0.0
          %2988 = vmatpush1.msra.mxu0 %v1970
          %2989 = vmatprep.subr.mxu0 0.0
          %2990 = vmatpush1.msra.mxu0 %v1971
          %2991 = vmatprep.subr.mxu0 0.0
          %2992 = vmatpush1.msra.mxu0 %v1972
          %2993 = vmatprep.subr.mxu0 0.0
          %2994 = vmatpush1.msra.mxu0 %v1973
          %2995 = vmatprep.subr.mxu0 0.0
          %2996 = vmatpush1.msra.mxu0 %v1974
          %2997 = vmatprep.subr.mxu0 0.0
          %2998 = vmatpush1.msra.mxu0 %v1975
          %2999 = vmatprep.subr.mxu0 0.0
          %3000 = vmatpush1.msra.mxu0 %v1976
          %3001 = vmatprep.subr.mxu0 0.0
          %3002 = vmatpush1.msra.mxu0 %v1977
          %3003 = vmatprep.subr.mxu0 0.0
          %3004 = vmatpush1.msra.mxu0 %v1978
          %3005 = vmatprep.subr.mxu0 0.0
          %3006 = vmatpush1.msra.mxu0 %v1979
          %3007 = vmatprep.subr.mxu0 0.0
          %3008 = vmatpush1.msra.mxu0 %v1980
          %3009 = vmatprep.subr.mxu0 0.0
          %3010 = vmatpush1.msra.mxu0 %v1981
          %3011 = vmatprep.subr.mxu0 0.0
          %3012 = vmatpush1.msra.mxu0 %v1982
          %3013 = vmatprep.subr.mxu0 0.0
          %3014 = vmatpush1.msra.mxu0 %v1983
          %3015 = vmatprep.subr.mxu0 0.0
          %3016 = vmatpush1.msra.mxu0 %v1984
          %3017 = vmatprep.subr.mxu0 0.0
          %3018 = vmatpush1.msra.mxu0 %v1985
          %3019 = vmatprep.subr.mxu0 0.0
          %3020 = vmatpush1.msra.mxu0 %v1986
          %3021 = vmatprep.subr.mxu0 0.0
          %3022 = vmatpush1.msra.mxu0 %v1987
          %3023 = vmatprep.mubr.f32.mxu0 %v2652
          %3024 = vmatmul.mubr.f32.gmra.mrb[0].mxu0 %v2573
          %v3025 = vpop.f32.mrb[0].mxu0
          %v3026 = vadd.f32 %v2956, %v3025
          %v3027 = vpop.f32.mrb[0].mxu0
          %3028 = vdwg.mxu0
          %3029 = vmatprep.subr.mxu0 0.0
          %3030 = vmatpush1.msra.mxu0 %v1988
          %3031 = vmatprep.subr.mxu0 0.0
          %3032 = vmatpush1.msra.mxu0 %v1989
          %3033 = vmatprep.subr.mxu0 0.0
          %3034 = vmatpush1.msra.mxu0 %v1990
          %3035 = vmatprep.subr.mxu0 0.0
          %3036 = vmatpush1.msra.mxu0 %v1991
          %3037 = vmatprep.subr.mxu0 0.0
          %3038 = vmatpush1.msra.mxu0 %v1992
          %3039 = vmatprep.subr.mxu0 0.0
          %3040 = vmatpush1.msra.mxu0 %v1993
          %3041 = vmatprep.subr.mxu0 0.0
          %3042 = vmatpush1.msra.mxu0 %v1994
          %3043 = vmatprep.subr.mxu0 0.0
          %3044 = vmatpush1.msra.mxu0 %v1995
          %3045 = vmatprep.subr.mxu0 0.0
          %3046 = vmatpush1.msra.mxu0 %v1996
          %3047 = vmatprep.subr.mxu0 0.0
          %3048 = vmatpush1.msra.mxu0 %v1997
          %3049 = vmatprep.subr.mxu0 0.0
          %3050 = vmatpush1.msra.mxu0 %v1998
          %3051 = vmatprep.subr.mxu0 0.0
          %3052 = vmatpush1.msra.mxu0 %v1999
          %3053 = vmatprep.subr.mxu0 0.0
          %3054 = vmatpush1.msra.mxu0 %v2000
          %3055 = vmatprep.subr.mxu0 0.0
          %3056 = vmatpush1.msra.mxu0 %v2001
          %3057 = vmatprep.subr.mxu0 0.0
          %3058 = vmatpush1.msra.mxu0 %v2002
          %3059 = vmatprep.subr.mxu0 0.0
          %3060 = vmatpush1.msra.mxu0 %v2003
          %3061 = vmatprep.subr.mxu0 0.0
          %3062 = vmatpush1.msra.mxu0 %v2004
          %3063 = vmatprep.subr.mxu0 0.0
          %3064 = vmatpush1.msra.mxu0 %v2005
          %3065 = vmatprep.subr.mxu0 0.0
          %3066 = vmatpush1.msra.mxu0 %v2006
          %3067 = vmatprep.subr.mxu0 0.0
          %3068 = vmatpush1.msra.mxu0 %v2007
          %3069 = vmatprep.subr.mxu0 0.0
          %3070 = vmatpush1.msra.mxu0 %v2008
          %3071 = vmatprep.subr.mxu0 0.0
          %3072 = vmatpush1.msra.mxu0 %v2009
          %3073 = vmatprep.subr.mxu0 0.0
          %3074 = vmatpush1.msra.mxu0 %v2010
          %3075 = vmatprep.subr.mxu0 0.0
          %3076 = vmatpush1.msra.mxu0 %v2011
          %3077 = vmatprep.subr.mxu0 0.0
          %3078 = vmatpush1.msra.mxu0 %v2012
          %3079 = vmatprep.subr.mxu0 0.0
          %3080 = vmatpush1.msra.mxu0 %v2013
          %3081 = vmatprep.subr.mxu0 0.0
          %3082 = vmatpush1.msra.mxu0 %v2014
          %3083 = vmatprep.subr.mxu0 0.0
          %3084 = vmatpush1.msra.mxu0 %v2015
          %3085 = vmatprep.subr.mxu0 0.0
          %3086 = vmatpush1.msra.mxu0 %v2016
          %3087 = vmatprep.subr.mxu0 0.0
          %3088 = vmatpush1.msra.mxu0 %v2017
          %3089 = vmatprep.subr.mxu0 0.0
          %3090 = vmatpush1.msra.mxu0 %v2018
          %3091 = vmatprep.subr.mxu0 0.0
          %3092 = vmatpush1.msra.mxu0 %v2019
          %3093 = vmatprep.mubr.f32.mxu0 %v2810
          %3094 = vmatmul.mubr.f32.gmra.mrb[0].mxu0 %v2731
          %v3095 = vpop.f32.mrb[0].mxu0
          %v3096 = vadd.f32 %v3026, %v3095
          %v3097 = vpop.f32.mrb[0].mxu0
          %3098 = vdwg.mxu0
          %v3099 = vmax.f32 %v3096, 0.0
          %vm3100 = vcmask 8192
          %v3101 = vsel %vm3100, %v3099, -inf
          %3102 = vmax.xlane.f32.xlu0 %v3101
          %v3103 = vpop.xlane.xlu0 %3102
          %v3104 = vsub.f32 %v3099, %v3103
          %v3105 = vmul.f32 %v3104, 1.442695
          %v3106 = vpow.pop %v3105
          %v3107 = vsel %vm3100, %v3106, 0.0
          %3108 = vadd.xlane.f32.xlu0 %v3107
          %v3109 = vpop.xlane.xlu0 %3108
          %v3110 = vrcp.pop %v3109
          %v3111 = vmul.f32 %v3109, %v3110
          %v3112 = vsub.f32 2.0, %v3111
          %v3113 = vmul.f32 %v3110, %v3112
          %v3114 = vmul.f32 %v3106, %v3113
          %3115 = vst [vmem:[%s725] sm:$0x1] 0.0
          %3116 = vst.msk [vmem:[%s725] sm:$0x1] %vm3100, %v3114
        $region78: #{tpu_custom_call.1} parent=65 // pred_fallthru
          _
        %s3117 = sand.u32 %s107, 1
        %s3118 = scalar_lea.sflag [#allocation5], %s3117
        %s3119 = sand.u32 %s107, 1
        %s3120 = scalar_lea.vmem [#allocation4], %s3119
        // Predicated region
        $region79: #{tpu_custom_call.1} parent=65 // pred_check
          %p3121 = pneg %p117
        $region80: #{tpu_custom_call.1} parent=65 // pred_check_branch
          %3123 = sbr.rel (%p3121) target = $region82
        $region81: #{tpu_custom_call.1} parent=65 // pred_region
          %s3125 = ssub.s32 16, 16
          %3126 = vsyncadd %s3118, %s3125
          %s3127 = smul.addr %s21, 16
          %s3128 = scalar_lea.hbm %s3, %s3127
          %s3130 = sshll.u32 %s3120, 4
          %s3131 = int_to_ptr.vmem [resolvable:$true] %s3130
          %3133 = dma.vmem_to_hbm [thread:$0]  %s3131, 16, %s3128, %s3118
        $region82: #{tpu_custom_call.1} parent=65 // pred_fallthru
          _
      $region66: #{tpu_custom_call.1} parent=5 // pred_fallthru
        _
      %p3134 = scmp.le.s32.totalorder 2, %s12
      // Predicated region
      $region83: #{tpu_custom_call.1} parent=5 // pred_check
        %p3135 = pneg %p3134
      $region84: #{tpu_custom_call.1} parent=5 // pred_check_branch
        %3137 = sbr.rel (%p3135) target = $region86
      $region85: #{tpu_custom_call.1} parent=5 // pred_region
        %s3138 = ssub.s32 %s12, 2
        // Predicated region
        $region87: #{tpu_custom_call.1} parent=85 // pred_check
          %p3139 = pneg %p123
        $region88: #{tpu_custom_call.1} parent=85 // pred_check_branch
          %3141 = sbr.rel (%p3139) target = $region90
        $region89: #{tpu_custom_call.1} parent=85 // pred_region
          %s3142 = sand.u32 %s108, 1
          %s3143 = scalar_lea.sflag [#allocation5], %s3142
          %s3144 = sand.u32 %s108, 1
          %s3145 = scalar_lea.vmem [#allocation4], %s3144
          %3146 = dma.done %s3143, 16
        $region90: #{tpu_custom_call.1} parent=85 // pred_fallthru
          _
      $region86: #{tpu_custom_call.1} parent=5 // pred_fallthru
        _
    $region6: #{tpu_custom_call.1} parent=1 // loop_footer
      %s16 = sadd.s32 1, %s12
    $region7: #{tpu_custom_call.1} parent=1 // loop_footer_branch
      %11 = sbr.rel target = $region3
    $region8: #{tpu_custom_call.1} parent=1 // loop_exit
      _
    %3147 = vsyncpa [#allocation5], 1
    %s3148 = scalar_lea.sflag [#allocation5], 1
    %3149 = vsyncpa %s3148, 1

</llo_original>
